<compile_context>
chip_gen: v5e
topology: v5e:2x2
jax: 0.10.0
libtpu: 0.0.40
codegen_flags: <defaults>
</compile_context>

<pallas_src>
import functools

import jax
import jax.numpy as jnp
import numpy as np
from jax import lax
from jax.experimental import pallas as pl
from jax.experimental.pallas import tpu as pltpu


def _lovasz_hinge_kernel(err_ref, lab_ref, out_ref, *, images: int):
    """Lovasz hinge loss for `images` images (one grid block).

    err_ref: (G, 1, P) hinge errors, pixel axis on lanes.
    lab_ref: (G, 1, P) binary labels (float32 0/1), pixel axis on lanes.
    out_ref: (1, 1, 128) per-image losses; image g of this block in lane g.
    """
    P = err_ref.shape[-1]
    G = images

    # Hoisted loop-invariant iotas: only (P, 1) / (1, P) vectors, no PxP
    # constants (JAX does not CSE broadcasts, so keep them outside the loop).
    lane128 = lax.broadcasted_iota(jnp.int32, out_ref.shape, 2)      # (1, 1, 128)
    sub_iota = lax.broadcasted_iota(jnp.int32, (P, 1), 0)            # sublane index
    lane_iota = lax.broadcasted_iota(jnp.int32, (1, P), 1)           # lane index
    sub_f = sub_iota.astype(jnp.float32)                             # (P, 1)

    def body(g, acc):
        e_r = err_ref[g]        # (1, P) hinge errors
        lab = lab_ref[g]        # (1, P) labels (0/1, f32)

        # err in both orientations.  The column orientation comes from a single
        # tile-aligned (P, P) XLU transpose (no lane-padded (P, 1) input).
        e_row = jnp.broadcast_to(e_r, (P, P))      # e_row[a, i]  = err[i]
        e_col = jnp.transpose(e_row)               # e_col[j, b]  = err[j]
        lab_row = jnp.broadcast_to(lab, (P, P))    # lab_row[a, i] = lab[i]

        # comes_before[j, i] = 1 iff element j precedes element i in a stable
        # descending sort of the errors (ties broken by original index).
        # NOTE: the Lovasz loss is invariant to the order inside tied-error
        # blocks, so this tie-break matches torch.sort -- do not "fix" it.
        comes_before = (e_col > e_row) | ((e_col == e_row) & (sub_iota < lane_iota))

        # rank[i] = sorted position of element i: sublane reduction (XLU),
        # exact small integers in f32 (valid for P < 2^24).
        rank_row = jnp.sum(comes_before.astype(jnp.float32), axis=0, keepdims=True)  # (1, P)

        # Masks over [sorted position k (sublanes), element i (lanes)].
        eq_ki = rank_row == sub_f       # one-hot permutation: rank[i] == k
        le_ki = rank_row <= sub_f       # prefix mask:         rank[i] <= k

        # errors_sorted[k] = err[perm[k]]  (exact: one-hot select + add)
        # gt_sorted[k]     = lab[perm[k]]
        # cumsum_gt[k]     = sum_{k' <= k} gt_sorted[k']
        # Masked lane reductions sharing the same masks; results are
        # lane-sparse (P, 1) columns, plenty for the O(P) grad math below.
        errors_sorted = jnp.sum(jnp.where(eq_ki, e_row, 0.0), axis=1, keepdims=True)    # (P, 1)
        gt_sorted = jnp.sum(jnp.where(eq_ki, lab_row, 0.0), axis=1, keepdims=True)      # (P, 1)
        cumsum_gt = jnp.sum(jnp.where(le_ki, lab_row, 0.0), axis=1, keepdims=True)      # (P, 1)

        # --- lovasz_grad on (P, 1) columns -----------------------------------
        gts = jnp.sum(lab)
        intersection = gts - cumsum_gt
        union = gts + (sub_f + 1.0) - cumsum_gt        # cumsum(1-gt) = (k+1) - cumsum(gt)
        jaccard = 1.0 - intersection / union

        cumsum_prev = cumsum_gt - gt_sorted            # cumsum at position k-1
        union_prev = jnp.where(sub_iota == 0, 1.0, gts + sub_f - cumsum_prev)
        jaccard_prev = jnp.where(sub_iota == 0, 0.0,
                                 1.0 - (gts - cumsum_prev) / union_prev)
        grad = jaccard - jaccard_prev                  # grad[0] = jaccard[0]

        # loss = dot(relu(errors_sorted), grad)
        loss_img = jnp.sum(jnp.maximum(errors_sorted, 0.0) * grad)
        return acc + jnp.where(lane128 == g, loss_img, 0.0)

    out_ref[...] = lax.fori_loop(0, G, body, jnp.zeros(out_ref.shape, jnp.float32))


def binary_lovasz_loss(logits, labels, per_image=True, ignore=None, images_per_block=8):
    """Forward pass of BinaryLovaszLoss (per_image default, ignore=None)."""
    # TODO(synk): `ignore` (dynamic-length filtering of void pixels) not implemented.
    assert ignore is None
    B, H, W = logits.shape
    if per_image:
        n, P = B, H * W
    else:
        # NOTE: per_image=False makes the PxP working set (B*H*W)^2 - only
        # usable for small whole-batch pixel counts.
        n, P = 1, B * H * W
    # TODO(synk): pixel counts that are not a multiple of 128 would need lane
    # padding plus ignore-style masking (not implemented).
    assert P % 128 == 0, "per-image pixel count must be a multiple of 128"

    # Images per grid step: largest divisor of n that keeps >= 2 grid steps
    # whenever n >= 2 (two v7x TensorCores along the "parallel" axis) and fits
    # in the 128 output lanes.  Because G divides n there are never padded
    # images, so no per-image work is wasted and the in-kernel loop has a
    # static trip count.
    # TODO(synk): select G / vmem limit per-chip via pltpu.get_tpu_info().
    g_cap = max(1, min(images_per_block, -(-n // 2), 128))
    G = max(d for d in range(1, g_cap + 1) if n % d == 0)
    n_blocks = n // G

    logits_f = logits.reshape(n, P).astype(jnp.float32)
    labels_f = labels.reshape(n, P).astype(jnp.float32)
    signs = 2.0 * labels_f - 1.0
    errors = 1.0 - logits_f * signs             # hinge errors, computed once

    err_row = errors.reshape(n, 1, P)           # pixel axis on lanes
    lab_row = labels_f.reshape(n, 1, P)

    # VMEM: ~7 live PxP f32-sized buffers per loop iteration (e_row, e_col,
    # masks, selects) + double-buffered, sublane-padded (G, 1->8, P) inputs.
    # Always set the scoped limit explicitly (v5e defaults to ~16 MiB); cap at
    # 48 MiB to leave headroom inside v7x's 64 MiB physical VMEM.
    # TODO(synk): strip-mine the sorted-position axis for P >~ 1280 so the
    # working set becomes O(P*Kt) instead of O(P^2).
    vmem_needed = 28 * P * P + 2 * 2 * G * 8 * P * 4 + (1 << 20)
    vmem_limit = min(48 << 20, max(vmem_needed + (8 << 20), 32 << 20))

    kernel = functools.partial(_lovasz_hinge_kernel, images=G)
    out = pl.pallas_call(
        kernel,
        out_shape=jax.ShapeDtypeStruct((n_blocks, 1, 128), jnp.float32),
        grid_spec=pltpu.PrefetchScalarGridSpec(
            num_scalar_prefetch=0,
            grid=(n_blocks,),
            in_specs=[
                pl.BlockSpec((G, 1, P), lambda b: (b, 0, 0)),
                pl.BlockSpec((G, 1, P), lambda b: (b, 0, 0)),
            ],
            out_specs=pl.BlockSpec((1, 1, 128), lambda b: (b, 0, 0)),
        ),
        compiler_params=pltpu.CompilerParams(
            dimension_semantics=("parallel",),   # independent blocks -> megacore shardable
            vmem_limit_bytes=vmem_limit,
        ),
    )(err_row, lab_row)

    # Block b, lane g  <->  image b*G + g.  Mean over images in JAX.
    per_image_losses = out.reshape(n_blocks, 128)[:, :G].reshape(-1)
    return jnp.mean(per_image_losses)


def _reference_loss(logits, labels):
    """Pure-JAX reference identical to the PyTorch forward (per_image=True)."""
    def per_img(lg, lb):
        lg = lg.reshape(-1)
        lb = lb.reshape(-1)
        signs = 2.0 * lb - 1.0
        errors = 1.0 - lg * signs
        order = jnp.argsort(-errors)          # descending, stable
        es = errors[order]
        gs = lb[order]
        gts = gs.sum()
        inter = gts - jnp.cumsum(gs)
        union = gts + jnp.cumsum(1.0 - gs)
        jac = 1.0 - inter / union
        grad = jnp.concatenate([jac[:1], jac[1:] - jac[:-1]])
        return jnp.dot(jnp.maximum(es, 0.0), grad)

    return jnp.mean(jax.vmap(per_img)(logits, labels))


if __name__ == "__main__":
    key = jax.random.PRNGKey(0)
    k1, k2 = jax.random.split(key)
    B, H, W = 2, 16, 16
    logits = jax.random.normal(k1, (B, H, W), dtype=jnp.float32) * 3.0
    labels = (jax.random.uniform(k2, (B, H, W)) > 0.5).astype(jnp.float32)

    loss = binary_lovasz_loss(logits, labels, per_image=True)
    loss = jax.block_until_ready(loss)

    ref = jax.block_until_ready(_reference_loss(logits, labels))
    np.testing.assert_allclose(np.asarray(loss), np.asarray(ref), rtol=1e-4, atol=1e-5)
    print("KERNEL_OK")
</pallas_src>

<mosaic_0001>
module attributes {stable_mosaic.version = 11 : i64} {
  func.func @_lovasz_hinge_kernel(%arg0: i32, %arg1: memref<1x1x256xf32, #tpu.memory_space<vmem>>, %arg2: memref<1x1x256xf32, #tpu.memory_space<vmem>>, %arg3: memref<1x1x128xf32, #tpu.memory_space<vmem>>) attributes {dimension_semantics = [#tpu.dimension_semantics<parallel>], iteration_bounds = array<i64: 2>, scalar_prefetch = 0 : i64, scratch_operands = 0 : i64, tpu.core_type = #tpu.core_type<tc>, window_params = [{transform_indices = @transform_0, window_bounds = array<i64: 1, 1, 256>}, {transform_indices = @transform_1, window_bounds = array<i64: 1, 1, 256>}, {transform_indices = @transform_2, window_bounds = array<i64: 1, 1, 128>}]} {
    %0 = tpu.iota {dimensions = array<i32: 2>} : vector<1x1x128xi32>
    %1 = tpu.iota {dimensions = array<i32: 0>} : vector<256x1xi32>
    %2 = tpu.iota {dimensions = array<i32: 1>} : vector<1x256xi32>
    %3 = arith.sitofp %1 : vector<256x1xi32> to vector<256x1xf32>
    %cst = arith.constant 0.000000e+00 : f32
    %4 = vector.broadcast %cst : f32 to vector<1x1x128xf32>
    %c0_i32 = arith.constant 0 : i32
    %5 = arith.index_cast %c0_i32 : i32 to index
    %c0 = arith.constant 0 : index
    %c0_0 = arith.constant 0 : index
    %6 = vector.load %arg1[%5, %c0, %c0_0] : memref<1x1x256xf32, #tpu.memory_space<vmem>>, vector<1x1x256xf32>
    %7 = vector.shape_cast %6 : vector<1x1x256xf32> to vector<1x256xf32>
    %8 = arith.index_cast %c0_i32 : i32 to index
    %c0_1 = arith.constant 0 : index
    %c0_2 = arith.constant 0 : index
    %9 = vector.load %arg2[%8, %c0_1, %c0_2] : memref<1x1x256xf32, #tpu.memory_space<vmem>>, vector<1x1x256xf32>
    %10 = vector.shape_cast %9 : vector<1x1x256xf32> to vector<1x256xf32>
    %11 = vector.shape_cast %7 : vector<1x256xf32> to vector<1x256xf32>
    %12 = vector.broadcast %11 : vector<1x256xf32> to vector<256x256xf32>
    %13 = tpu.transpose %12, [1, 0] : vector<256x256xf32> -> vector<256x256xf32>
    %14 = vector.shape_cast %10 : vector<1x256xf32> to vector<1x256xf32>
    %15 = vector.broadcast %14 : vector<1x256xf32> to vector<256x256xf32>
    %16 = arith.cmpf ogt, %13, %12 : vector<256x256xf32>
    %17 = arith.cmpf oeq, %13, %12 : vector<256x256xf32>
    %18 = vector.broadcast %1 : vector<256x1xi32> to vector<256x256xi32>
    %19 = vector.broadcast %2 : vector<1x256xi32> to vector<256x256xi32>
    %20 = arith.cmpi slt, %18, %19 : vector<256x256xi32>
    %21 = arith.andi %17, %20 : vector<256x256xi1>
    %22 = arith.ori %16, %21 : vector<256x256xi1>
    %23 = arith.extui %22 : vector<256x256xi1> to vector<256x256xi32>
    %24 = arith.sitofp %23 : vector<256x256xi32> to vector<256x256xf32>
    %cst_3 = arith.constant dense<0.000000e+00> : vector<256xf32>
    %25 = vector.multi_reduction <add>, %24, %cst_3 [0] : vector<256x256xf32> to vector<256xf32>
    %26 = vector.shape_cast %25 : vector<256xf32> to vector<1x256xf32>
    %27 = vector.broadcast %26 : vector<1x256xf32> to vector<256x256xf32>
    %28 = vector.broadcast %3 : vector<256x1xf32> to vector<256x256xf32>
    %29 = arith.cmpf oeq, %27, %28 : vector<256x256xf32>
    %30 = vector.broadcast %26 : vector<1x256xf32> to vector<256x256xf32>
    %31 = vector.broadcast %3 : vector<256x1xf32> to vector<256x256xf32>
    %32 = arith.cmpf ole, %30, %31 : vector<256x256xf32>
    %cst_4 = arith.constant 0.000000e+00 : f32
    %33 = vector.broadcast %cst_4 : f32 to vector<256x256xf32>
    %34 = arith.select %29, %12, %33 : vector<256x256xi1>, vector<256x256xf32>
    %cst_5 = arith.constant dense<0.000000e+00> : vector<256xf32>
    %35 = vector.multi_reduction <add>, %34, %cst_5 [1] : vector<256x256xf32> to vector<256xf32>
    %36 = vector.shape_cast %35 : vector<256xf32> to vector<256x1xf32>
    %cst_6 = arith.constant 0.000000e+00 : f32
    %37 = vector.broadcast %cst_6 : f32 to vector<256x256xf32>
    %38 = arith.select %29, %15, %37 : vector<256x256xi1>, vector<256x256xf32>
    %cst_7 = arith.constant dense<0.000000e+00> : vector<256xf32>
    %39 = vector.multi_reduction <add>, %38, %cst_7 [1] : vector<256x256xf32> to vector<256xf32>
    %40 = vector.shape_cast %39 : vector<256xf32> to vector<256x1xf32>
    %cst_8 = arith.constant 0.000000e+00 : f32
    %41 = vector.broadcast %cst_8 : f32 to vector<256x256xf32>
    %42 = arith.select %32, %15, %41 : vector<256x256xi1>, vector<256x256xf32>
    %cst_9 = arith.constant dense<0.000000e+00> : vector<256xf32>
    %43 = vector.multi_reduction <add>, %42, %cst_9 [1] : vector<256x256xf32> to vector<256xf32>
    %44 = vector.shape_cast %43 : vector<256xf32> to vector<256x1xf32>
    %45 = vector.shape_cast %10 : vector<1x256xf32> to vector<1x1x256xf32>
    %cst_10 = arith.constant dense<0.000000e+00> : vector<1xf32>
    %46 = vector.multi_reduction <add>, %45, %cst_10 [1, 2] : vector<1x1x256xf32> to vector<1xf32>
    %47 = vector.shape_cast %46 : vector<1xf32> to vector<1x1x1xf32>
    %48 = vector.extract %47[0, 0, 0] : f32 from vector<1x1x1xf32>
    %49 = vector.broadcast %48 : f32 to vector<256x1xf32>
    %50 = arith.subf %49, %44 : vector<256x1xf32>
    %cst_11 = arith.constant 1.000000e+00 : f32
    %51 = vector.broadcast %cst_11 : f32 to vector<256x1xf32>
    %52 = arith.addf %3, %51 : vector<256x1xf32>
    %53 = vector.broadcast %48 : f32 to vector<256x1xf32>
    %54 = arith.addf %53, %52 : vector<256x1xf32>
    %55 = arith.subf %54, %44 : vector<256x1xf32>
    %56 = arith.divf %50, %55 : vector<256x1xf32>
    %cst_12 = arith.constant 1.000000e+00 : f32
    %57 = vector.broadcast %cst_12 : f32 to vector<256x1xf32>
    %58 = arith.subf %57, %56 : vector<256x1xf32>
    %59 = arith.subf %44, %40 : vector<256x1xf32>
    %c0_i32_13 = arith.constant 0 : i32
    %60 = vector.broadcast %c0_i32_13 : i32 to vector<256x1xi32>
    %61 = arith.cmpi eq, %1, %60 : vector<256x1xi32>
    %62 = vector.broadcast %48 : f32 to vector<256x1xf32>
    %63 = arith.addf %62, %3 : vector<256x1xf32>
    %64 = arith.subf %63, %59 : vector<256x1xf32>
    %cst_14 = arith.constant 1.000000e+00 : f32
    %65 = vector.broadcast %cst_14 : f32 to vector<256x1xf32>
    %66 = arith.select %61, %65, %64 : vector<256x1xi1>, vector<256x1xf32>
    %c0_i32_15 = arith.constant 0 : i32
    %67 = vector.broadcast %c0_i32_15 : i32 to vector<256x1xi32>
    %68 = arith.cmpi eq, %1, %67 : vector<256x1xi32>
    %69 = vector.broadcast %48 : f32 to vector<256x1xf32>
    %70 = arith.subf %69, %59 : vector<256x1xf32>
    %71 = arith.divf %70, %66 : vector<256x1xf32>
    %cst_16 = arith.constant 1.000000e+00 : f32
    %72 = vector.broadcast %cst_16 : f32 to vector<256x1xf32>
    %73 = arith.subf %72, %71 : vector<256x1xf32>
    %cst_17 = arith.constant 0.000000e+00 : f32
    %74 = vector.broadcast %cst_17 : f32 to vector<256x1xf32>
    %75 = arith.select %68, %74, %73 : vector<256x1xi1>, vector<256x1xf32>
    %76 = arith.subf %58, %75 : vector<256x1xf32>
    %cst_18 = arith.constant 0.000000e+00 : f32
    %77 = vector.broadcast %cst_18 : f32 to vector<256x1xf32>
    %78 = arith.maximumf %36, %77 : vector<256x1xf32>
    %79 = arith.mulf %78, %76 : vector<256x1xf32>
    %80 = vector.shape_cast %79 : vector<256x1xf32> to vector<1x256x1xf32>
    %cst_19 = arith.constant dense<0.000000e+00> : vector<1xf32>
    %81 = vector.multi_reduction <add>, %80, %cst_19 [1, 2] : vector<1x256x1xf32> to vector<1xf32>
    %82 = vector.shape_cast %81 : vector<1xf32> to vector<1x1x1xf32>
    %83 = vector.extract %82[0, 0, 0] : f32 from vector<1x1x1xf32>
    %84 = vector.broadcast %c0_i32 : i32 to vector<1x1x128xi32>
    %85 = arith.cmpi eq, %0, %84 : vector<1x1x128xi32>
    %cst_20 = arith.constant 0.000000e+00 : f32
    %86 = vector.broadcast %83 : f32 to vector<1x1x128xf32>
    %87 = vector.broadcast %cst_20 : f32 to vector<1x1x128xf32>
    %88 = arith.select %85, %86, %87 : vector<1x1x128xi1>, vector<1x1x128xf32>
    %89 = arith.addf %4, %88 : vector<1x1x128xf32>
    %c1_i32 = arith.constant 1 : i32
    %c0_21 = arith.constant 0 : index
    %c0_22 = arith.constant 0 : index
    %c0_23 = arith.constant 0 : index
    %90 = vector.load %arg3[%c0_21, %c0_22, %c0_23] : memref<1x1x128xf32, #tpu.memory_space<vmem>>, vector<1x1x128xf32>
    tpu.vector_store %arg3[%c0_21, %c0_22, %c0_23], %89 {strides = array<i32>} : memref<1x1x128xf32, #tpu.memory_space<vmem>>, vector<1x1x128xf32>,
    return
  }
  func.func @transform_0(%arg0: i32) -> (i32, i32, i32) {
    %c0_i32 = arith.constant 0 : i32
    %c0_i32_0 = arith.constant 0 : i32
    %c0_i32_1 = arith.constant 0 : i32
    return %arg0, %c0_i32, %c0_i32_0 : i32, i32, i32
  }
  func.func @transform_1(%arg0: i32) -> (i32, i32, i32) {
    %c0_i32 = arith.constant 0 : i32
    %c0_i32_0 = arith.constant 0 : i32
    %c0_i32_1 = arith.constant 0 : i32
    return %arg0, %c0_i32, %c0_i32_0 : i32, i32, i32
  }
  func.func @transform_2(%arg0: i32) -> (i32, i32, i32) {
    %c0_i32 = arith.constant 0 : i32
    %c0_i32_0 = arith.constant 0 : i32
    %c0_i32_1 = arith.constant 0 : i32
    return %arg0, %c0_i32, %c0_i32_0 : i32, i32, i32
  }
}

</mosaic_0001>

<llo_original>
// kernel: tpu_custom_call.1
$region0: #{tpu_custom_call.1}
  #allocation0 [shape = 'u32[]', space=smem, size = 0x4, offset = 0x4, fixed_abs, tag = 'smem constant byte address 0x4 - core index']
  #allocation1 [shape = 'u32[72,128]{1,0:T(1,128)}', space=vmem, size = 0x9000, scoped, tag = 'internal scratch']
  %s0 = inlined_call_operand.hbm [shape: f32[2,1,256], index: 0, kind: input, shape index: {}]
  %s1 = inlined_call_operand.hbm [shape: f32[2,1,256], index: 1, kind: input, shape index: {}]
  %s2 = inlined_call_operand.hbm [shape: f32[2,1,128], index: 2, kind: output, shape index: {}]
  %s3 = sld [smem:[#allocation0]]
  $region49: #{tpu_custom_call.1} parent=0
    _
  %s5 = ssub.s32 1, %s3
  %s6 = scalar_select 0, %s5, %s3
  $region1: #{tpu_custom_call.1} parent=0
    #allocation2 [shape = 'u8[2048]{0}', space=vmem, size = 0x800, scoped, tag = 'input window, operand 0']
    #allocation3 [shape = 's32[2]{0}', space=sflag, size = 0x8, scoped, tag = 'scoped memory for tpu_custom_call.1']
    #allocation4 [shape = 's32[2]{0}', space=sflag, size = 0x8, scoped, tag = 'scoped memory for tpu_custom_call.1']
    #allocation5 [shape = 'u8[2048]{0}', space=vmem, size = 0x800, scoped, tag = 'input window, operand 1']
    #allocation6 [shape = 's32[2]{0}', space=sflag, size = 0x8, scoped, tag = 'scoped memory for tpu_custom_call.1']
    #allocation7 [shape = 'u8[1024]{0}', space=vmem, size = 0x400, scoped, tag = 'output window, operand 0']
    %7 = vsyncpa [#allocation3], 0
    %s8 = scalar_lea.sflag [#allocation3], 1
    %9 = vsyncpa %s8, 0
    %10 = vsyncpa [#allocation6], 0
    %s11 = scalar_lea.sflag [#allocation6], 1
    %12 = vsyncpa %s11, 0
    %13 = vsyncpa [#allocation4], 0
    %s14 = scalar_lea.sflag [#allocation4], 1
    %15 = vsyncpa %s14, 0
    loop: start=0, step=1, limit=4
    $region2: #{tpu_custom_call.1} parent=1 // loop_pre_header
      _
    $region3: #{tpu_custom_call.1} parent=1 // loop_header
      %s17 = sphi 0, %s21
      %p18 = scmp.ge.s32.totalorder %s17, 4
      %s27 = sphi 0, %s29
      %s30 = sphi 0, %s27
      %s31 = sphi 0, %s30
      %s47 = sphi 0, %s31
      %s53 = sphi 0, %s55
      %s56 = sphi 0, %s53
      %s57 = sphi 0, %s56
      %s73 = sphi 0, %s57
      %s79 = sphi 0, %s81
      %s82 = sphi 0, %s79
      %s83 = sphi 0, %s82
      %s99 = sphi 0, %s83
    $region4: #{tpu_custom_call.1} parent=1 // loop_header_branch
      %20 = sbr.rel (%p18) target = $region8
    $region5: #{tpu_custom_call.1} parent=1 // loop_body
      %s22 = ssub.s32 %s17, 1
      %s23 = ssub.s32 %s17, 2
      %s24 = sadd.s32 %s17, 1
      %s25 = ssub.s32 %s17, %s24
      %p26 = scmp.eq.s32.totalorder %s25, 0
      %s28 = sadd.s32 %s27, 1
      %s29 = scalar_select %p26, %s27, %s28
      %p32 = pneg %p26
      %p33 = scmp.eq.s32.totalorder %s17, 1
      %p34 = por %p32, %p33
      %p35 = scmp.ne.s32.totalorder %s27, %s30
      %p36 = scmp.eq.s32.totalorder %s17, 0
      %p37 = por %p35, %p36
      %p38 = scmp.ne.s32.totalorder %s27, %s30
      %p39 = scmp.eq.s32.totalorder %s22, 1
      %p40 = por %p38, %p39
      %p41 = scmp.ne.s32.totalorder %s30, %s31
      %p42 = scmp.eq.s32.totalorder %s22, 0
      %p43 = por %p41, %p42
      %p44 = scmp.ne.s32.totalorder %s30, %s31
      %p45 = scmp.eq.s32.totalorder %s23, 1
      %p46 = por %p44, %p45
      %p48 = scmp.ne.s32.totalorder %s31, %s47
      %p49 = scmp.eq.s32.totalorder %s23, 0
      %p50 = por %p48, %p49
      %s51 = ssub.s32 %s17, %s24
      %p52 = scmp.eq.s32.totalorder %s51, 0
      %s54 = sadd.s32 %s53, 1
      %s55 = scalar_select %p52, %s53, %s54
      %p58 = pneg %p52
      %p59 = scmp.eq.s32.totalorder %s17, 1
      %p60 = por %p58, %p59
      %p61 = scmp.ne.s32.totalorder %s53, %s56
      %p62 = scmp.eq.s32.totalorder %s17, 0
      %p63 = por %p61, %p62
      %p64 = scmp.ne.s32.totalorder %s53, %s56
      %p65 = scmp.eq.s32.totalorder %s22, 1
      %p66 = por %p64, %p65
      %p67 = scmp.ne.s32.totalorder %s56, %s57
      %p68 = scmp.eq.s32.totalorder %s22, 0
      %p69 = por %p67, %p68
      %p70 = scmp.ne.s32.totalorder %s56, %s57
      %p71 = scmp.eq.s32.totalorder %s23, 1
      %p72 = por %p70, %p71
      %p74 = scmp.ne.s32.totalorder %s57, %s73
      %p75 = scmp.eq.s32.totalorder %s23, 0
      %p76 = por %p74, %p75
      %s77 = ssub.s32 %s17, %s24
      %p78 = scmp.eq.s32.totalorder %s77, 0
      %s80 = sadd.s32 %s79, 1
      %s81 = scalar_select %p78, %s79, %s80
      %p84 = pneg %p78
      %p85 = scmp.eq.s32.totalorder %s17, 1
      %p86 = por %p84, %p85
      %p87 = scmp.ne.s32.totalorder %s79, %s82
      %p88 = scmp.eq.s32.totalorder %s17, 0
      %p89 = por %p87, %p88
      %p90 = scmp.ne.s32.totalorder %s79, %s82
      %p91 = scmp.eq.s32.totalorder %s22, 1
      %p92 = por %p90, %p91
      %p93 = scmp.ne.s32.totalorder %s82, %s83
      %p94 = scmp.eq.s32.totalorder %s22, 0
      %p95 = por %p93, %p94
      %p96 = scmp.ne.s32.totalorder %s82, %s83
      %p97 = scmp.eq.s32.totalorder %s23, 1
      %p98 = por %p96, %p97
      %p100 = scmp.ne.s32.totalorder %s83, %s99
      %p101 = scmp.eq.s32.totalorder %s23, 0
      %p102 = por %p100, %p101
      %p103 = scmp.le.s32.totalorder 1, %s17
      %p104 = scmp.lt.s32.totalorder %s17, 3
      %p105 = pnand %p103, %p104
      %p106 = pneg %p105
      // Predicated region
      $region9: #{tpu_custom_call.1} parent=5 // pred_check
        _
      $region10: #{tpu_custom_call.1} parent=5 // pred_check_branch
        %108 = sbr.rel (%p105) target = $region12
      $region11: #{tpu_custom_call.1} parent=5 // pred_region
        %s109 = ssub.s32 %s17, 1
      $region12: #{tpu_custom_call.1} parent=5 // pred_fallthru
        _
      %p110 = scmp.lt.s32.totalorder %s17, 2
      // Predicated region
      $region13: #{tpu_custom_call.1} parent=5 // pred_check
        %p111 = pneg %p110
      $region14: #{tpu_custom_call.1} parent=5 // pred_check_branch
        %113 = sbr.rel (%p111) target = $region16
      $region15: #{tpu_custom_call.1} parent=5 // pred_region
        // Predicated region
        $region17: #{tpu_custom_call.1} parent=15 // pred_check
          %p114 = pneg %p37
        $region18: #{tpu_custom_call.1} parent=15 // pred_check_branch
          %116 = sbr.rel (%p114) target = $region20
        $region19: #{tpu_custom_call.1} parent=15 // pred_region
          %s117 = sand.u32 %s27, 1
          %s118 = scalar_lea.sflag [#allocation3], %s117
          %s119 = sand.u32 %s27, 1
          %s120 = smul.addr %s119, 2
          %s121 = scalar_lea.vmem [#allocation2], %s120
          %123 = vsyncadd %s118, 0
          %s124 = smul.addr %s17, 2
          %s125 = scalar_lea.hbm %s0, %s124
          %s127 = sshll.u32 %s125, 4
          %s128 = int_to_ptr.hbm [resolvable:$true] %s127
          %s129 = sshll.u32 %s121, 4
          %s130 = int_to_ptr.vmem [resolvable:$true] %s129
          %132 = dma.hbm_to_vmem [thread:$0]  %s128, 32, %s130, %s118
        $region20: #{tpu_custom_call.1} parent=15 // pred_fallthru
          _
        // Predicated region
        $region21: #{tpu_custom_call.1} parent=15 // pred_check
          %p133 = pneg %p63
        $region22: #{tpu_custom_call.1} parent=15 // pred_check_branch
          %135 = sbr.rel (%p133) target = $region24
        $region23: #{tpu_custom_call.1} parent=15 // pred_region
          %s136 = sand.u32 %s53, 1
          %s137 = scalar_lea.sflag [#allocation6], %s136
          %s138 = sand.u32 %s53, 1
          %s139 = smul.addr %s138, 2
          %s140 = scalar_lea.vmem [#allocation5], %s139
          %142 = vsyncadd %s137, 0
          %s143 = smul.addr %s17, 2
          %s144 = scalar_lea.hbm %s1, %s143
          %s146 = sshll.u32 %s144, 4
          %s147 = int_to_ptr.hbm [resolvable:$true] %s146
          %s148 = sshll.u32 %s140, 4
          %s149 = int_to_ptr.vmem [resolvable:$true] %s148
          %151 = dma.hbm_to_vmem [thread:$0]  %s147, 32, %s149, %s137
        $region24: #{tpu_custom_call.1} parent=15 // pred_fallthru
          _
      $region16: #{tpu_custom_call.1} parent=5 // pred_fallthru
        _
      %p152 = scmp.le.s32.totalorder 1, %s17
      %p153 = scmp.lt.s32.totalorder %s17, 3
      %p154 = pnand %p152, %p153
      %p155 = pneg %p154
      // Predicated region
      $region25: #{tpu_custom_call.1} parent=5 // pred_check
        _
      $region26: #{tpu_custom_call.1} parent=5 // pred_check_branch
        %157 = sbr.rel (%p154) target = $region28
      $region27: #{tpu_custom_call.1} parent=5 // pred_region
        %s158 = ssub.s32 %s17, 1
        %s159 = sand.u32 %s30, 1
        %s160 = scalar_lea.sflag [#allocation3], %s159
        %s161 = sand.u32 %s30, 1
        %s162 = smul.addr %s161, 2
        %s163 = scalar_lea.vmem [#allocation2], %s162
        // Predicated region
        $region29: #{tpu_custom_call.1} parent=27 // pred_check
          %p164 = pneg %p43
        $region30: #{tpu_custom_call.1} parent=27 // pred_check_branch
          %166 = sbr.rel (%p164) target = $region32
        $region31: #{tpu_custom_call.1} parent=27 // pred_region
          %168 = dma.done %s160, 32
        $region32: #{tpu_custom_call.1} parent=27 // pred_fallthru
          _
        %s169 = sand.u32 %s56, 1
        %s170 = scalar_lea.sflag [#allocation6], %s169
        %s171 = sand.u32 %s56, 1
        %s172 = smul.addr %s171, 2
        %s173 = scalar_lea.vmem [#allocation5], %s172
        // Predicated region
        $region33: #{tpu_custom_call.1} parent=27 // pred_check
          %p174 = pneg %p69
        $region34: #{tpu_custom_call.1} parent=27 // pred_check_branch
          %176 = sbr.rel (%p174) target = $region36
        $region35: #{tpu_custom_call.1} parent=27 // pred_region
          %178 = dma.done %s170, 32
        $region36: #{tpu_custom_call.1} parent=27 // pred_fallthru
          _
        %s179 = sand.u32 %s30, 1
        %s180 = scalar_lea.sflag [#allocation3], %s179
        %s181 = sand.u32 %s30, 1
        %s182 = smul.addr %s181, 2
        %s183 = scalar_lea.vmem [#allocation2], %s182
        %p184 = pneg %p43
        %p185 = pneg %p40
        %s186 = sand.u32 %s56, 1
        %s187 = scalar_lea.sflag [#allocation6], %s186
        %s188 = sand.u32 %s56, 1
        %s189 = smul.addr %s188, 2
        %s190 = scalar_lea.vmem [#allocation5], %s189
        %p191 = pneg %p69
        %p192 = pneg %p66
        %p193 = pneg %p95
        %p194 = pneg %p92
        %s195 = sand.u32 %s82, 1
        %s196 = scalar_lea.sflag [#allocation4], %s195
        %s197 = sand.u32 %s82, 1
        %s198 = scalar_lea.vmem [#allocation7], %s197
        %v199 = vlaneseq
        %v200 = vand.u32 %v199, 127
        %v201 = vlaneseq
        %v202 = vshrl.u32 %v201, 7
        %v203 = vadd.s32 %v202, 8
        %v204 = vadd.s32 %v202, 16
        %v205 = vadd.s32 %v202, 24
        %v206 = vadd.s32 %v202, 32
        %v207 = vadd.s32 %v202, 40
        %v208 = vadd.s32 %v202, 48
        %v209 = vadd.s32 %v202, 56
        %v210 = vadd.s32 %v202, 64
        %v211 = vadd.s32 %v202, 72
        %v212 = vadd.s32 %v202, 80
        %v213 = vadd.s32 %v202, 88
        %v214 = vadd.s32 %v202, 96
        %v215 = vadd.s32 %v202, 104
        %v216 = vadd.s32 %v202, 112
        %v217 = vadd.s32 %v202, 120
        %v218 = vadd.s32 %v202, 128
        %v219 = vadd.s32 %v202, 136
        %v220 = vadd.s32 %v202, 144
        %v221 = vadd.s32 %v202, 152
        %v222 = vadd.s32 %v202, 160
        %v223 = vadd.s32 %v202, 168
        %v224 = vadd.s32 %v202, 176
        %v225 = vadd.s32 %v202, 184
        %v226 = vadd.s32 %v202, 192
        %v227 = vadd.s32 %v202, 200
        %v228 = vadd.s32 %v202, 208
        %v229 = vadd.s32 %v202, 216
        %v230 = vadd.s32 %v202, 224
        %v231 = vadd.s32 %v202, 232
        %v232 = vadd.s32 %v202, 240
        %v233 = vadd.s32 %v202, 248
        %v234 = vadd.s32 %v200, 128
        %v235 = vcvt.s32.f32 %v202
        %v236 = vcvt.s32.f32 %v203
        %v237 = vcvt.s32.f32 %v204
        %v238 = vcvt.s32.f32 %v205
        %v239 = vcvt.s32.f32 %v206
        %v240 = vcvt.s32.f32 %v207
        %v241 = vcvt.s32.f32 %v208
        %v242 = vcvt.s32.f32 %v209
        %v243 = vcvt.s32.f32 %v210
        %v244 = vcvt.s32.f32 %v211
        %v245 = vcvt.s32.f32 %v212
        %v246 = vcvt.s32.f32 %v213
        %v247 = vcvt.s32.f32 %v214
        %v248 = vcvt.s32.f32 %v215
        %v249 = vcvt.s32.f32 %v216
        %v250 = vcvt.s32.f32 %v217
        %v251 = vcvt.s32.f32 %v218
        %v252 = vcvt.s32.f32 %v219
        %v253 = vcvt.s32.f32 %v220
        %v254 = vcvt.s32.f32 %v221
        %v255 = vcvt.s32.f32 %v222
        %v256 = vcvt.s32.f32 %v223
        %v257 = vcvt.s32.f32 %v224
        %v258 = vcvt.s32.f32 %v225
        %v259 = vcvt.s32.f32 %v226
        %v260 = vcvt.s32.f32 %v227
        %v261 = vcvt.s32.f32 %v228
        %v262 = vcvt.s32.f32 %v229
        %v263 = vcvt.s32.f32 %v230
        %v264 = vcvt.s32.f32 %v231
        %v265 = vcvt.s32.f32 %v232
        %v266 = vcvt.s32.f32 %v233
        %v267 = vld [vmem:[%s163] sm:$0x3]
        %v268 = vld [vmem:[%s173] sm:$0x3]
        %v270 = vperm.slane %v267, 0
        %v271 = vperm.slane %v267, 1
        %274 = vxpose.xlu0.b32.start [1/16] %v270, 128
        %275 = vxpose.xlu0.b32.cont [2/16] %v270, 128
        %276 = vxpose.xlu0.b32.cont [3/16] %v270, 128
        %277 = vxpose.xlu0.b32.cont [4/16] %v270, 128
        %278 = vxpose.xlu0.b32.cont [5/16] %v270, 128
        %279 = vxpose.xlu0.b32.cont [6/16] %v270, 128
        %280 = vxpose.xlu0.b32.cont [7/16] %v270, 128
        %281 = vxpose.xlu0.b32.cont [8/16] %v270, 128
        %282 = vxpose.xlu0.b32.cont [9/16] %v270, 128
        %283 = vxpose.xlu0.b32.cont [10/16] %v270, 128
        %284 = vxpose.xlu0.b32.cont [11/16] %v270, 128
        %285 = vxpose.xlu0.b32.cont [12/16] %v270, 128
        %286 = vxpose.xlu0.b32.cont [13/16] %v270, 128
        %287 = vxpose.xlu0.b32.cont [14/16] %v270, 128
        %288 = vxpose.xlu0.b32.cont [15/16] %v270, 128
        %289 = vxpose.xlu0.b32.end [16/16] %v270, 128
        %v290 = vpop.trf.xlu0
        %v291 = vpop.trf.xlu0
        %v292 = vpop.trf.xlu0
        %v293 = vpop.trf.xlu0
        %v294 = vpop.trf.xlu0
        %v295 = vpop.trf.xlu0
        %v296 = vpop.trf.xlu0
        %v297 = vpop.trf.xlu0
        %v298 = vpop.trf.xlu0
        %v299 = vpop.trf.xlu0
        %v300 = vpop.trf.xlu0
        %v301 = vpop.trf.xlu0
        %v302 = vpop.trf.xlu0
        %v303 = vpop.trf.xlu0
        %v304 = vpop.trf.xlu0
        %v305 = vpop.trf.xlu0
        %306 = vxpose.xlu0.b32.start [1/16] %v271, 128
        %307 = vxpose.xlu0.b32.cont [2/16] %v271, 128
        %308 = vxpose.xlu0.b32.cont [3/16] %v271, 128
        %309 = vxpose.xlu0.b32.cont [4/16] %v271, 128
        %310 = vxpose.xlu0.b32.cont [5/16] %v271, 128
        %311 = vxpose.xlu0.b32.cont [6/16] %v271, 128
        %312 = vxpose.xlu0.b32.cont [7/16] %v271, 128
        %313 = vxpose.xlu0.b32.cont [8/16] %v271, 128
        %314 = vxpose.xlu0.b32.cont [9/16] %v271, 128
        %315 = vxpose.xlu0.b32.cont [10/16] %v271, 128
        %316 = vxpose.xlu0.b32.cont [11/16] %v271, 128
        %317 = vxpose.xlu0.b32.cont [12/16] %v271, 128
        %318 = vxpose.xlu0.b32.cont [13/16] %v271, 128
        %319 = vxpose.xlu0.b32.cont [14/16] %v271, 128
        %320 = vxpose.xlu0.b32.cont [15/16] %v271, 128
        %321 = vxpose.xlu0.b32.end [16/16] %v271, 128
        %v322 = vpop.trf.xlu0
        %v323 = vpop.trf.xlu0
        %v324 = vpop.trf.xlu0
        %v325 = vpop.trf.xlu0
        %v326 = vpop.trf.xlu0
        %v327 = vpop.trf.xlu0
        %v328 = vpop.trf.xlu0
        %v329 = vpop.trf.xlu0
        %v330 = vpop.trf.xlu0
        %v331 = vpop.trf.xlu0
        %v332 = vpop.trf.xlu0
        %v333 = vpop.trf.xlu0
        %v334 = vpop.trf.xlu0
        %v335 = vpop.trf.xlu0
        %v336 = vpop.trf.xlu0
        %v337 = vpop.trf.xlu0
        %v339 = vperm.slane %v268, 0
        %v340 = vperm.slane %v268, 1
        %vm343 = vcmp.gt.f32.partialorder %v290, %v270
        %vm344 = vcmp.gt.f32.partialorder %v290, %v271
        %vm345 = vcmp.gt.f32.partialorder %v291, %v270
        %vm346 = vcmp.gt.f32.partialorder %v291, %v271
        %vm347 = vcmp.gt.f32.partialorder %v292, %v270
        %vm348 = vcmp.gt.f32.partialorder %v292, %v271
        %vm349 = vcmp.gt.f32.partialorder %v293, %v270
        %vm350 = vcmp.gt.f32.partialorder %v293, %v271
        %vm351 = vcmp.gt.f32.partialorder %v294, %v270
        %vm352 = vcmp.gt.f32.partialorder %v294, %v271
        %vm353 = vcmp.gt.f32.partialorder %v295, %v270
        %vm354 = vcmp.gt.f32.partialorder %v295, %v271
        %vm355 = vcmp.gt.f32.partialorder %v296, %v270
        %vm356 = vcmp.gt.f32.partialorder %v296, %v271
        %vm357 = vcmp.gt.f32.partialorder %v297, %v270
        %vm358 = vcmp.gt.f32.partialorder %v297, %v271
        %vm359 = vcmp.gt.f32.partialorder %v298, %v270
        %vm360 = vcmp.gt.f32.partialorder %v298, %v271
        %vm361 = vcmp.gt.f32.partialorder %v299, %v270
        %vm362 = vcmp.gt.f32.partialorder %v299, %v271
        %vm363 = vcmp.gt.f32.partialorder %v300, %v270
        %vm364 = vcmp.gt.f32.partialorder %v300, %v271
        %vm365 = vcmp.gt.f32.partialorder %v301, %v270
        %vm366 = vcmp.gt.f32.partialorder %v301, %v271
        %vm367 = vcmp.gt.f32.partialorder %v302, %v270
        %vm368 = vcmp.gt.f32.partialorder %v302, %v271
        %vm369 = vcmp.gt.f32.partialorder %v303, %v270
        %vm370 = vcmp.gt.f32.partialorder %v303, %v271
        %vm371 = vcmp.gt.f32.partialorder %v304, %v270
        %vm372 = vcmp.gt.f32.partialorder %v304, %v271
        %vm373 = vcmp.gt.f32.partialorder %v305, %v270
        %vm374 = vcmp.gt.f32.partialorder %v305, %v271
        %vm375 = vcmp.gt.f32.partialorder %v322, %v270
        %vm376 = vcmp.gt.f32.partialorder %v322, %v271
        %vm377 = vcmp.gt.f32.partialorder %v323, %v270
        %vm378 = vcmp.gt.f32.partialorder %v323, %v271
        %vm379 = vcmp.gt.f32.partialorder %v324, %v270
        %vm380 = vcmp.gt.f32.partialorder %v324, %v271
        %vm381 = vcmp.gt.f32.partialorder %v325, %v270
        %vm382 = vcmp.gt.f32.partialorder %v325, %v271
        %vm383 = vcmp.gt.f32.partialorder %v326, %v270
        %vm384 = vcmp.gt.f32.partialorder %v326, %v271
        %vm385 = vcmp.gt.f32.partialorder %v327, %v270
        %vm386 = vcmp.gt.f32.partialorder %v327, %v271
        %vm387 = vcmp.gt.f32.partialorder %v328, %v270
        %vm388 = vcmp.gt.f32.partialorder %v328, %v271
        %vm389 = vcmp.gt.f32.partialorder %v329, %v270
        %vm390 = vcmp.gt.f32.partialorder %v329, %v271
        %vm391 = vcmp.gt.f32.partialorder %v330, %v270
        %vm392 = vcmp.gt.f32.partialorder %v330, %v271
        %vm393 = vcmp.gt.f32.partialorder %v331, %v270
        %vm394 = vcmp.gt.f32.partialorder %v331, %v271
        %vm395 = vcmp.gt.f32.partialorder %v332, %v270
        %vm396 = vcmp.gt.f32.partialorder %v332, %v271
        %vm397 = vcmp.gt.f32.partialorder %v333, %v270
        %vm398 = vcmp.gt.f32.partialorder %v333, %v271
        %vm399 = vcmp.gt.f32.partialorder %v334, %v270
        %vm400 = vcmp.gt.f32.partialorder %v334, %v271
        %vm401 = vcmp.gt.f32.partialorder %v335, %v270
        %vm402 = vcmp.gt.f32.partialorder %v335, %v271
        %vm403 = vcmp.gt.f32.partialorder %v336, %v270
        %vm404 = vcmp.gt.f32.partialorder %v336, %v271
        %vm405 = vcmp.gt.f32.partialorder %v337, %v270
        %vm406 = vcmp.gt.f32.partialorder %v337, %v271
        %vm407 = vcmp.eq.f32.partialorder %v290, %v270
        %vm408 = vcmp.eq.f32.partialorder %v290, %v271
        %vm409 = vcmp.eq.f32.partialorder %v291, %v270
        %vm410 = vcmp.eq.f32.partialorder %v291, %v271
        %vm411 = vcmp.eq.f32.partialorder %v292, %v270
        %vm412 = vcmp.eq.f32.partialorder %v292, %v271
        %vm413 = vcmp.eq.f32.partialorder %v293, %v270
        %vm414 = vcmp.eq.f32.partialorder %v293, %v271
        %vm415 = vcmp.eq.f32.partialorder %v294, %v270
        %vm416 = vcmp.eq.f32.partialorder %v294, %v271
        %vm417 = vcmp.eq.f32.partialorder %v295, %v270
        %vm418 = vcmp.eq.f32.partialorder %v295, %v271
        %vm419 = vcmp.eq.f32.partialorder %v296, %v270
        %vm420 = vcmp.eq.f32.partialorder %v296, %v271
        %vm421 = vcmp.eq.f32.partialorder %v297, %v270
        %vm422 = vcmp.eq.f32.partialorder %v297, %v271
        %vm423 = vcmp.eq.f32.partialorder %v298, %v270
        %vm424 = vcmp.eq.f32.partialorder %v298, %v271
        %vm425 = vcmp.eq.f32.partialorder %v299, %v270
        %vm426 = vcmp.eq.f32.partialorder %v299, %v271
        %vm427 = vcmp.eq.f32.partialorder %v300, %v270
        %vm428 = vcmp.eq.f32.partialorder %v300, %v271
        %vm429 = vcmp.eq.f32.partialorder %v301, %v270
        %vm430 = vcmp.eq.f32.partialorder %v301, %v271
        %vm431 = vcmp.eq.f32.partialorder %v302, %v270
        %vm432 = vcmp.eq.f32.partialorder %v302, %v271
        %vm433 = vcmp.eq.f32.partialorder %v303, %v270
        %vm434 = vcmp.eq.f32.partialorder %v303, %v271
        %vm435 = vcmp.eq.f32.partialorder %v304, %v270
        %vm436 = vcmp.eq.f32.partialorder %v304, %v271
        %vm437 = vcmp.eq.f32.partialorder %v305, %v270
        %vm438 = vcmp.eq.f32.partialorder %v305, %v271
        %vm439 = vcmp.eq.f32.partialorder %v322, %v270
        %vm440 = vcmp.eq.f32.partialorder %v322, %v271
        %vm441 = vcmp.eq.f32.partialorder %v323, %v270
        %vm442 = vcmp.eq.f32.partialorder %v323, %v271
        %vm443 = vcmp.eq.f32.partialorder %v324, %v270
        %vm444 = vcmp.eq.f32.partialorder %v324, %v271
        %vm445 = vcmp.eq.f32.partialorder %v325, %v270
        %vm446 = vcmp.eq.f32.partialorder %v325, %v271
        %vm447 = vcmp.eq.f32.partialorder %v326, %v270
        %vm448 = vcmp.eq.f32.partialorder %v326, %v271
        %vm449 = vcmp.eq.f32.partialorder %v327, %v270
        %vm450 = vcmp.eq.f32.partialorder %v327, %v271
        %vm451 = vcmp.eq.f32.partialorder %v328, %v270
        %vm452 = vcmp.eq.f32.partialorder %v328, %v271
        %vm453 = vcmp.eq.f32.partialorder %v329, %v270
        %vm454 = vcmp.eq.f32.partialorder %v329, %v271
        %vm455 = vcmp.eq.f32.partialorder %v330, %v270
        %vm456 = vcmp.eq.f32.partialorder %v330, %v271
        %vm457 = vcmp.eq.f32.partialorder %v331, %v270
        %vm458 = vcmp.eq.f32.partialorder %v331, %v271
        %vm459 = vcmp.eq.f32.partialorder %v332, %v270
        %vm460 = vcmp.eq.f32.partialorder %v332, %v271
        %vm461 = vcmp.eq.f32.partialorder %v333, %v270
        %vm462 = vcmp.eq.f32.partialorder %v333, %v271
        %vm463 = vcmp.eq.f32.partialorder %v334, %v270
        %vm464 = vcmp.eq.f32.partialorder %v334, %v271
        %vm465 = vcmp.eq.f32.partialorder %v335, %v270
        %vm466 = vcmp.eq.f32.partialorder %v335, %v271
        %vm467 = vcmp.eq.f32.partialorder %v336, %v270
        %vm468 = vcmp.eq.f32.partialorder %v336, %v271
        %vm469 = vcmp.eq.f32.partialorder %v337, %v270
        %vm470 = vcmp.eq.f32.partialorder %v337, %v271
        %vm471 = vcmp.lt.s32.totalorder %v202, %v200
        %vm472 = vcmp.lt.s32.totalorder %v202, %v234
        %vm473 = vcmp.lt.s32.totalorder %v203, %v200
        %vm474 = vcmp.lt.s32.totalorder %v203, %v234
        %vm475 = vcmp.lt.s32.totalorder %v204, %v200
        %vm476 = vcmp.lt.s32.totalorder %v204, %v234
        %vm477 = vcmp.lt.s32.totalorder %v205, %v200
        %vm478 = vcmp.lt.s32.totalorder %v205, %v234
        %vm479 = vcmp.lt.s32.totalorder %v206, %v200
        %vm480 = vcmp.lt.s32.totalorder %v206, %v234
        %vm481 = vcmp.lt.s32.totalorder %v207, %v200
        %vm482 = vcmp.lt.s32.totalorder %v207, %v234
        %vm483 = vcmp.lt.s32.totalorder %v208, %v200
        %vm484 = vcmp.lt.s32.totalorder %v208, %v234
        %vm485 = vcmp.lt.s32.totalorder %v209, %v200
        %vm486 = vcmp.lt.s32.totalorder %v209, %v234
        %vm487 = vcmp.lt.s32.totalorder %v210, %v200
        %vm488 = vcmp.lt.s32.totalorder %v210, %v234
        %vm489 = vcmp.lt.s32.totalorder %v211, %v200
        %vm490 = vcmp.lt.s32.totalorder %v211, %v234
        %vm491 = vcmp.lt.s32.totalorder %v212, %v200
        %vm492 = vcmp.lt.s32.totalorder %v212, %v234
        %vm493 = vcmp.lt.s32.totalorder %v213, %v200
        %vm494 = vcmp.lt.s32.totalorder %v213, %v234
        %vm495 = vcmp.lt.s32.totalorder %v214, %v200
        %vm496 = vcmp.lt.s32.totalorder %v214, %v234
        %vm497 = vcmp.lt.s32.totalorder %v215, %v200
        %vm498 = vcmp.lt.s32.totalorder %v215, %v234
        %vm499 = vcmp.lt.s32.totalorder %v216, %v200
        %vm500 = vcmp.lt.s32.totalorder %v216, %v234
        %vm501 = vcmp.lt.s32.totalorder %v217, %v200
        %vm502 = vcmp.lt.s32.totalorder %v217, %v234
        %vm503 = vcmp.lt.s32.totalorder %v218, %v200
        %vm504 = vcmp.lt.s32.totalorder %v218, %v234
        %vm505 = vcmp.lt.s32.totalorder %v219, %v200
        %vm506 = vcmp.lt.s32.totalorder %v219, %v234
        %vm507 = vcmp.lt.s32.totalorder %v220, %v200
        %vm508 = vcmp.lt.s32.totalorder %v220, %v234
        %vm509 = vcmp.lt.s32.totalorder %v221, %v200
        %vm510 = vcmp.lt.s32.totalorder %v221, %v234
        %vm511 = vcmp.lt.s32.totalorder %v222, %v200
        %vm512 = vcmp.lt.s32.totalorder %v222, %v234
        %vm513 = vcmp.lt.s32.totalorder %v223, %v200
        %vm514 = vcmp.lt.s32.totalorder %v223, %v234
        %vm515 = vcmp.lt.s32.totalorder %v224, %v200
        %vm516 = vcmp.lt.s32.totalorder %v224, %v234
        %vm517 = vcmp.lt.s32.totalorder %v225, %v200
        %vm518 = vcmp.lt.s32.totalorder %v225, %v234
        %vm519 = vcmp.lt.s32.totalorder %v226, %v200
        %vm520 = vcmp.lt.s32.totalorder %v226, %v234
        %vm521 = vcmp.lt.s32.totalorder %v227, %v200
        %vm522 = vcmp.lt.s32.totalorder %v227, %v234
        %vm523 = vcmp.lt.s32.totalorder %v228, %v200
        %vm524 = vcmp.lt.s32.totalorder %v228, %v234
        %vm525 = vcmp.lt.s32.totalorder %v229, %v200
        %vm526 = vcmp.lt.s32.totalorder %v229, %v234
        %vm527 = vcmp.lt.s32.totalorder %v230, %v200
        %vm528 = vcmp.lt.s32.totalorder %v230, %v234
        %vm529 = vcmp.lt.s32.totalorder %v231, %v200
        %vm530 = vcmp.lt.s32.totalorder %v231, %v234
        %vm531 = vcmp.lt.s32.totalorder %v232, %v200
        %vm532 = vcmp.lt.s32.totalorder %v232, %v234
        %vm533 = vcmp.lt.s32.totalorder %v233, %v200
        %vm534 = vcmp.lt.s32.totalorder %v233, %v234
        %vm535 = vmand %vm407, %vm471
        %vm536 = vmand %vm408, %vm472
        %vm537 = vmand %vm409, %vm473
        %vm538 = vmand %vm410, %vm474
        %vm539 = vmand %vm411, %vm475
        %vm540 = vmand %vm412, %vm476
        %vm541 = vmand %vm413, %vm477
        %vm542 = vmand %vm414, %vm478
        %vm543 = vmand %vm415, %vm479
        %vm544 = vmand %vm416, %vm480
        %vm545 = vmand %vm417, %vm481
        %vm546 = vmand %vm418, %vm482
        %vm547 = vmand %vm419, %vm483
        %vm548 = vmand %vm420, %vm484
        %vm549 = vmand %vm421, %vm485
        %vm550 = vmand %vm422, %vm486
        %vm551 = vmand %vm423, %vm487
        %vm552 = vmand %vm424, %vm488
        %vm553 = vmand %vm425, %vm489
        %vm554 = vmand %vm426, %vm490
        %vm555 = vmand %vm427, %vm491
        %vm556 = vmand %vm428, %vm492
        %vm557 = vmand %vm429, %vm493
        %vm558 = vmand %vm430, %vm494
        %vm559 = vmand %vm431, %vm495
        %vm560 = vmand %vm432, %vm496
        %vm561 = vmand %vm433, %vm497
        %vm562 = vmand %vm434, %vm498
        %vm563 = vmand %vm435, %vm499
        %vm564 = vmand %vm436, %vm500
        %vm565 = vmand %vm437, %vm501
        %vm566 = vmand %vm438, %vm502
        %vm567 = vmand %vm439, %vm503
        %vm568 = vmand %vm440, %vm504
        %vm569 = vmand %vm441, %vm505
        %vm570 = vmand %vm442, %vm506
        %vm571 = vmand %vm443, %vm507
        %vm572 = vmand %vm444, %vm508
        %vm573 = vmand %vm445, %vm509
        %vm574 = vmand %vm446, %vm510
        %vm575 = vmand %vm447, %vm511
        %vm576 = vmand %vm448, %vm512
        %vm577 = vmand %vm449, %vm513
        %vm578 = vmand %vm450, %vm514
        %vm579 = vmand %vm451, %vm515
        %vm580 = vmand %vm452, %vm516
        %vm581 = vmand %vm453, %vm517
        %vm582 = vmand %vm454, %vm518
        %vm583 = vmand %vm455, %vm519
        %vm584 = vmand %vm456, %vm520
        %vm585 = vmand %vm457, %vm521
        %vm586 = vmand %vm458, %vm522
        %vm587 = vmand %vm459, %vm523
        %vm588 = vmand %vm460, %vm524
        %vm589 = vmand %vm461, %vm525
        %vm590 = vmand %vm462, %vm526
        %vm591 = vmand %vm463, %vm527
        %vm592 = vmand %vm464, %vm528
        %vm593 = vmand %vm465, %vm529
        %vm594 = vmand %vm466, %vm530
        %vm595 = vmand %vm467, %vm531
        %vm596 = vmand %vm468, %vm532
        %vm597 = vmand %vm469, %vm533
        %vm598 = vmand %vm470, %vm534
        %vm599 = vmor %vm343, %vm535
        %vm600 = vmor %vm344, %vm536
        %vm601 = vmor %vm345, %vm537
        %vm602 = vmor %vm346, %vm538
        %vm603 = vmor %vm347, %vm539
        %vm604 = vmor %vm348, %vm540
        %vm605 = vmor %vm349, %vm541
        %vm606 = vmor %vm350, %vm542
        %vm607 = vmor %vm351, %vm543
        %vm608 = vmor %vm352, %vm544
        %vm609 = vmor %vm353, %vm545
        %vm610 = vmor %vm354, %vm546
        %vm611 = vmor %vm355, %vm547
        %vm612 = vmor %vm356, %vm548
        %vm613 = vmor %vm357, %vm549
        %vm614 = vmor %vm358, %vm550
        %vm615 = vmor %vm359, %vm551
        %vm616 = vmor %vm360, %vm552
        %vm617 = vmor %vm361, %vm553
        %vm618 = vmor %vm362, %vm554
        %vm619 = vmor %vm363, %vm555
        %vm620 = vmor %vm364, %vm556
        %vm621 = vmor %vm365, %vm557
        %vm622 = vmor %vm366, %vm558
        %vm623 = vmor %vm367, %vm559
        %vm624 = vmor %vm368, %vm560
        %vm625 = vmor %vm369, %vm561
        %vm626 = vmor %vm370, %vm562
        %vm627 = vmor %vm371, %vm563
        %vm628 = vmor %vm372, %vm564
        %vm629 = vmor %vm373, %vm565
        %vm630 = vmor %vm374, %vm566
        %vm631 = vmor %vm375, %vm567
        %vm632 = vmor %vm376, %vm568
        %vm633 = vmor %vm377, %vm569
        %vm634 = vmor %vm378, %vm570
        %vm635 = vmor %vm379, %vm571
        %vm636 = vmor %vm380, %vm572
        %vm637 = vmor %vm381, %vm573
        %vm638 = vmor %vm382, %vm574
        %vm639 = vmor %vm383, %vm575
        %vm640 = vmor %vm384, %vm576
        %vm641 = vmor %vm385, %vm577
        %vm642 = vmor %vm386, %vm578
        %vm643 = vmor %vm387, %vm579
        %vm644 = vmor %vm388, %vm580
        %vm645 = vmor %vm389, %vm581
        %vm646 = vmor %vm390, %vm582
        %vm647 = vmor %vm391, %vm583
        %vm648 = vmor %vm392, %vm584
        %vm649 = vmor %vm393, %vm585
        %vm650 = vmor %vm394, %vm586
        %vm651 = vmor %vm395, %vm587
        %vm652 = vmor %vm396, %vm588
        %vm653 = vmor %vm397, %vm589
        %vm654 = vmor %vm398, %vm590
        %vm655 = vmor %vm399, %vm591
        %vm656 = vmor %vm400, %vm592
        %vm657 = vmor %vm401, %vm593
        %vm658 = vmor %vm402, %vm594
        %vm659 = vmor %vm403, %vm595
        %vm660 = vmor %vm404, %vm596
        %vm661 = vmor %vm405, %vm597
        %vm662 = vmor %vm406, %vm598
        %v663 = vsel %vm599, 1, 0
        %v664 = vsel %vm600, 1, 0
        %v665 = vsel %vm601, 1, 0
        %v666 = vsel %vm602, 1, 0
        %v667 = vsel %vm603, 1, 0
        %v668 = vsel %vm604, 1, 0
        %v669 = vsel %vm605, 1, 0
        %v670 = vsel %vm606, 1, 0
        %v671 = vsel %vm607, 1, 0
        %v672 = vsel %vm608, 1, 0
        %v673 = vsel %vm609, 1, 0
        %v674 = vsel %vm610, 1, 0
        %v675 = vsel %vm611, 1, 0
        %v676 = vsel %vm612, 1, 0
        %v677 = vsel %vm613, 1, 0
        %v678 = vsel %vm614, 1, 0
        %v679 = vsel %vm615, 1, 0
        %v680 = vsel %vm616, 1, 0
        %v681 = vsel %vm617, 1, 0
        %v682 = vsel %vm618, 1, 0
        %v683 = vsel %vm619, 1, 0
        %v684 = vsel %vm620, 1, 0
        %v685 = vsel %vm621, 1, 0
        %v686 = vsel %vm622, 1, 0
        %v687 = vsel %vm623, 1, 0
        %v688 = vsel %vm624, 1, 0
        %v689 = vsel %vm625, 1, 0
        %v690 = vsel %vm626, 1, 0
        %v691 = vsel %vm627, 1, 0
        %v692 = vsel %vm628, 1, 0
        %v693 = vsel %vm629, 1, 0
        %v694 = vsel %vm630, 1, 0
        %v695 = vsel %vm631, 1, 0
        %v696 = vsel %vm632, 1, 0
        %v697 = vsel %vm633, 1, 0
        %v698 = vsel %vm634, 1, 0
        %v699 = vsel %vm635, 1, 0
        %v700 = vsel %vm636, 1, 0
        %v701 = vsel %vm637, 1, 0
        %v702 = vsel %vm638, 1, 0
        %v703 = vsel %vm639, 1, 0
        %v704 = vsel %vm640, 1, 0
        %v705 = vsel %vm641, 1, 0
        %v706 = vsel %vm642, 1, 0
        %v707 = vsel %vm643, 1, 0
        %v708 = vsel %vm644, 1, 0
        %v709 = vsel %vm645, 1, 0
        %v710 = vsel %vm646, 1, 0
        %v711 = vsel %vm647, 1, 0
        %v712 = vsel %vm648, 1, 0
        %v713 = vsel %vm649, 1, 0
        %v714 = vsel %vm650, 1, 0
        %v715 = vsel %vm651, 1, 0
        %v716 = vsel %vm652, 1, 0
        %v717 = vsel %vm653, 1, 0
        %v718 = vsel %vm654, 1, 0
        %v719 = vsel %vm655, 1, 0
        %v720 = vsel %vm656, 1, 0
        %v721 = vsel %vm657, 1, 0
        %v722 = vsel %vm658, 1, 0
        %v723 = vsel %vm659, 1, 0
        %v724 = vsel %vm660, 1, 0
        %v725 = vsel %vm661, 1, 0
        %v726 = vsel %vm662, 1, 0
        %v727 = vcvt.s32.f32 %v663
        %v728 = vcvt.s32.f32 %v664
        %v729 = vcvt.s32.f32 %v665
        %v730 = vcvt.s32.f32 %v666
        %v731 = vcvt.s32.f32 %v667
        %v732 = vcvt.s32.f32 %v668
        %v733 = vcvt.s32.f32 %v669
        %v734 = vcvt.s32.f32 %v670
        %v735 = vcvt.s32.f32 %v671
        %v736 = vcvt.s32.f32 %v672
        %v737 = vcvt.s32.f32 %v673
        %v738 = vcvt.s32.f32 %v674
        %v739 = vcvt.s32.f32 %v675
        %v740 = vcvt.s32.f32 %v676
        %v741 = vcvt.s32.f32 %v677
        %v742 = vcvt.s32.f32 %v678
        %v743 = vcvt.s32.f32 %v679
        %v744 = vcvt.s32.f32 %v680
        %v745 = vcvt.s32.f32 %v681
        %v746 = vcvt.s32.f32 %v682
        %v747 = vcvt.s32.f32 %v683
        %v748 = vcvt.s32.f32 %v684
        %v749 = vcvt.s32.f32 %v685
        %v750 = vcvt.s32.f32 %v686
        %v751 = vcvt.s32.f32 %v687
        %v752 = vcvt.s32.f32 %v688
        %v753 = vcvt.s32.f32 %v689
        %v754 = vcvt.s32.f32 %v690
        %v755 = vcvt.s32.f32 %v691
        %v756 = vcvt.s32.f32 %v692
        %v757 = vcvt.s32.f32 %v693
        %v758 = vcvt.s32.f32 %v694
        %v759 = vcvt.s32.f32 %v695
        %v760 = vcvt.s32.f32 %v696
        %v761 = vcvt.s32.f32 %v697
        %v762 = vcvt.s32.f32 %v698
        %v763 = vcvt.s32.f32 %v699
        %v764 = vcvt.s32.f32 %v700
        %v765 = vcvt.s32.f32 %v701
        %v766 = vcvt.s32.f32 %v702
        %v767 = vcvt.s32.f32 %v703
        %v768 = vcvt.s32.f32 %v704
        %v769 = vcvt.s32.f32 %v705
        %v770 = vcvt.s32.f32 %v706
        %v771 = vcvt.s32.f32 %v707
        %v772 = vcvt.s32.f32 %v708
        %v773 = vcvt.s32.f32 %v709
        %v774 = vcvt.s32.f32 %v710
        %v775 = vcvt.s32.f32 %v711
        %v776 = vcvt.s32.f32 %v712
        %v777 = vcvt.s32.f32 %v713
        %v778 = vcvt.s32.f32 %v714
        %v779 = vcvt.s32.f32 %v715
        %v780 = vcvt.s32.f32 %v716
        %v781 = vcvt.s32.f32 %v717
        %v782 = vcvt.s32.f32 %v718
        %v783 = vcvt.s32.f32 %v719
        %v784 = vcvt.s32.f32 %v720
        %v785 = vcvt.s32.f32 %v721
        %v786 = vcvt.s32.f32 %v722
        %v787 = vcvt.s32.f32 %v723
        %v788 = vcvt.s32.f32 %v724
        %v789 = vcvt.s32.f32 %v725
        %v790 = vcvt.s32.f32 %v726
        %v791 = vadd.f32 %v727, %v729
        %v792 = vadd.f32 %v791, %v731
        %v793 = vadd.f32 %v792, %v733
        %v794 = vadd.f32 %v793, %v735
        %v795 = vadd.f32 %v794, %v737
        %v796 = vadd.f32 %v795, %v739
        %v797 = vadd.f32 %v796, %v741
        %v798 = vadd.f32 %v797, %v743
        %v799 = vadd.f32 %v798, %v745
        %v800 = vadd.f32 %v799, %v747
        %v801 = vadd.f32 %v800, %v749
        %v802 = vadd.f32 %v801, %v751
        %v803 = vadd.f32 %v802, %v753
        %v804 = vadd.f32 %v803, %v755
        %v805 = vadd.f32 %v804, %v757
        %v806 = vadd.f32 %v805, %v759
        %v807 = vadd.f32 %v806, %v761
        %v808 = vadd.f32 %v807, %v763
        %v809 = vadd.f32 %v808, %v765
        %v810 = vadd.f32 %v809, %v767
        %v811 = vadd.f32 %v810, %v769
        %v812 = vadd.f32 %v811, %v771
        %v813 = vadd.f32 %v812, %v773
        %v814 = vadd.f32 %v813, %v775
        %v815 = vadd.f32 %v814, %v777
        %v816 = vadd.f32 %v815, %v779
        %v817 = vadd.f32 %v816, %v781
        %v818 = vadd.f32 %v817, %v783
        %v819 = vadd.f32 %v818, %v785
        %v820 = vadd.f32 %v819, %v787
        %v821 = vadd.f32 %v820, %v789
        %v822 = vrot.slane %v821, 4
        %v823 = vadd.f32 %v821, %v822
        %v824 = vrot.slane %v823, 2
        %v825 = vadd.f32 %v823, %v824
        %v826 = vrot.slane %v825, 1
        %v827 = vadd.f32 %v825, %v826
        %v828 = vadd.f32 %v728, %v730
        %v829 = vadd.f32 %v828, %v732
        %v830 = vadd.f32 %v829, %v734
        %v831 = vadd.f32 %v830, %v736
        %v832 = vadd.f32 %v831, %v738
        %v833 = vadd.f32 %v832, %v740
        %v834 = vadd.f32 %v833, %v742
        %v835 = vadd.f32 %v834, %v744
        %v836 = vadd.f32 %v835, %v746
        %v837 = vadd.f32 %v836, %v748
        %v838 = vadd.f32 %v837, %v750
        %v839 = vadd.f32 %v838, %v752
        %v840 = vadd.f32 %v839, %v754
        %v841 = vadd.f32 %v840, %v756
        %v842 = vadd.f32 %v841, %v758
        %v843 = vadd.f32 %v842, %v760
        %v844 = vadd.f32 %v843, %v762
        %v845 = vadd.f32 %v844, %v764
        %v846 = vadd.f32 %v845, %v766
        %v847 = vadd.f32 %v846, %v768
        %v848 = vadd.f32 %v847, %v770
        %v849 = vadd.f32 %v848, %v772
        %v850 = vadd.f32 %v849, %v774
        %v851 = vadd.f32 %v850, %v776
        %v852 = vadd.f32 %v851, %v778
        %v853 = vadd.f32 %v852, %v780
        %v854 = vadd.f32 %v853, %v782
        %v855 = vadd.f32 %v854, %v784
        %v856 = vadd.f32 %v855, %v786
        %v857 = vadd.f32 %v856, %v788
        %v858 = vadd.f32 %v857, %v790
        %v859 = vrot.slane %v858, 4
        %v860 = vadd.f32 %v858, %v859
        %v861 = vrot.slane %v860, 2
        %v862 = vadd.f32 %v860, %v861
        %v863 = vrot.slane %v862, 1
        %v864 = vadd.f32 %v862, %v863
        %vm865 = vcmp.eq.f32.partialorder %v827, %v235
        %vm866 = vcmp.eq.f32.partialorder %v864, %v235
        %vm867 = vcmp.eq.f32.partialorder %v827, %v236
        %vm868 = vcmp.eq.f32.partialorder %v864, %v236
        %vm869 = vcmp.eq.f32.partialorder %v827, %v237
        %vm870 = vcmp.eq.f32.partialorder %v864, %v237
        %vm871 = vcmp.eq.f32.partialorder %v827, %v238
        %vm872 = vcmp.eq.f32.partialorder %v864, %v238
        %vm873 = vcmp.eq.f32.partialorder %v827, %v239
        %vm874 = vcmp.eq.f32.partialorder %v864, %v239
        %vm875 = vcmp.eq.f32.partialorder %v827, %v240
        %vm876 = vcmp.eq.f32.partialorder %v864, %v240
        %vm877 = vcmp.eq.f32.partialorder %v827, %v241
        %vm878 = vcmp.eq.f32.partialorder %v864, %v241
        %vm879 = vcmp.eq.f32.partialorder %v827, %v242
        %vm880 = vcmp.eq.f32.partialorder %v864, %v242
        %vm881 = vcmp.eq.f32.partialorder %v827, %v243
        %vm882 = vcmp.eq.f32.partialorder %v864, %v243
        %vm883 = vcmp.eq.f32.partialorder %v827, %v244
        %vm884 = vcmp.eq.f32.partialorder %v864, %v244
        %vm885 = vcmp.eq.f32.partialorder %v827, %v245
        %vm886 = vcmp.eq.f32.partialorder %v864, %v245
        %vm887 = vcmp.eq.f32.partialorder %v827, %v246
        %vm888 = vcmp.eq.f32.partialorder %v864, %v246
        %vm889 = vcmp.eq.f32.partialorder %v827, %v247
        %vm890 = vcmp.eq.f32.partialorder %v864, %v247
        %vm891 = vcmp.eq.f32.partialorder %v827, %v248
        %vm892 = vcmp.eq.f32.partialorder %v864, %v248
        %vm893 = vcmp.eq.f32.partialorder %v827, %v249
        %vm894 = vcmp.eq.f32.partialorder %v864, %v249
        %vm895 = vcmp.eq.f32.partialorder %v827, %v250
        %vm896 = vcmp.eq.f32.partialorder %v864, %v250
        %vm897 = vcmp.eq.f32.partialorder %v827, %v251
        %vm898 = vcmp.eq.f32.partialorder %v864, %v251
        %vm899 = vcmp.eq.f32.partialorder %v827, %v252
        %vm900 = vcmp.eq.f32.partialorder %v864, %v252
        %vm901 = vcmp.eq.f32.partialorder %v827, %v253
        %vm902 = vcmp.eq.f32.partialorder %v864, %v253
        %vm903 = vcmp.eq.f32.partialorder %v827, %v254
        %vm904 = vcmp.eq.f32.partialorder %v864, %v254
        %vm905 = vcmp.eq.f32.partialorder %v827, %v255
        %vm906 = vcmp.eq.f32.partialorder %v864, %v255
        %vm907 = vcmp.eq.f32.partialorder %v827, %v256
        %vm908 = vcmp.eq.f32.partialorder %v864, %v256
        %vm909 = vcmp.eq.f32.partialorder %v827, %v257
        %vm910 = vcmp.eq.f32.partialorder %v864, %v257
        %vm911 = vcmp.eq.f32.partialorder %v827, %v258
        %vm912 = vcmp.eq.f32.partialorder %v864, %v258
        %vm913 = vcmp.eq.f32.partialorder %v827, %v259
        %vm914 = vcmp.eq.f32.partialorder %v864, %v259
        %vm915 = vcmp.eq.f32.partialorder %v827, %v260
        %vm916 = vcmp.eq.f32.partialorder %v864, %v260
        %vm917 = vcmp.eq.f32.partialorder %v827, %v261
        %vm918 = vcmp.eq.f32.partialorder %v864, %v261
        %vm919 = vcmp.eq.f32.partialorder %v827, %v262
        %vm920 = vcmp.eq.f32.partialorder %v864, %v262
        %vm921 = vcmp.eq.f32.partialorder %v827, %v263
        %vm922 = vcmp.eq.f32.partialorder %v864, %v263
        %vm923 = vcmp.eq.f32.partialorder %v827, %v264
        %vm924 = vcmp.eq.f32.partialorder %v864, %v264
        %vm925 = vcmp.eq.f32.partialorder %v827, %v265
        %vm926 = vcmp.eq.f32.partialorder %v864, %v265
        %vm927 = vcmp.eq.f32.partialorder %v827, %v266
        %vm928 = vcmp.eq.f32.partialorder %v864, %v266
        %vm929 = vcmp.le.f32.partialorder %v827, %v235
        %vm930 = vcmp.le.f32.partialorder %v864, %v235
        %vm931 = vcmp.le.f32.partialorder %v827, %v236
        %vm932 = vcmp.le.f32.partialorder %v864, %v236
        %vm933 = vcmp.le.f32.partialorder %v827, %v237
        %vm934 = vcmp.le.f32.partialorder %v864, %v237
        %vm935 = vcmp.le.f32.partialorder %v827, %v238
        %vm936 = vcmp.le.f32.partialorder %v864, %v238
        %vm937 = vcmp.le.f32.partialorder %v827, %v239
        %vm938 = vcmp.le.f32.partialorder %v864, %v239
        %vm939 = vcmp.le.f32.partialorder %v827, %v240
        %vm940 = vcmp.le.f32.partialorder %v864, %v240
        %vm941 = vcmp.le.f32.partialorder %v827, %v241
        %vm942 = vcmp.le.f32.partialorder %v864, %v241
        %vm943 = vcmp.le.f32.partialorder %v827, %v242
        %vm944 = vcmp.le.f32.partialorder %v864, %v242
        %vm945 = vcmp.le.f32.partialorder %v827, %v243
        %vm946 = vcmp.le.f32.partialorder %v864, %v243
        %vm947 = vcmp.le.f32.partialorder %v827, %v244
        %vm948 = vcmp.le.f32.partialorder %v864, %v244
        %vm949 = vcmp.le.f32.partialorder %v827, %v245
        %vm950 = vcmp.le.f32.partialorder %v864, %v245
        %vm951 = vcmp.le.f32.partialorder %v827, %v246
        %vm952 = vcmp.le.f32.partialorder %v864, %v246
        %vm953 = vcmp.le.f32.partialorder %v827, %v247
        %vm954 = vcmp.le.f32.partialorder %v864, %v247
        %vm955 = vcmp.le.f32.partialorder %v827, %v248
        %vm956 = vcmp.le.f32.partialorder %v864, %v248
        %vm957 = vcmp.le.f32.partialorder %v827, %v249
        %vm958 = vcmp.le.f32.partialorder %v864, %v249
        %vm959 = vcmp.le.f32.partialorder %v827, %v250
        %vm960 = vcmp.le.f32.partialorder %v864, %v250
        %vm961 = vcmp.le.f32.partialorder %v827, %v251
        %vm962 = vcmp.le.f32.partialorder %v864, %v251
        %vm963 = vcmp.le.f32.partialorder %v827, %v252
        %vm964 = vcmp.le.f32.partialorder %v864, %v252
        %vm965 = vcmp.le.f32.partialorder %v827, %v253
        %vm966 = vcmp.le.f32.partialorder %v864, %v253
        %vm967 = vcmp.le.f32.partialorder %v827, %v254
        %vm968 = vcmp.le.f32.partialorder %v864, %v254
        %vm969 = vcmp.le.f32.partialorder %v827, %v255
        %vm970 = vcmp.le.f32.partialorder %v864, %v255
        %vm971 = vcmp.le.f32.partialorder %v827, %v256
        %vm972 = vcmp.le.f32.partialorder %v864, %v256
        %vm973 = vcmp.le.f32.partialorder %v827, %v257
        %vm974 = vcmp.le.f32.partialorder %v864, %v257
        %vm975 = vcmp.le.f32.partialorder %v827, %v258
        %vm976 = vcmp.le.f32.partialorder %v864, %v258
        %vm977 = vcmp.le.f32.partialorder %v827, %v259
        %vm978 = vcmp.le.f32.partialorder %v864, %v259
        %vm979 = vcmp.le.f32.partialorder %v827, %v260
        %vm980 = vcmp.le.f32.partialorder %v864, %v260
        %vm981 = vcmp.le.f32.partialorder %v827, %v261
        %vm982 = vcmp.le.f32.partialorder %v864, %v261
        %vm983 = vcmp.le.f32.partialorder %v827, %v262
        %vm984 = vcmp.le.f32.partialorder %v864, %v262
        %vm985 = vcmp.le.f32.partialorder %v827, %v263
        %vm986 = vcmp.le.f32.partialorder %v864, %v263
        %vm987 = vcmp.le.f32.partialorder %v827, %v264
        %vm988 = vcmp.le.f32.partialorder %v864, %v264
        %vm989 = vcmp.le.f32.partialorder %v827, %v265
        %vm990 = vcmp.le.f32.partialorder %v864, %v265
        %vm991 = vcmp.le.f32.partialorder %v827, %v266
        %vm992 = vcmp.le.f32.partialorder %v864, %v266
        %v993 = vsel %vm865, %v270, 0.0
        %v994 = vsel %vm866, %v271, 0.0
        %v995 = vsel %vm867, %v270, 0.0
        %v996 = vsel %vm868, %v271, 0.0
        %v997 = vsel %vm869, %v270, 0.0
        %v998 = vsel %vm870, %v271, 0.0
        %v999 = vsel %vm871, %v270, 0.0
        %v1000 = vsel %vm872, %v271, 0.0
        %v1001 = vsel %vm873, %v270, 0.0
        %v1002 = vsel %vm874, %v271, 0.0
        %v1003 = vsel %vm875, %v270, 0.0
        %v1004 = vsel %vm876, %v271, 0.0
        %v1005 = vsel %vm877, %v270, 0.0
        %v1006 = vsel %vm878, %v271, 0.0
        %v1007 = vsel %vm879, %v270, 0.0
        %v1008 = vsel %vm880, %v271, 0.0
        %v1009 = vsel %vm881, %v270, 0.0
        %v1010 = vsel %vm882, %v271, 0.0
        %v1011 = vsel %vm883, %v270, 0.0
        %v1012 = vsel %vm884, %v271, 0.0
        %v1013 = vsel %vm885, %v270, 0.0
        %v1014 = vsel %vm886, %v271, 0.0
        %v1015 = vsel %vm887, %v270, 0.0
        %v1016 = vsel %vm888, %v271, 0.0
        %v1017 = vsel %vm889, %v270, 0.0
        %v1018 = vsel %vm890, %v271, 0.0
        %v1019 = vsel %vm891, %v270, 0.0
        %v1020 = vsel %vm892, %v271, 0.0
        %v1021 = vsel %vm893, %v270, 0.0
        %v1022 = vsel %vm894, %v271, 0.0
        %v1023 = vsel %vm895, %v270, 0.0
        %v1024 = vsel %vm896, %v271, 0.0
        %v1025 = vsel %vm897, %v270, 0.0
        %v1026 = vsel %vm898, %v271, 0.0
        %v1027 = vsel %vm899, %v270, 0.0
        %v1028 = vsel %vm900, %v271, 0.0
        %v1029 = vsel %vm901, %v270, 0.0
        %v1030 = vsel %vm902, %v271, 0.0
        %v1031 = vsel %vm903, %v270, 0.0
        %v1032 = vsel %vm904, %v271, 0.0
        %v1033 = vsel %vm905, %v270, 0.0
        %v1034 = vsel %vm906, %v271, 0.0
        %v1035 = vsel %vm907, %v270, 0.0
        %v1036 = vsel %vm908, %v271, 0.0
        %v1037 = vsel %vm909, %v270, 0.0
        %v1038 = vsel %vm910, %v271, 0.0
        %v1039 = vsel %vm911, %v270, 0.0
        %v1040 = vsel %vm912, %v271, 0.0
        %v1041 = vsel %vm913, %v270, 0.0
        %v1042 = vsel %vm914, %v271, 0.0
        %v1043 = vsel %vm915, %v270, 0.0
        %v1044 = vsel %vm916, %v271, 0.0
        %v1045 = vsel %vm917, %v270, 0.0
        %v1046 = vsel %vm918, %v271, 0.0
        %v1047 = vsel %vm919, %v270, 0.0
        %v1048 = vsel %vm920, %v271, 0.0
        %v1049 = vsel %vm921, %v270, 0.0
        %v1050 = vsel %vm922, %v271, 0.0
        %v1051 = vsel %vm923, %v270, 0.0
        %v1052 = vsel %vm924, %v271, 0.0
        %v1053 = vsel %vm925, %v270, 0.0
        %v1054 = vsel %vm926, %v271, 0.0
        %v1055 = vsel %vm927, %v270, 0.0
        %v1056 = vsel %vm928, %v271, 0.0
        %v1057 = vadd.f32 %v993, %v994
        %1058 = vadd.xlane.f32.xlu0 %v1057
        %v1059 = vpop.xlane.xlu0 %1058
        %v1060 = vadd.f32 %v995, %v996
        %1061 = vadd.xlane.f32.xlu0 %v1060
        %v1062 = vpop.xlane.xlu0 %1061
        %v1063 = vadd.f32 %v997, %v998
        %1064 = vadd.xlane.f32.xlu0 %v1063
        %v1065 = vpop.xlane.xlu0 %1064
        %v1066 = vadd.f32 %v999, %v1000
        %1067 = vadd.xlane.f32.xlu0 %v1066
        %v1068 = vpop.xlane.xlu0 %1067
        %v1069 = vadd.f32 %v1001, %v1002
        %1070 = vadd.xlane.f32.xlu0 %v1069
        %v1071 = vpop.xlane.xlu0 %1070
        %v1072 = vadd.f32 %v1003, %v1004
        %1073 = vadd.xlane.f32.xlu0 %v1072
        %v1074 = vpop.xlane.xlu0 %1073
        %v1075 = vadd.f32 %v1005, %v1006
        %1076 = vadd.xlane.f32.xlu0 %v1075
        %v1077 = vpop.xlane.xlu0 %1076
        %v1078 = vadd.f32 %v1007, %v1008
        %1079 = vadd.xlane.f32.xlu0 %v1078
        %v1080 = vpop.xlane.xlu0 %1079
        %v1081 = vadd.f32 %v1009, %v1010
        %1082 = vadd.xlane.f32.xlu0 %v1081
        %v1083 = vpop.xlane.xlu0 %1082
        %v1084 = vadd.f32 %v1011, %v1012
        %1085 = vadd.xlane.f32.xlu0 %v1084
        %v1086 = vpop.xlane.xlu0 %1085
        %v1087 = vadd.f32 %v1013, %v1014
        %1088 = vadd.xlane.f32.xlu0 %v1087
        %v1089 = vpop.xlane.xlu0 %1088
        %v1090 = vadd.f32 %v1015, %v1016
        %1091 = vadd.xlane.f32.xlu0 %v1090
        %v1092 = vpop.xlane.xlu0 %1091
        %v1093 = vadd.f32 %v1017, %v1018
        %1094 = vadd.xlane.f32.xlu0 %v1093
        %v1095 = vpop.xlane.xlu0 %1094
        %v1096 = vadd.f32 %v1019, %v1020
        %1097 = vadd.xlane.f32.xlu0 %v1096
        %v1098 = vpop.xlane.xlu0 %1097
        %v1099 = vadd.f32 %v1021, %v1022
        %1100 = vadd.xlane.f32.xlu0 %v1099
        %v1101 = vpop.xlane.xlu0 %1100
        %v1102 = vadd.f32 %v1023, %v1024
        %1103 = vadd.xlane.f32.xlu0 %v1102
        %v1104 = vpop.xlane.xlu0 %1103
        %v1105 = vadd.f32 %v1025, %v1026
        %1106 = vadd.xlane.f32.xlu0 %v1105
        %v1107 = vpop.xlane.xlu0 %1106
        %v1108 = vadd.f32 %v1027, %v1028
        %1109 = vadd.xlane.f32.xlu0 %v1108
        %v1110 = vpop.xlane.xlu0 %1109
        %v1111 = vadd.f32 %v1029, %v1030
        %1112 = vadd.xlane.f32.xlu0 %v1111
        %v1113 = vpop.xlane.xlu0 %1112
        %v1114 = vadd.f32 %v1031, %v1032
        %1115 = vadd.xlane.f32.xlu0 %v1114
        %v1116 = vpop.xlane.xlu0 %1115
        %v1117 = vadd.f32 %v1033, %v1034
        %1118 = vadd.xlane.f32.xlu0 %v1117
        %v1119 = vpop.xlane.xlu0 %1118
        %v1120 = vadd.f32 %v1035, %v1036
        %1121 = vadd.xlane.f32.xlu0 %v1120
        %v1122 = vpop.xlane.xlu0 %1121
        %v1123 = vadd.f32 %v1037, %v1038
        %1124 = vadd.xlane.f32.xlu0 %v1123
        %v1125 = vpop.xlane.xlu0 %1124
        %v1126 = vadd.f32 %v1039, %v1040
        %1127 = vadd.xlane.f32.xlu0 %v1126
        %v1128 = vpop.xlane.xlu0 %1127
        %v1129 = vadd.f32 %v1041, %v1042
        %1130 = vadd.xlane.f32.xlu0 %v1129
        %v1131 = vpop.xlane.xlu0 %1130
        %v1132 = vadd.f32 %v1043, %v1044
        %1133 = vadd.xlane.f32.xlu0 %v1132
        %v1134 = vpop.xlane.xlu0 %1133
        %v1135 = vadd.f32 %v1045, %v1046
        %1136 = vadd.xlane.f32.xlu0 %v1135
        %v1137 = vpop.xlane.xlu0 %1136
        %v1138 = vadd.f32 %v1047, %v1048
        %1139 = vadd.xlane.f32.xlu0 %v1138
        %v1140 = vpop.xlane.xlu0 %1139
        %v1141 = vadd.f32 %v1049, %v1050
        %1142 = vadd.xlane.f32.xlu0 %v1141
        %v1143 = vpop.xlane.xlu0 %1142
        %v1144 = vadd.f32 %v1051, %v1052
        %1145 = vadd.xlane.f32.xlu0 %v1144
        %v1146 = vpop.xlane.xlu0 %1145
        %v1147 = vadd.f32 %v1053, %v1054
        %1148 = vadd.xlane.f32.xlu0 %v1147
        %v1149 = vpop.xlane.xlu0 %1148
        %v1150 = vadd.f32 %v1055, %v1056
        %1151 = vadd.xlane.f32.xlu0 %v1150
        %v1152 = vpop.xlane.xlu0 %1151
        %v1153 = vsel %vm865, %v339, 0.0
        %v1154 = vsel %vm866, %v340, 0.0
        %v1155 = vsel %vm867, %v339, 0.0
        %v1156 = vsel %vm868, %v340, 0.0
        %v1157 = vsel %vm869, %v339, 0.0
        %v1158 = vsel %vm870, %v340, 0.0
        %v1159 = vsel %vm871, %v339, 0.0
        %v1160 = vsel %vm872, %v340, 0.0
        %v1161 = vsel %vm873, %v339, 0.0
        %v1162 = vsel %vm874, %v340, 0.0
        %v1163 = vsel %vm875, %v339, 0.0
        %v1164 = vsel %vm876, %v340, 0.0
        %v1165 = vsel %vm877, %v339, 0.0
        %v1166 = vsel %vm878, %v340, 0.0
        %v1167 = vsel %vm879, %v339, 0.0
        %v1168 = vsel %vm880, %v340, 0.0
        %v1169 = vsel %vm881, %v339, 0.0
        %v1170 = vsel %vm882, %v340, 0.0
        %v1171 = vsel %vm883, %v339, 0.0
        %v1172 = vsel %vm884, %v340, 0.0
        %v1173 = vsel %vm885, %v339, 0.0
        %v1174 = vsel %vm886, %v340, 0.0
        %v1175 = vsel %vm887, %v339, 0.0
        %v1176 = vsel %vm888, %v340, 0.0
        %v1177 = vsel %vm889, %v339, 0.0
        %v1178 = vsel %vm890, %v340, 0.0
        %v1179 = vsel %vm891, %v339, 0.0
        %v1180 = vsel %vm892, %v340, 0.0
        %v1181 = vsel %vm893, %v339, 0.0
        %v1182 = vsel %vm894, %v340, 0.0
        %v1183 = vsel %vm895, %v339, 0.0
        %v1184 = vsel %vm896, %v340, 0.0
        %v1185 = vsel %vm897, %v339, 0.0
        %v1186 = vsel %vm898, %v340, 0.0
        %v1187 = vsel %vm899, %v339, 0.0
        %v1188 = vsel %vm900, %v340, 0.0
        %v1189 = vsel %vm901, %v339, 0.0
        %v1190 = vsel %vm902, %v340, 0.0
        %v1191 = vsel %vm903, %v339, 0.0
        %v1192 = vsel %vm904, %v340, 0.0
        %v1193 = vsel %vm905, %v339, 0.0
        %v1194 = vsel %vm906, %v340, 0.0
        %v1195 = vsel %vm907, %v339, 0.0
        %v1196 = vsel %vm908, %v340, 0.0
        %v1197 = vsel %vm909, %v339, 0.0
        %v1198 = vsel %vm910, %v340, 0.0
        %v1199 = vsel %vm911, %v339, 0.0
        %v1200 = vsel %vm912, %v340, 0.0
        %v1201 = vsel %vm913, %v339, 0.0
        %v1202 = vsel %vm914, %v340, 0.0
        %v1203 = vsel %vm915, %v339, 0.0
        %v1204 = vsel %vm916, %v340, 0.0
        %v1205 = vsel %vm917, %v339, 0.0
        %v1206 = vsel %vm918, %v340, 0.0
        %v1207 = vsel %vm919, %v339, 0.0
        %v1208 = vsel %vm920, %v340, 0.0
        %v1209 = vsel %vm921, %v339, 0.0
        %v1210 = vsel %vm922, %v340, 0.0
        %v1211 = vsel %vm923, %v339, 0.0
        %v1212 = vsel %vm924, %v340, 0.0
        %v1213 = vsel %vm925, %v339, 0.0
        %v1214 = vsel %vm926, %v340, 0.0
        %v1215 = vsel %vm927, %v339, 0.0
        %v1216 = vsel %vm928, %v340, 0.0
        %v1217 = vadd.f32 %v1153, %v1154
        %1218 = vadd.xlane.f32.xlu0 %v1217
        %v1219 = vpop.xlane.xlu0 %1218
        %v1220 = vadd.f32 %v1155, %v1156
        %1221 = vadd.xlane.f32.xlu0 %v1220
        %v1222 = vpop.xlane.xlu0 %1221
        %v1223 = vadd.f32 %v1157, %v1158
        %1224 = vadd.xlane.f32.xlu0 %v1223
        %v1225 = vpop.xlane.xlu0 %1224
        %v1226 = vadd.f32 %v1159, %v1160
        %1227 = vadd.xlane.f32.xlu0 %v1226
        %v1228 = vpop.xlane.xlu0 %1227
        %v1229 = vadd.f32 %v1161, %v1162
        %1230 = vadd.xlane.f32.xlu0 %v1229
        %v1231 = vpop.xlane.xlu0 %1230
        %v1232 = vadd.f32 %v1163, %v1164
        %1233 = vadd.xlane.f32.xlu0 %v1232
        %v1234 = vpop.xlane.xlu0 %1233
        %v1235 = vadd.f32 %v1165, %v1166
        %1236 = vadd.xlane.f32.xlu0 %v1235
        %v1237 = vpop.xlane.xlu0 %1236
        %v1238 = vadd.f32 %v1167, %v1168
        %1239 = vadd.xlane.f32.xlu0 %v1238
        %v1240 = vpop.xlane.xlu0 %1239
        %v1241 = vadd.f32 %v1169, %v1170
        %1242 = vadd.xlane.f32.xlu0 %v1241
        %v1243 = vpop.xlane.xlu0 %1242
        %v1244 = vadd.f32 %v1171, %v1172
        %1245 = vadd.xlane.f32.xlu0 %v1244
        %v1246 = vpop.xlane.xlu0 %1245
        %v1247 = vadd.f32 %v1173, %v1174
        %1248 = vadd.xlane.f32.xlu0 %v1247
        %v1249 = vpop.xlane.xlu0 %1248
        %v1250 = vadd.f32 %v1175, %v1176
        %1251 = vadd.xlane.f32.xlu0 %v1250
        %v1252 = vpop.xlane.xlu0 %1251
        %v1253 = vadd.f32 %v1177, %v1178
        %1254 = vadd.xlane.f32.xlu0 %v1253
        %v1255 = vpop.xlane.xlu0 %1254
        %v1256 = vadd.f32 %v1179, %v1180
        %1257 = vadd.xlane.f32.xlu0 %v1256
        %v1258 = vpop.xlane.xlu0 %1257
        %v1259 = vadd.f32 %v1181, %v1182
        %1260 = vadd.xlane.f32.xlu0 %v1259
        %v1261 = vpop.xlane.xlu0 %1260
        %v1262 = vadd.f32 %v1183, %v1184
        %1263 = vadd.xlane.f32.xlu0 %v1262
        %v1264 = vpop.xlane.xlu0 %1263
        %v1265 = vadd.f32 %v1185, %v1186
        %1266 = vadd.xlane.f32.xlu0 %v1265
        %v1267 = vpop.xlane.xlu0 %1266
        %v1268 = vadd.f32 %v1187, %v1188
        %1269 = vadd.xlane.f32.xlu0 %v1268
        %v1270 = vpop.xlane.xlu0 %1269
        %v1271 = vadd.f32 %v1189, %v1190
        %1272 = vadd.xlane.f32.xlu0 %v1271
        %v1273 = vpop.xlane.xlu0 %1272
        %v1274 = vadd.f32 %v1191, %v1192
        %1275 = vadd.xlane.f32.xlu0 %v1274
        %v1276 = vpop.xlane.xlu0 %1275
        %v1277 = vadd.f32 %v1193, %v1194
        %1278 = vadd.xlane.f32.xlu0 %v1277
        %v1279 = vpop.xlane.xlu0 %1278
        %v1280 = vadd.f32 %v1195, %v1196
        %1281 = vadd.xlane.f32.xlu0 %v1280
        %v1282 = vpop.xlane.xlu0 %1281
        %v1283 = vadd.f32 %v1197, %v1198
        %1284 = vadd.xlane.f32.xlu0 %v1283
        %v1285 = vpop.xlane.xlu0 %1284
        %v1286 = vadd.f32 %v1199, %v1200
        %1287 = vadd.xlane.f32.xlu0 %v1286
        %v1288 = vpop.xlane.xlu0 %1287
        %v1289 = vadd.f32 %v1201, %v1202
        %1290 = vadd.xlane.f32.xlu0 %v1289
        %v1291 = vpop.xlane.xlu0 %1290
        %v1292 = vadd.f32 %v1203, %v1204
        %1293 = vadd.xlane.f32.xlu0 %v1292
        %v1294 = vpop.xlane.xlu0 %1293
        %v1295 = vadd.f32 %v1205, %v1206
        %1296 = vadd.xlane.f32.xlu0 %v1295
        %v1297 = vpop.xlane.xlu0 %1296
        %v1298 = vadd.f32 %v1207, %v1208
        %1299 = vadd.xlane.f32.xlu0 %v1298
        %v1300 = vpop.xlane.xlu0 %1299
        %v1301 = vadd.f32 %v1209, %v1210
        %1302 = vadd.xlane.f32.xlu0 %v1301
        %v1303 = vpop.xlane.xlu0 %1302
        %v1304 = vadd.f32 %v1211, %v1212
        %1305 = vadd.xlane.f32.xlu0 %v1304
        %v1306 = vpop.xlane.xlu0 %1305
        %v1307 = vadd.f32 %v1213, %v1214
        %1308 = vadd.xlane.f32.xlu0 %v1307
        %v1309 = vpop.xlane.xlu0 %1308
        %v1310 = vadd.f32 %v1215, %v1216
        %1311 = vadd.xlane.f32.xlu0 %v1310
        %v1312 = vpop.xlane.xlu0 %1311
        %v1313 = vsel %vm929, %v339, 0.0
        %v1314 = vsel %vm930, %v340, 0.0
        %v1315 = vsel %vm931, %v339, 0.0
        %v1316 = vsel %vm932, %v340, 0.0
        %v1317 = vsel %vm933, %v339, 0.0
        %v1318 = vsel %vm934, %v340, 0.0
        %v1319 = vsel %vm935, %v339, 0.0
        %v1320 = vsel %vm936, %v340, 0.0
        %v1321 = vsel %vm937, %v339, 0.0
        %v1322 = vsel %vm938, %v340, 0.0
        %v1323 = vsel %vm939, %v339, 0.0
        %v1324 = vsel %vm940, %v340, 0.0
        %v1325 = vsel %vm941, %v339, 0.0
        %v1326 = vsel %vm942, %v340, 0.0
        %v1327 = vsel %vm943, %v339, 0.0
        %v1328 = vsel %vm944, %v340, 0.0
        %v1329 = vsel %vm945, %v339, 0.0
        %v1330 = vsel %vm946, %v340, 0.0
        %v1331 = vsel %vm947, %v339, 0.0
        %v1332 = vsel %vm948, %v340, 0.0
        %v1333 = vsel %vm949, %v339, 0.0
        %v1334 = vsel %vm950, %v340, 0.0
        %v1335 = vsel %vm951, %v339, 0.0
        %v1336 = vsel %vm952, %v340, 0.0
        %v1337 = vsel %vm953, %v339, 0.0
        %v1338 = vsel %vm954, %v340, 0.0
        %v1339 = vsel %vm955, %v339, 0.0
        %v1340 = vsel %vm956, %v340, 0.0
        %v1341 = vsel %vm957, %v339, 0.0
        %v1342 = vsel %vm958, %v340, 0.0
        %v1343 = vsel %vm959, %v339, 0.0
        %v1344 = vsel %vm960, %v340, 0.0
        %v1345 = vsel %vm961, %v339, 0.0
        %v1346 = vsel %vm962, %v340, 0.0
        %v1347 = vsel %vm963, %v339, 0.0
        %v1348 = vsel %vm964, %v340, 0.0
        %v1349 = vsel %vm965, %v339, 0.0
        %v1350 = vsel %vm966, %v340, 0.0
        %v1351 = vsel %vm967, %v339, 0.0
        %v1352 = vsel %vm968, %v340, 0.0
        %v1353 = vsel %vm969, %v339, 0.0
        %v1354 = vsel %vm970, %v340, 0.0
        %v1355 = vsel %vm971, %v339, 0.0
        %v1356 = vsel %vm972, %v340, 0.0
        %v1357 = vsel %vm973, %v339, 0.0
        %v1358 = vsel %vm974, %v340, 0.0
        %v1359 = vsel %vm975, %v339, 0.0
        %v1360 = vsel %vm976, %v340, 0.0
        %v1361 = vsel %vm977, %v339, 0.0
        %v1362 = vsel %vm978, %v340, 0.0
        %v1363 = vsel %vm979, %v339, 0.0
        %v1364 = vsel %vm980, %v340, 0.0
        %v1365 = vsel %vm981, %v339, 0.0
        %v1366 = vsel %vm982, %v340, 0.0
        %v1367 = vsel %vm983, %v339, 0.0
        %v1368 = vsel %vm984, %v340, 0.0
        %v1369 = vsel %vm985, %v339, 0.0
        %v1370 = vsel %vm986, %v340, 0.0
        %v1371 = vsel %vm987, %v339, 0.0
        %v1372 = vsel %vm988, %v340, 0.0
        %v1373 = vsel %vm989, %v339, 0.0
        %v1374 = vsel %vm990, %v340, 0.0
        %v1375 = vsel %vm991, %v339, 0.0
        %v1376 = vsel %vm992, %v340, 0.0
        %v1377 = vadd.f32 %v1313, %v1314
        %1378 = vadd.xlane.f32.xlu0 %v1377
        %v1379 = vpop.xlane.xlu0 %1378
        %v1380 = vadd.f32 %v1315, %v1316
        %1381 = vadd.xlane.f32.xlu0 %v1380
        %v1382 = vpop.xlane.xlu0 %1381
        %v1383 = vadd.f32 %v1317, %v1318
        %1384 = vadd.xlane.f32.xlu0 %v1383
        %v1385 = vpop.xlane.xlu0 %1384
        %v1386 = vadd.f32 %v1319, %v1320
        %1387 = vadd.xlane.f32.xlu0 %v1386
        %v1388 = vpop.xlane.xlu0 %1387
        %v1389 = vadd.f32 %v1321, %v1322
        %1390 = vadd.xlane.f32.xlu0 %v1389
        %v1391 = vpop.xlane.xlu0 %1390
        %v1392 = vadd.f32 %v1323, %v1324
        %1393 = vadd.xlane.f32.xlu0 %v1392
        %v1394 = vpop.xlane.xlu0 %1393
        %v1395 = vadd.f32 %v1325, %v1326
        %1396 = vadd.xlane.f32.xlu0 %v1395
        %v1397 = vpop.xlane.xlu0 %1396
        %v1398 = vadd.f32 %v1327, %v1328
        %1399 = vadd.xlane.f32.xlu0 %v1398
        %v1400 = vpop.xlane.xlu0 %1399
        %v1401 = vadd.f32 %v1329, %v1330
        %1402 = vadd.xlane.f32.xlu0 %v1401
        %v1403 = vpop.xlane.xlu0 %1402
        %v1404 = vadd.f32 %v1331, %v1332
        %1405 = vadd.xlane.f32.xlu0 %v1404
        %v1406 = vpop.xlane.xlu0 %1405
        %v1407 = vadd.f32 %v1333, %v1334
        %1408 = vadd.xlane.f32.xlu0 %v1407
        %v1409 = vpop.xlane.xlu0 %1408
        %v1410 = vadd.f32 %v1335, %v1336
        %1411 = vadd.xlane.f32.xlu0 %v1410
        %v1412 = vpop.xlane.xlu0 %1411
        %v1413 = vadd.f32 %v1337, %v1338
        %1414 = vadd.xlane.f32.xlu0 %v1413
        %v1415 = vpop.xlane.xlu0 %1414
        %v1416 = vadd.f32 %v1339, %v1340
        %1417 = vadd.xlane.f32.xlu0 %v1416
        %v1418 = vpop.xlane.xlu0 %1417
        %v1419 = vadd.f32 %v1341, %v1342
        %1420 = vadd.xlane.f32.xlu0 %v1419
        %v1421 = vpop.xlane.xlu0 %1420
        %v1422 = vadd.f32 %v1343, %v1344
        %1423 = vadd.xlane.f32.xlu0 %v1422
        %v1424 = vpop.xlane.xlu0 %1423
        %v1425 = vadd.f32 %v1345, %v1346
        %1426 = vadd.xlane.f32.xlu0 %v1425
        %v1427 = vpop.xlane.xlu0 %1426
        %v1428 = vadd.f32 %v1347, %v1348
        %1429 = vadd.xlane.f32.xlu0 %v1428
        %v1430 = vpop.xlane.xlu0 %1429
        %v1431 = vadd.f32 %v1349, %v1350
        %1432 = vadd.xlane.f32.xlu0 %v1431
        %v1433 = vpop.xlane.xlu0 %1432
        %v1434 = vadd.f32 %v1351, %v1352
        %1435 = vadd.xlane.f32.xlu0 %v1434
        %v1436 = vpop.xlane.xlu0 %1435
        %v1437 = vadd.f32 %v1353, %v1354
        %1438 = vadd.xlane.f32.xlu0 %v1437
        %v1439 = vpop.xlane.xlu0 %1438
        %v1440 = vadd.f32 %v1355, %v1356
        %1441 = vadd.xlane.f32.xlu0 %v1440
        %v1442 = vpop.xlane.xlu0 %1441
        %v1443 = vadd.f32 %v1357, %v1358
        %1444 = vadd.xlane.f32.xlu0 %v1443
        %v1445 = vpop.xlane.xlu0 %1444
        %v1446 = vadd.f32 %v1359, %v1360
        %1447 = vadd.xlane.f32.xlu0 %v1446
        %v1448 = vpop.xlane.xlu0 %1447
        %v1449 = vadd.f32 %v1361, %v1362
        %1450 = vadd.xlane.f32.xlu0 %v1449
        %v1451 = vpop.xlane.xlu0 %1450
        %v1452 = vadd.f32 %v1363, %v1364
        %1453 = vadd.xlane.f32.xlu0 %v1452
        %v1454 = vpop.xlane.xlu0 %1453
        %v1455 = vadd.f32 %v1365, %v1366
        %1456 = vadd.xlane.f32.xlu0 %v1455
        %v1457 = vpop.xlane.xlu0 %1456
        %v1458 = vadd.f32 %v1367, %v1368
        %1459 = vadd.xlane.f32.xlu0 %v1458
        %v1460 = vpop.xlane.xlu0 %1459
        %v1461 = vadd.f32 %v1369, %v1370
        %1462 = vadd.xlane.f32.xlu0 %v1461
        %v1463 = vpop.xlane.xlu0 %1462
        %v1464 = vadd.f32 %v1371, %v1372
        %1465 = vadd.xlane.f32.xlu0 %v1464
        %v1466 = vpop.xlane.xlu0 %1465
        %v1467 = vadd.f32 %v1373, %v1374
        %1468 = vadd.xlane.f32.xlu0 %v1467
        %v1469 = vpop.xlane.xlu0 %1468
        %v1470 = vadd.f32 %v1375, %v1376
        %1471 = vadd.xlane.f32.xlu0 %v1470
        %v1472 = vpop.xlane.xlu0 %1471
        %vm1473 = vcmask 1040384
        %v1474 = vsel %vm1473, %v339, 0.0
        %v1475 = vsel %vm1473, %v340, 0.0
        %v1476 = vadd.f32 %v1474, %v1475
        %1477 = vadd.xlane.f32.xlu0 %v1476
        %v1478 = vpop.xlane.xlu0 %1477
        %v1479 = vrot.slane %v1478, 4
        %v1480 = vadd.f32 %v1478, %v1479
        %v1481 = vrot.slane %v1480, 2
        %v1482 = vadd.f32 %v1480, %v1481
        %v1483 = vrot.slane %v1482, 1
        %v1484 = vadd.f32 %v1482, %v1483
        %s1485 = vtos %v1484
        %v1486 = vstv %s1485
        %v1487 = vsub.f32 %v1486, %v1379
        %v1488 = vsub.f32 %v1486, %v1382
        %v1489 = vsub.f32 %v1486, %v1385
        %v1490 = vsub.f32 %v1486, %v1388
        %v1491 = vsub.f32 %v1486, %v1391
        %v1492 = vsub.f32 %v1486, %v1394
        %v1493 = vsub.f32 %v1486, %v1397
        %v1494 = vsub.f32 %v1486, %v1400
        %v1495 = vsub.f32 %v1486, %v1403
        %v1496 = vsub.f32 %v1486, %v1406
        %v1497 = vsub.f32 %v1486, %v1409
        %v1498 = vsub.f32 %v1486, %v1412
        %v1499 = vsub.f32 %v1486, %v1415
        %v1500 = vsub.f32 %v1486, %v1418
        %v1501 = vsub.f32 %v1486, %v1421
        %v1502 = vsub.f32 %v1486, %v1424
        %v1503 = vsub.f32 %v1486, %v1427
        %v1504 = vsub.f32 %v1486, %v1430
        %v1505 = vsub.f32 %v1486, %v1433
        %v1506 = vsub.f32 %v1486, %v1436
        %v1507 = vsub.f32 %v1486, %v1439
        %v1508 = vsub.f32 %v1486, %v1442
        %v1509 = vsub.f32 %v1486, %v1445
        %v1510 = vsub.f32 %v1486, %v1448
        %v1511 = vsub.f32 %v1486, %v1451
        %v1512 = vsub.f32 %v1486, %v1454
        %v1513 = vsub.f32 %v1486, %v1457
        %v1514 = vsub.f32 %v1486, %v1460
        %v1515 = vsub.f32 %v1486, %v1463
        %v1516 = vsub.f32 %v1486, %v1466
        %v1517 = vsub.f32 %v1486, %v1469
        %v1518 = vsub.f32 %v1486, %v1472
        %v1519 = vadd.f32 %v235, 1.0
        %v1520 = vadd.f32 %v236, 1.0
        %v1521 = vadd.f32 %v237, 1.0
        %v1522 = vadd.f32 %v238, 1.0
        %v1523 = vadd.f32 %v239, 1.0
        %v1524 = vadd.f32 %v240, 1.0
        %v1525 = vadd.f32 %v241, 1.0
        %v1526 = vadd.f32 %v242, 1.0
        %v1527 = vadd.f32 %v243, 1.0
        %v1528 = vadd.f32 %v244, 1.0
        %v1529 = vadd.f32 %v245, 1.0
        %v1530 = vadd.f32 %v246, 1.0
        %v1531 = vadd.f32 %v247, 1.0
        %v1532 = vadd.f32 %v248, 1.0
        %v1533 = vadd.f32 %v249, 1.0
        %v1534 = vadd.f32 %v250, 1.0
        %v1535 = vadd.f32 %v251, 1.0
        %v1536 = vadd.f32 %v252, 1.0
        %v1537 = vadd.f32 %v253, 1.0
        %v1538 = vadd.f32 %v254, 1.0
        %v1539 = vadd.f32 %v255, 1.0
        %v1540 = vadd.f32 %v256, 1.0
        %v1541 = vadd.f32 %v257, 1.0
        %v1542 = vadd.f32 %v258, 1.0
        %v1543 = vadd.f32 %v259, 1.0
        %v1544 = vadd.f32 %v260, 1.0
        %v1545 = vadd.f32 %v261, 1.0
        %v1546 = vadd.f32 %v262, 1.0
        %v1547 = vadd.f32 %v263, 1.0
        %v1548 = vadd.f32 %v264, 1.0
        %v1549 = vadd.f32 %v265, 1.0
        %v1550 = vadd.f32 %v266, 1.0
        %v1551 = vadd.f32 %v1486, %v1519
        %v1552 = vadd.f32 %v1486, %v1520
        %v1553 = vadd.f32 %v1486, %v1521
        %v1554 = vadd.f32 %v1486, %v1522
        %v1555 = vadd.f32 %v1486, %v1523
        %v1556 = vadd.f32 %v1486, %v1524
        %v1557 = vadd.f32 %v1486, %v1525
        %v1558 = vadd.f32 %v1486, %v1526
        %v1559 = vadd.f32 %v1486, %v1527
        %v1560 = vadd.f32 %v1486, %v1528
        %v1561 = vadd.f32 %v1486, %v1529
        %v1562 = vadd.f32 %v1486, %v1530
        %v1563 = vadd.f32 %v1486, %v1531
        %v1564 = vadd.f32 %v1486, %v1532
        %v1565 = vadd.f32 %v1486, %v1533
        %v1566 = vadd.f32 %v1486, %v1534
        %v1567 = vadd.f32 %v1486, %v1535
        %v1568 = vadd.f32 %v1486, %v1536
        %v1569 = vadd.f32 %v1486, %v1537
        %v1570 = vadd.f32 %v1486, %v1538
        %v1571 = vadd.f32 %v1486, %v1539
        %v1572 = vadd.f32 %v1486, %v1540
        %v1573 = vadd.f32 %v1486, %v1541
        %v1574 = vadd.f32 %v1486, %v1542
        %v1575 = vadd.f32 %v1486, %v1543
        %v1576 = vadd.f32 %v1486, %v1544
        %v1577 = vadd.f32 %v1486, %v1545
        %v1578 = vadd.f32 %v1486, %v1546
        %v1579 = vadd.f32 %v1486, %v1547
        %v1580 = vadd.f32 %v1486, %v1548
        %v1581 = vadd.f32 %v1486, %v1549
        %v1582 = vadd.f32 %v1486, %v1550
        %v1583 = vsub.f32 %v1551, %v1379
        %v1584 = vsub.f32 %v1552, %v1382
        %v1585 = vsub.f32 %v1553, %v1385
        %v1586 = vsub.f32 %v1554, %v1388
        %v1587 = vsub.f32 %v1555, %v1391
        %v1588 = vsub.f32 %v1556, %v1394
        %v1589 = vsub.f32 %v1557, %v1397
        %v1590 = vsub.f32 %v1558, %v1400
        %v1591 = vsub.f32 %v1559, %v1403
        %v1592 = vsub.f32 %v1560, %v1406
        %v1593 = vsub.f32 %v1561, %v1409
        %v1594 = vsub.f32 %v1562, %v1412
        %v1595 = vsub.f32 %v1563, %v1415
        %v1596 = vsub.f32 %v1564, %v1418
        %v1597 = vsub.f32 %v1565, %v1421
        %v1598 = vsub.f32 %v1566, %v1424
        %v1599 = vsub.f32 %v1567, %v1427
        %v1600 = vsub.f32 %v1568, %v1430
        %v1601 = vsub.f32 %v1569, %v1433
        %v1602 = vsub.f32 %v1570, %v1436
        %v1603 = vsub.f32 %v1571, %v1439
        %v1604 = vsub.f32 %v1572, %v1442
        %v1605 = vsub.f32 %v1573, %v1445
        %v1606 = vsub.f32 %v1574, %v1448
        %v1607 = vsub.f32 %v1575, %v1451
        %v1608 = vsub.f32 %v1576, %v1454
        %v1609 = vsub.f32 %v1577, %v1457
        %v1610 = vsub.f32 %v1578, %v1460
        %v1611 = vsub.f32 %v1579, %v1463
        %v1612 = vsub.f32 %v1580, %v1466
        %v1613 = vsub.f32 %v1581, %v1469
        %v1614 = vsub.f32 %v1582, %v1472
        %v1615 = vrcp.pop %v1583
        %v1616 = vmul.f32 %v1583, %v1615
        %v1617 = vsub.f32 1.0, %v1616
        %v1618 = vmul.f32 %v1615, %v1617
        %v1619 = vadd.f32 %v1615, %v1618
        %vm1620 = vweird.f32 %v1583
        %vm1621 = vweird.f32 %v1615
        %vm1622 = vmor %vm1620, %vm1621
        %v1623 = vsel %vm1622, %v1615, %v1619
        %v1624 = vand.u32 2147483647, %v1583
        %vm1625 = vcmp.eq.f32.partialorder %v1624, 8.507059e+37
        %v1626 = vand.u32 %v1583, 2147483648
        %v1627 = vor.u32 1.1754944e-38, %v1626
        %v1628 = vsel %vm1625, %v1627, %v1623
        %v1629 = vmul.f32 %v1487, %v1628
        %v1630 = vrcp.pop %v1584
        %v1631 = vmul.f32 %v1584, %v1630
        %v1632 = vsub.f32 1.0, %v1631
        %v1633 = vmul.f32 %v1630, %v1632
        %v1634 = vadd.f32 %v1630, %v1633
        %vm1635 = vweird.f32 %v1584
        %vm1636 = vweird.f32 %v1630
        %vm1637 = vmor %vm1635, %vm1636
        %v1638 = vsel %vm1637, %v1630, %v1634
        %v1639 = vand.u32 2147483647, %v1584
        %vm1640 = vcmp.eq.f32.partialorder %v1639, 8.507059e+37
        %v1641 = vand.u32 %v1584, 2147483648
        %v1642 = vor.u32 1.1754944e-38, %v1641
        %v1643 = vsel %vm1640, %v1642, %v1638
        %v1644 = vmul.f32 %v1488, %v1643
        %v1645 = vrcp.pop %v1585
        %v1646 = vmul.f32 %v1585, %v1645
        %v1647 = vsub.f32 1.0, %v1646
        %v1648 = vmul.f32 %v1645, %v1647
        %v1649 = vadd.f32 %v1645, %v1648
        %vm1650 = vweird.f32 %v1585
        %vm1651 = vweird.f32 %v1645
        %vm1652 = vmor %vm1650, %vm1651
        %v1653 = vsel %vm1652, %v1645, %v1649
        %v1654 = vand.u32 2147483647, %v1585
        %vm1655 = vcmp.eq.f32.partialorder %v1654, 8.507059e+37
        %v1656 = vand.u32 %v1585, 2147483648
        %v1657 = vor.u32 1.1754944e-38, %v1656
        %v1658 = vsel %vm1655, %v1657, %v1653
        %v1659 = vmul.f32 %v1489, %v1658
        %v1660 = vrcp.pop %v1586
        %v1661 = vmul.f32 %v1586, %v1660
        %v1662 = vsub.f32 1.0, %v1661
        %v1663 = vmul.f32 %v1660, %v1662
        %v1664 = vadd.f32 %v1660, %v1663
        %vm1665 = vweird.f32 %v1586
        %vm1666 = vweird.f32 %v1660
        %vm1667 = vmor %vm1665, %vm1666
        %v1668 = vsel %vm1667, %v1660, %v1664
        %v1669 = vand.u32 2147483647, %v1586
        %vm1670 = vcmp.eq.f32.partialorder %v1669, 8.507059e+37
        %v1671 = vand.u32 %v1586, 2147483648
        %v1672 = vor.u32 1.1754944e-38, %v1671
        %v1673 = vsel %vm1670, %v1672, %v1668
        %v1674 = vmul.f32 %v1490, %v1673
        %v1675 = vrcp.pop %v1587
        %v1676 = vmul.f32 %v1587, %v1675
        %v1677 = vsub.f32 1.0, %v1676
        %v1678 = vmul.f32 %v1675, %v1677
        %v1679 = vadd.f32 %v1675, %v1678
        %vm1680 = vweird.f32 %v1587
        %vm1681 = vweird.f32 %v1675
        %vm1682 = vmor %vm1680, %vm1681
        %v1683 = vsel %vm1682, %v1675, %v1679
        %v1684 = vand.u32 2147483647, %v1587
        %vm1685 = vcmp.eq.f32.partialorder %v1684, 8.507059e+37
        %v1686 = vand.u32 %v1587, 2147483648
        %v1687 = vor.u32 1.1754944e-38, %v1686
        %v1688 = vsel %vm1685, %v1687, %v1683
        %v1689 = vmul.f32 %v1491, %v1688
        %v1690 = vrcp.pop %v1588
        %v1691 = vmul.f32 %v1588, %v1690
        %v1692 = vsub.f32 1.0, %v1691
        %v1693 = vmul.f32 %v1690, %v1692
        %v1694 = vadd.f32 %v1690, %v1693
        %vm1695 = vweird.f32 %v1588
        %vm1696 = vweird.f32 %v1690
        %vm1697 = vmor %vm1695, %vm1696
        %v1698 = vsel %vm1697, %v1690, %v1694
        %v1699 = vand.u32 2147483647, %v1588
        %vm1700 = vcmp.eq.f32.partialorder %v1699, 8.507059e+37
        %v1701 = vand.u32 %v1588, 2147483648
        %v1702 = vor.u32 1.1754944e-38, %v1701
        %v1703 = vsel %vm1700, %v1702, %v1698
        %v1704 = vmul.f32 %v1492, %v1703
        %v1705 = vrcp.pop %v1589
        %v1706 = vmul.f32 %v1589, %v1705
        %v1707 = vsub.f32 1.0, %v1706
        %v1708 = vmul.f32 %v1705, %v1707
        %v1709 = vadd.f32 %v1705, %v1708
        %vm1710 = vweird.f32 %v1589
        %vm1711 = vweird.f32 %v1705
        %vm1712 = vmor %vm1710, %vm1711
        %v1713 = vsel %vm1712, %v1705, %v1709
        %v1714 = vand.u32 2147483647, %v1589
        %vm1715 = vcmp.eq.f32.partialorder %v1714, 8.507059e+37
        %v1716 = vand.u32 %v1589, 2147483648
        %v1717 = vor.u32 1.1754944e-38, %v1716
        %v1718 = vsel %vm1715, %v1717, %v1713
        %v1719 = vmul.f32 %v1493, %v1718
        %v1720 = vrcp.pop %v1590
        %v1721 = vmul.f32 %v1590, %v1720
        %v1722 = vsub.f32 1.0, %v1721
        %v1723 = vmul.f32 %v1720, %v1722
        %v1724 = vadd.f32 %v1720, %v1723
        %vm1725 = vweird.f32 %v1590
        %vm1726 = vweird.f32 %v1720
        %vm1727 = vmor %vm1725, %vm1726
        %v1728 = vsel %vm1727, %v1720, %v1724
        %v1729 = vand.u32 2147483647, %v1590
        %vm1730 = vcmp.eq.f32.partialorder %v1729, 8.507059e+37
        %v1731 = vand.u32 %v1590, 2147483648
        %v1732 = vor.u32 1.1754944e-38, %v1731
        %v1733 = vsel %vm1730, %v1732, %v1728
        %v1734 = vmul.f32 %v1494, %v1733
        %v1735 = vrcp.pop %v1591
        %v1736 = vmul.f32 %v1591, %v1735
        %v1737 = vsub.f32 1.0, %v1736
        %v1738 = vmul.f32 %v1735, %v1737
        %v1739 = vadd.f32 %v1735, %v1738
        %vm1740 = vweird.f32 %v1591
        %vm1741 = vweird.f32 %v1735
        %vm1742 = vmor %vm1740, %vm1741
        %v1743 = vsel %vm1742, %v1735, %v1739
        %v1744 = vand.u32 2147483647, %v1591
        %vm1745 = vcmp.eq.f32.partialorder %v1744, 8.507059e+37
        %v1746 = vand.u32 %v1591, 2147483648
        %v1747 = vor.u32 1.1754944e-38, %v1746
        %v1748 = vsel %vm1745, %v1747, %v1743
        %v1749 = vmul.f32 %v1495, %v1748
        %v1750 = vrcp.pop %v1592
        %v1751 = vmul.f32 %v1592, %v1750
        %v1752 = vsub.f32 1.0, %v1751
        %v1753 = vmul.f32 %v1750, %v1752
        %v1754 = vadd.f32 %v1750, %v1753
        %vm1755 = vweird.f32 %v1592
        %vm1756 = vweird.f32 %v1750
        %vm1757 = vmor %vm1755, %vm1756
        %v1758 = vsel %vm1757, %v1750, %v1754
        %v1759 = vand.u32 2147483647, %v1592
        %vm1760 = vcmp.eq.f32.partialorder %v1759, 8.507059e+37
        %v1761 = vand.u32 %v1592, 2147483648
        %v1762 = vor.u32 1.1754944e-38, %v1761
        %v1763 = vsel %vm1760, %v1762, %v1758
        %v1764 = vmul.f32 %v1496, %v1763
        %v1765 = vrcp.pop %v1593
        %v1766 = vmul.f32 %v1593, %v1765
        %v1767 = vsub.f32 1.0, %v1766
        %v1768 = vmul.f32 %v1765, %v1767
        %v1769 = vadd.f32 %v1765, %v1768
        %vm1770 = vweird.f32 %v1593
        %vm1771 = vweird.f32 %v1765
        %vm1772 = vmor %vm1770, %vm1771
        %v1773 = vsel %vm1772, %v1765, %v1769
        %v1774 = vand.u32 2147483647, %v1593
        %vm1775 = vcmp.eq.f32.partialorder %v1774, 8.507059e+37
        %v1776 = vand.u32 %v1593, 2147483648
        %v1777 = vor.u32 1.1754944e-38, %v1776
        %v1778 = vsel %vm1775, %v1777, %v1773
        %v1779 = vmul.f32 %v1497, %v1778
        %v1780 = vrcp.pop %v1594
        %v1781 = vmul.f32 %v1594, %v1780
        %v1782 = vsub.f32 1.0, %v1781
        %v1783 = vmul.f32 %v1780, %v1782
        %v1784 = vadd.f32 %v1780, %v1783
        %vm1785 = vweird.f32 %v1594
        %vm1786 = vweird.f32 %v1780
        %vm1787 = vmor %vm1785, %vm1786
        %v1788 = vsel %vm1787, %v1780, %v1784
        %v1789 = vand.u32 2147483647, %v1594
        %vm1790 = vcmp.eq.f32.partialorder %v1789, 8.507059e+37
        %v1791 = vand.u32 %v1594, 2147483648
        %v1792 = vor.u32 1.1754944e-38, %v1791
        %v1793 = vsel %vm1790, %v1792, %v1788
        %v1794 = vmul.f32 %v1498, %v1793
        %v1795 = vrcp.pop %v1595
        %v1796 = vmul.f32 %v1595, %v1795
        %v1797 = vsub.f32 1.0, %v1796
        %v1798 = vmul.f32 %v1795, %v1797
        %v1799 = vadd.f32 %v1795, %v1798
        %vm1800 = vweird.f32 %v1595
        %vm1801 = vweird.f32 %v1795
        %vm1802 = vmor %vm1800, %vm1801
        %v1803 = vsel %vm1802, %v1795, %v1799
        %v1804 = vand.u32 2147483647, %v1595
        %vm1805 = vcmp.eq.f32.partialorder %v1804, 8.507059e+37
        %v1806 = vand.u32 %v1595, 2147483648
        %v1807 = vor.u32 1.1754944e-38, %v1806
        %v1808 = vsel %vm1805, %v1807, %v1803
        %v1809 = vmul.f32 %v1499, %v1808
        %v1810 = vrcp.pop %v1596
        %v1811 = vmul.f32 %v1596, %v1810
        %v1812 = vsub.f32 1.0, %v1811
        %v1813 = vmul.f32 %v1810, %v1812
        %v1814 = vadd.f32 %v1810, %v1813
        %vm1815 = vweird.f32 %v1596
        %vm1816 = vweird.f32 %v1810
        %vm1817 = vmor %vm1815, %vm1816
        %v1818 = vsel %vm1817, %v1810, %v1814
        %v1819 = vand.u32 2147483647, %v1596
        %vm1820 = vcmp.eq.f32.partialorder %v1819, 8.507059e+37
        %v1821 = vand.u32 %v1596, 2147483648
        %v1822 = vor.u32 1.1754944e-38, %v1821
        %v1823 = vsel %vm1820, %v1822, %v1818
        %v1824 = vmul.f32 %v1500, %v1823
        %v1825 = vrcp.pop %v1597
        %v1826 = vmul.f32 %v1597, %v1825
        %v1827 = vsub.f32 1.0, %v1826
        %v1828 = vmul.f32 %v1825, %v1827
        %v1829 = vadd.f32 %v1825, %v1828
        %vm1830 = vweird.f32 %v1597
        %vm1831 = vweird.f32 %v1825
        %vm1832 = vmor %vm1830, %vm1831
        %v1833 = vsel %vm1832, %v1825, %v1829
        %v1834 = vand.u32 2147483647, %v1597
        %vm1835 = vcmp.eq.f32.partialorder %v1834, 8.507059e+37
        %v1836 = vand.u32 %v1597, 2147483648
        %v1837 = vor.u32 1.1754944e-38, %v1836
        %v1838 = vsel %vm1835, %v1837, %v1833
        %v1839 = vmul.f32 %v1501, %v1838
        %v1840 = vrcp.pop %v1598
        %v1841 = vmul.f32 %v1598, %v1840
        %v1842 = vsub.f32 1.0, %v1841
        %v1843 = vmul.f32 %v1840, %v1842
        %v1844 = vadd.f32 %v1840, %v1843
        %vm1845 = vweird.f32 %v1598
        %vm1846 = vweird.f32 %v1840
        %vm1847 = vmor %vm1845, %vm1846
        %v1848 = vsel %vm1847, %v1840, %v1844
        %v1849 = vand.u32 2147483647, %v1598
        %vm1850 = vcmp.eq.f32.partialorder %v1849, 8.507059e+37
        %v1851 = vand.u32 %v1598, 2147483648
        %v1852 = vor.u32 1.1754944e-38, %v1851
        %v1853 = vsel %vm1850, %v1852, %v1848
        %v1854 = vmul.f32 %v1502, %v1853
        %v1855 = vrcp.pop %v1599
        %v1856 = vmul.f32 %v1599, %v1855
        %v1857 = vsub.f32 1.0, %v1856
        %v1858 = vmul.f32 %v1855, %v1857
        %v1859 = vadd.f32 %v1855, %v1858
        %vm1860 = vweird.f32 %v1599
        %vm1861 = vweird.f32 %v1855
        %vm1862 = vmor %vm1860, %vm1861
        %v1863 = vsel %vm1862, %v1855, %v1859
        %v1864 = vand.u32 2147483647, %v1599
        %vm1865 = vcmp.eq.f32.partialorder %v1864, 8.507059e+37
        %v1866 = vand.u32 %v1599, 2147483648
        %v1867 = vor.u32 1.1754944e-38, %v1866
        %v1868 = vsel %vm1865, %v1867, %v1863
        %v1869 = vmul.f32 %v1503, %v1868
        %v1870 = vrcp.pop %v1600
        %v1871 = vmul.f32 %v1600, %v1870
        %v1872 = vsub.f32 1.0, %v1871
        %v1873 = vmul.f32 %v1870, %v1872
        %v1874 = vadd.f32 %v1870, %v1873
        %vm1875 = vweird.f32 %v1600
        %vm1876 = vweird.f32 %v1870
        %vm1877 = vmor %vm1875, %vm1876
        %v1878 = vsel %vm1877, %v1870, %v1874
        %v1879 = vand.u32 2147483647, %v1600
        %vm1880 = vcmp.eq.f32.partialorder %v1879, 8.507059e+37
        %v1881 = vand.u32 %v1600, 2147483648
        %v1882 = vor.u32 1.1754944e-38, %v1881
        %v1883 = vsel %vm1880, %v1882, %v1878
        %v1884 = vmul.f32 %v1504, %v1883
        %v1885 = vrcp.pop %v1601
        %v1886 = vmul.f32 %v1601, %v1885
        %v1887 = vsub.f32 1.0, %v1886
        %v1888 = vmul.f32 %v1885, %v1887
        %v1889 = vadd.f32 %v1885, %v1888
        %vm1890 = vweird.f32 %v1601
        %vm1891 = vweird.f32 %v1885
        %vm1892 = vmor %vm1890, %vm1891
        %v1893 = vsel %vm1892, %v1885, %v1889
        %v1894 = vand.u32 2147483647, %v1601
        %vm1895 = vcmp.eq.f32.partialorder %v1894, 8.507059e+37
        %v1896 = vand.u32 %v1601, 2147483648
        %v1897 = vor.u32 1.1754944e-38, %v1896
        %v1898 = vsel %vm1895, %v1897, %v1893
        %v1899 = vmul.f32 %v1505, %v1898
        %v1900 = vrcp.pop %v1602
        %v1901 = vmul.f32 %v1602, %v1900
        %v1902 = vsub.f32 1.0, %v1901
        %v1903 = vmul.f32 %v1900, %v1902
        %v1904 = vadd.f32 %v1900, %v1903
        %vm1905 = vweird.f32 %v1602
        %vm1906 = vweird.f32 %v1900
        %vm1907 = vmor %vm1905, %vm1906
        %v1908 = vsel %vm1907, %v1900, %v1904
        %v1909 = vand.u32 2147483647, %v1602
        %vm1910 = vcmp.eq.f32.partialorder %v1909, 8.507059e+37
        %v1911 = vand.u32 %v1602, 2147483648
        %v1912 = vor.u32 1.1754944e-38, %v1911
        %v1913 = vsel %vm1910, %v1912, %v1908
        %v1914 = vmul.f32 %v1506, %v1913
        %v1915 = vrcp.pop %v1603
        %v1916 = vmul.f32 %v1603, %v1915
        %v1917 = vsub.f32 1.0, %v1916
        %v1918 = vmul.f32 %v1915, %v1917
        %v1919 = vadd.f32 %v1915, %v1918
        %vm1920 = vweird.f32 %v1603
        %vm1921 = vweird.f32 %v1915
        %vm1922 = vmor %vm1920, %vm1921
        %v1923 = vsel %vm1922, %v1915, %v1919
        %v1924 = vand.u32 2147483647, %v1603
        %vm1925 = vcmp.eq.f32.partialorder %v1924, 8.507059e+37
        %v1926 = vand.u32 %v1603, 2147483648
        %v1927 = vor.u32 1.1754944e-38, %v1926
        %v1928 = vsel %vm1925, %v1927, %v1923
        %v1929 = vmul.f32 %v1507, %v1928
        %v1930 = vrcp.pop %v1604
        %v1931 = vmul.f32 %v1604, %v1930
        %v1932 = vsub.f32 1.0, %v1931
        %v1933 = vmul.f32 %v1930, %v1932
        %v1934 = vadd.f32 %v1930, %v1933
        %vm1935 = vweird.f32 %v1604
        %vm1936 = vweird.f32 %v1930
        %vm1937 = vmor %vm1935, %vm1936
        %v1938 = vsel %vm1937, %v1930, %v1934
        %v1939 = vand.u32 2147483647, %v1604
        %vm1940 = vcmp.eq.f32.partialorder %v1939, 8.507059e+37
        %v1941 = vand.u32 %v1604, 2147483648
        %v1942 = vor.u32 1.1754944e-38, %v1941
        %v1943 = vsel %vm1940, %v1942, %v1938
        %v1944 = vmul.f32 %v1508, %v1943
        %v1945 = vrcp.pop %v1605
        %v1946 = vmul.f32 %v1605, %v1945
        %v1947 = vsub.f32 1.0, %v1946
        %v1948 = vmul.f32 %v1945, %v1947
        %v1949 = vadd.f32 %v1945, %v1948
        %vm1950 = vweird.f32 %v1605
        %vm1951 = vweird.f32 %v1945
        %vm1952 = vmor %vm1950, %vm1951
        %v1953 = vsel %vm1952, %v1945, %v1949
        %v1954 = vand.u32 2147483647, %v1605
        %vm1955 = vcmp.eq.f32.partialorder %v1954, 8.507059e+37
        %v1956 = vand.u32 %v1605, 2147483648
        %v1957 = vor.u32 1.1754944e-38, %v1956
        %v1958 = vsel %vm1955, %v1957, %v1953
        %v1959 = vmul.f32 %v1509, %v1958
        %v1960 = vrcp.pop %v1606
        %v1961 = vmul.f32 %v1606, %v1960
        %v1962 = vsub.f32 1.0, %v1961
        %v1963 = vmul.f32 %v1960, %v1962
        %v1964 = vadd.f32 %v1960, %v1963
        %vm1965 = vweird.f32 %v1606
        %vm1966 = vweird.f32 %v1960
        %vm1967 = vmor %vm1965, %vm1966
        %v1968 = vsel %vm1967, %v1960, %v1964
        %v1969 = vand.u32 2147483647, %v1606
        %vm1970 = vcmp.eq.f32.partialorder %v1969, 8.507059e+37
        %v1971 = vand.u32 %v1606, 2147483648
        %v1972 = vor.u32 1.1754944e-38, %v1971
        %v1973 = vsel %vm1970, %v1972, %v1968
        %v1974 = vmul.f32 %v1510, %v1973
        %v1975 = vrcp.pop %v1607
        %v1976 = vmul.f32 %v1607, %v1975
        %v1977 = vsub.f32 1.0, %v1976
        %v1978 = vmul.f32 %v1975, %v1977
        %v1979 = vadd.f32 %v1975, %v1978
        %vm1980 = vweird.f32 %v1607
        %vm1981 = vweird.f32 %v1975
        %vm1982 = vmor %vm1980, %vm1981
        %v1983 = vsel %vm1982, %v1975, %v1979
        %v1984 = vand.u32 2147483647, %v1607
        %vm1985 = vcmp.eq.f32.partialorder %v1984, 8.507059e+37
        %v1986 = vand.u32 %v1607, 2147483648
        %v1987 = vor.u32 1.1754944e-38, %v1986
        %v1988 = vsel %vm1985, %v1987, %v1983
        %v1989 = vmul.f32 %v1511, %v1988
        %v1990 = vrcp.pop %v1608
        %v1991 = vmul.f32 %v1608, %v1990
        %v1992 = vsub.f32 1.0, %v1991
        %v1993 = vmul.f32 %v1990, %v1992
        %v1994 = vadd.f32 %v1990, %v1993
        %vm1995 = vweird.f32 %v1608
        %vm1996 = vweird.f32 %v1990
        %vm1997 = vmor %vm1995, %vm1996
        %v1998 = vsel %vm1997, %v1990, %v1994
        %v1999 = vand.u32 2147483647, %v1608
        %vm2000 = vcmp.eq.f32.partialorder %v1999, 8.507059e+37
        %v2001 = vand.u32 %v1608, 2147483648
        %v2002 = vor.u32 1.1754944e-38, %v2001
        %v2003 = vsel %vm2000, %v2002, %v1998
        %v2004 = vmul.f32 %v1512, %v2003
        %v2005 = vrcp.pop %v1609
        %v2006 = vmul.f32 %v1609, %v2005
        %v2007 = vsub.f32 1.0, %v2006
        %v2008 = vmul.f32 %v2005, %v2007
        %v2009 = vadd.f32 %v2005, %v2008
        %vm2010 = vweird.f32 %v1609
        %vm2011 = vweird.f32 %v2005
        %vm2012 = vmor %vm2010, %vm2011
        %v2013 = vsel %vm2012, %v2005, %v2009
        %v2014 = vand.u32 2147483647, %v1609
        %vm2015 = vcmp.eq.f32.partialorder %v2014, 8.507059e+37
        %v2016 = vand.u32 %v1609, 2147483648
        %v2017 = vor.u32 1.1754944e-38, %v2016
        %v2018 = vsel %vm2015, %v2017, %v2013
        %v2019 = vmul.f32 %v1513, %v2018
        %v2020 = vrcp.pop %v1610
        %v2021 = vmul.f32 %v1610, %v2020
        %v2022 = vsub.f32 1.0, %v2021
        %v2023 = vmul.f32 %v2020, %v2022
        %v2024 = vadd.f32 %v2020, %v2023
        %vm2025 = vweird.f32 %v1610
        %vm2026 = vweird.f32 %v2020
        %vm2027 = vmor %vm2025, %vm2026
        %v2028 = vsel %vm2027, %v2020, %v2024
        %v2029 = vand.u32 2147483647, %v1610
        %vm2030 = vcmp.eq.f32.partialorder %v2029, 8.507059e+37
        %v2031 = vand.u32 %v1610, 2147483648
        %v2032 = vor.u32 1.1754944e-38, %v2031
        %v2033 = vsel %vm2030, %v2032, %v2028
        %v2034 = vmul.f32 %v1514, %v2033
        %v2035 = vrcp.pop %v1611
        %v2036 = vmul.f32 %v1611, %v2035
        %v2037 = vsub.f32 1.0, %v2036
        %v2038 = vmul.f32 %v2035, %v2037
        %v2039 = vadd.f32 %v2035, %v2038
        %vm2040 = vweird.f32 %v1611
        %vm2041 = vweird.f32 %v2035
        %vm2042 = vmor %vm2040, %vm2041
        %v2043 = vsel %vm2042, %v2035, %v2039
        %v2044 = vand.u32 2147483647, %v1611
        %vm2045 = vcmp.eq.f32.partialorder %v2044, 8.507059e+37
        %v2046 = vand.u32 %v1611, 2147483648
        %v2047 = vor.u32 1.1754944e-38, %v2046
        %v2048 = vsel %vm2045, %v2047, %v2043
        %v2049 = vmul.f32 %v1515, %v2048
        %v2050 = vrcp.pop %v1612
        %v2051 = vmul.f32 %v1612, %v2050
        %v2052 = vsub.f32 1.0, %v2051
        %v2053 = vmul.f32 %v2050, %v2052
        %v2054 = vadd.f32 %v2050, %v2053
        %vm2055 = vweird.f32 %v1612
        %vm2056 = vweird.f32 %v2050
        %vm2057 = vmor %vm2055, %vm2056
        %v2058 = vsel %vm2057, %v2050, %v2054
        %v2059 = vand.u32 2147483647, %v1612
        %vm2060 = vcmp.eq.f32.partialorder %v2059, 8.507059e+37
        %v2061 = vand.u32 %v1612, 2147483648
        %v2062 = vor.u32 1.1754944e-38, %v2061
        %v2063 = vsel %vm2060, %v2062, %v2058
        %v2064 = vmul.f32 %v1516, %v2063
        %v2065 = vrcp.pop %v1613
        %v2066 = vmul.f32 %v1613, %v2065
        %v2067 = vsub.f32 1.0, %v2066
        %v2068 = vmul.f32 %v2065, %v2067
        %v2069 = vadd.f32 %v2065, %v2068
        %vm2070 = vweird.f32 %v1613
        %vm2071 = vweird.f32 %v2065
        %vm2072 = vmor %vm2070, %vm2071
        %v2073 = vsel %vm2072, %v2065, %v2069
        %v2074 = vand.u32 2147483647, %v1613
        %vm2075 = vcmp.eq.f32.partialorder %v2074, 8.507059e+37
        %v2076 = vand.u32 %v1613, 2147483648
        %v2077 = vor.u32 1.1754944e-38, %v2076
        %v2078 = vsel %vm2075, %v2077, %v2073
        %v2079 = vmul.f32 %v1517, %v2078
        %v2080 = vrcp.pop %v1614
        %v2081 = vmul.f32 %v1614, %v2080
        %v2082 = vsub.f32 1.0, %v2081
        %v2083 = vmul.f32 %v2080, %v2082
        %v2084 = vadd.f32 %v2080, %v2083
        %vm2085 = vweird.f32 %v1614
        %vm2086 = vweird.f32 %v2080
        %vm2087 = vmor %vm2085, %vm2086
        %v2088 = vsel %vm2087, %v2080, %v2084
        %v2089 = vand.u32 2147483647, %v1614
        %vm2090 = vcmp.eq.f32.partialorder %v2089, 8.507059e+37
        %v2091 = vand.u32 %v1614, 2147483648
        %v2092 = vor.u32 1.1754944e-38, %v2091
        %v2093 = vsel %vm2090, %v2092, %v2088
        %v2094 = vmul.f32 %v1518, %v2093
        %v2095 = vsub.f32 1.0, %v1629
        %v2096 = vsub.f32 1.0, %v1644
        %v2097 = vsub.f32 1.0, %v1659
        %v2098 = vsub.f32 1.0, %v1674
        %v2099 = vsub.f32 1.0, %v1689
        %v2100 = vsub.f32 1.0, %v1704
        %v2101 = vsub.f32 1.0, %v1719
        %v2102 = vsub.f32 1.0, %v1734
        %v2103 = vsub.f32 1.0, %v1749
        %v2104 = vsub.f32 1.0, %v1764
        %v2105 = vsub.f32 1.0, %v1779
        %v2106 = vsub.f32 1.0, %v1794
        %v2107 = vsub.f32 1.0, %v1809
        %v2108 = vsub.f32 1.0, %v1824
        %v2109 = vsub.f32 1.0, %v1839
        %v2110 = vsub.f32 1.0, %v1854
        %v2111 = vsub.f32 1.0, %v1869
        %v2112 = vsub.f32 1.0, %v1884
        %v2113 = vsub.f32 1.0, %v1899
        %v2114 = vsub.f32 1.0, %v1914
        %v2115 = vsub.f32 1.0, %v1929
        %v2116 = vsub.f32 1.0, %v1944
        %v2117 = vsub.f32 1.0, %v1959
        %v2118 = vsub.f32 1.0, %v1974
        %v2119 = vsub.f32 1.0, %v1989
        %v2120 = vsub.f32 1.0, %v2004
        %v2121 = vsub.f32 1.0, %v2019
        %v2122 = vsub.f32 1.0, %v2034
        %v2123 = vsub.f32 1.0, %v2049
        %v2124 = vsub.f32 1.0, %v2064
        %v2125 = vsub.f32 1.0, %v2079
        %v2126 = vsub.f32 1.0, %v2094
        %v2127 = vsub.f32 %v1379, %v1219
        %v2128 = vsub.f32 %v1382, %v1222
        %v2129 = vsub.f32 %v1385, %v1225
        %v2130 = vsub.f32 %v1388, %v1228
        %v2131 = vsub.f32 %v1391, %v1231
        %v2132 = vsub.f32 %v1394, %v1234
        %v2133 = vsub.f32 %v1397, %v1237
        %v2134 = vsub.f32 %v1400, %v1240
        %v2135 = vsub.f32 %v1403, %v1243
        %v2136 = vsub.f32 %v1406, %v1246
        %v2137 = vsub.f32 %v1409, %v1249
        %v2138 = vsub.f32 %v1412, %v1252
        %v2139 = vsub.f32 %v1415, %v1255
        %v2140 = vsub.f32 %v1418, %v1258
        %v2141 = vsub.f32 %v1421, %v1261
        %v2142 = vsub.f32 %v1424, %v1264
        %v2143 = vsub.f32 %v1427, %v1267
        %v2144 = vsub.f32 %v1430, %v1270
        %v2145 = vsub.f32 %v1433, %v1273
        %v2146 = vsub.f32 %v1436, %v1276
        %v2147 = vsub.f32 %v1439, %v1279
        %v2148 = vsub.f32 %v1442, %v1282
        %v2149 = vsub.f32 %v1445, %v1285
        %v2150 = vsub.f32 %v1448, %v1288
        %v2151 = vsub.f32 %v1451, %v1291
        %v2152 = vsub.f32 %v1454, %v1294
        %v2153 = vsub.f32 %v1457, %v1297
        %v2154 = vsub.f32 %v1460, %v1300
        %v2155 = vsub.f32 %v1463, %v1303
        %v2156 = vsub.f32 %v1466, %v1306
        %v2157 = vsub.f32 %v1469, %v1309
        %v2158 = vsub.f32 %v1472, %v1312
        %vm2159 = vcmp.eq.s32.totalorder %v202, 0
        %vm2160 = vcmp.eq.s32.totalorder %v203, 0
        %vm2161 = vcmp.eq.s32.totalorder %v204, 0
        %vm2162 = vcmp.eq.s32.totalorder %v205, 0
        %vm2163 = vcmp.eq.s32.totalorder %v206, 0
        %vm2164 = vcmp.eq.s32.totalorder %v207, 0
        %vm2165 = vcmp.eq.s32.totalorder %v208, 0
        %vm2166 = vcmp.eq.s32.totalorder %v209, 0
        %vm2167 = vcmp.eq.s32.totalorder %v210, 0
        %vm2168 = vcmp.eq.s32.totalorder %v211, 0
        %vm2169 = vcmp.eq.s32.totalorder %v212, 0
        %vm2170 = vcmp.eq.s32.totalorder %v213, 0
        %vm2171 = vcmp.eq.s32.totalorder %v214, 0
        %vm2172 = vcmp.eq.s32.totalorder %v215, 0
        %vm2173 = vcmp.eq.s32.totalorder %v216, 0
        %vm2174 = vcmp.eq.s32.totalorder %v217, 0
        %vm2175 = vcmp.eq.s32.totalorder %v218, 0
        %vm2176 = vcmp.eq.s32.totalorder %v219, 0
        %vm2177 = vcmp.eq.s32.totalorder %v220, 0
        %vm2178 = vcmp.eq.s32.totalorder %v221, 0
        %vm2179 = vcmp.eq.s32.totalorder %v222, 0
        %vm2180 = vcmp.eq.s32.totalorder %v223, 0
        %vm2181 = vcmp.eq.s32.totalorder %v224, 0
        %vm2182 = vcmp.eq.s32.totalorder %v225, 0
        %vm2183 = vcmp.eq.s32.totalorder %v226, 0
        %vm2184 = vcmp.eq.s32.totalorder %v227, 0
        %vm2185 = vcmp.eq.s32.totalorder %v228, 0
        %vm2186 = vcmp.eq.s32.totalorder %v229, 0
        %vm2187 = vcmp.eq.s32.totalorder %v230, 0
        %vm2188 = vcmp.eq.s32.totalorder %v231, 0
        %vm2189 = vcmp.eq.s32.totalorder %v232, 0
        %vm2190 = vcmp.eq.s32.totalorder %v233, 0
        %v2191 = vadd.f32 %v1486, %v235
        %v2192 = vadd.f32 %v1486, %v236
        %v2193 = vadd.f32 %v1486, %v237
        %v2194 = vadd.f32 %v1486, %v238
        %v2195 = vadd.f32 %v1486, %v239
        %v2196 = vadd.f32 %v1486, %v240
        %v2197 = vadd.f32 %v1486, %v241
        %v2198 = vadd.f32 %v1486, %v242
        %v2199 = vadd.f32 %v1486, %v243
        %v2200 = vadd.f32 %v1486, %v244
        %v2201 = vadd.f32 %v1486, %v245
        %v2202 = vadd.f32 %v1486, %v246
        %v2203 = vadd.f32 %v1486, %v247
        %v2204 = vadd.f32 %v1486, %v248
        %v2205 = vadd.f32 %v1486, %v249
        %v2206 = vadd.f32 %v1486, %v250
        %v2207 = vadd.f32 %v1486, %v251
        %v2208 = vadd.f32 %v1486, %v252
        %v2209 = vadd.f32 %v1486, %v253
        %v2210 = vadd.f32 %v1486, %v254
        %v2211 = vadd.f32 %v1486, %v255
        %v2212 = vadd.f32 %v1486, %v256
        %v2213 = vadd.f32 %v1486, %v257
        %v2214 = vadd.f32 %v1486, %v258
        %v2215 = vadd.f32 %v1486, %v259
        %v2216 = vadd.f32 %v1486, %v260
        %v2217 = vadd.f32 %v1486, %v261
        %v2218 = vadd.f32 %v1486, %v262
        %v2219 = vadd.f32 %v1486, %v263
        %v2220 = vadd.f32 %v1486, %v264
        %v2221 = vadd.f32 %v1486, %v265
        %v2222 = vadd.f32 %v1486, %v266
        %v2223 = vsub.f32 %v2191, %v2127
        %v2224 = vsub.f32 %v2192, %v2128
        %v2225 = vsub.f32 %v2193, %v2129
        %v2226 = vsub.f32 %v2194, %v2130
        %v2227 = vsub.f32 %v2195, %v2131
        %v2228 = vsub.f32 %v2196, %v2132
        %v2229 = vsub.f32 %v2197, %v2133
        %v2230 = vsub.f32 %v2198, %v2134
        %v2231 = vsub.f32 %v2199, %v2135
        %v2232 = vsub.f32 %v2200, %v2136
        %v2233 = vsub.f32 %v2201, %v2137
        %v2234 = vsub.f32 %v2202, %v2138
        %v2235 = vsub.f32 %v2203, %v2139
        %v2236 = vsub.f32 %v2204, %v2140
        %v2237 = vsub.f32 %v2205, %v2141
        %v2238 = vsub.f32 %v2206, %v2142
        %v2239 = vsub.f32 %v2207, %v2143
        %v2240 = vsub.f32 %v2208, %v2144
        %v2241 = vsub.f32 %v2209, %v2145
        %v2242 = vsub.f32 %v2210, %v2146
        %v2243 = vsub.f32 %v2211, %v2147
        %v2244 = vsub.f32 %v2212, %v2148
        %v2245 = vsub.f32 %v2213, %v2149
        %v2246 = vsub.f32 %v2214, %v2150
        %v2247 = vsub.f32 %v2215, %v2151
        %v2248 = vsub.f32 %v2216, %v2152
        %v2249 = vsub.f32 %v2217, %v2153
        %v2250 = vsub.f32 %v2218, %v2154
        %v2251 = vsub.f32 %v2219, %v2155
        %v2252 = vsub.f32 %v2220, %v2156
        %v2253 = vsub.f32 %v2221, %v2157
        %v2254 = vsub.f32 %v2222, %v2158
        %v2255 = vsel %vm2159, 1.0, %v2223
        %v2256 = vsel %vm2160, 1.0, %v2224
        %v2257 = vsel %vm2161, 1.0, %v2225
        %v2258 = vsel %vm2162, 1.0, %v2226
        %v2259 = vsel %vm2163, 1.0, %v2227
        %v2260 = vsel %vm2164, 1.0, %v2228
        %v2261 = vsel %vm2165, 1.0, %v2229
        %v2262 = vsel %vm2166, 1.0, %v2230
        %v2263 = vsel %vm2167, 1.0, %v2231
        %v2264 = vsel %vm2168, 1.0, %v2232
        %v2265 = vsel %vm2169, 1.0, %v2233
        %v2266 = vsel %vm2170, 1.0, %v2234
        %v2267 = vsel %vm2171, 1.0, %v2235
        %v2268 = vsel %vm2172, 1.0, %v2236
        %v2269 = vsel %vm2173, 1.0, %v2237
        %v2270 = vsel %vm2174, 1.0, %v2238
        %v2271 = vsel %vm2175, 1.0, %v2239
        %v2272 = vsel %vm2176, 1.0, %v2240
        %v2273 = vsel %vm2177, 1.0, %v2241
        %v2274 = vsel %vm2178, 1.0, %v2242
        %v2275 = vsel %vm2179, 1.0, %v2243
        %v2276 = vsel %vm2180, 1.0, %v2244
        %v2277 = vsel %vm2181, 1.0, %v2245
        %v2278 = vsel %vm2182, 1.0, %v2246
        %v2279 = vsel %vm2183, 1.0, %v2247
        %v2280 = vsel %vm2184, 1.0, %v2248
        %v2281 = vsel %vm2185, 1.0, %v2249
        %v2282 = vsel %vm2186, 1.0, %v2250
        %v2283 = vsel %vm2187, 1.0, %v2251
        %v2284 = vsel %vm2188, 1.0, %v2252
        %v2285 = vsel %vm2189, 1.0, %v2253
        %v2286 = vsel %vm2190, 1.0, %v2254
        %v2287 = vsub.f32 %v1486, %v2127
        %v2288 = vsub.f32 %v1486, %v2128
        %v2289 = vsub.f32 %v1486, %v2129
        %v2290 = vsub.f32 %v1486, %v2130
        %v2291 = vsub.f32 %v1486, %v2131
        %v2292 = vsub.f32 %v1486, %v2132
        %v2293 = vsub.f32 %v1486, %v2133
        %v2294 = vsub.f32 %v1486, %v2134
        %v2295 = vsub.f32 %v1486, %v2135
        %v2296 = vsub.f32 %v1486, %v2136
        %v2297 = vsub.f32 %v1486, %v2137
        %v2298 = vsub.f32 %v1486, %v2138
        %v2299 = vsub.f32 %v1486, %v2139
        %v2300 = vsub.f32 %v1486, %v2140
        %v2301 = vsub.f32 %v1486, %v2141
        %v2302 = vsub.f32 %v1486, %v2142
        %v2303 = vsub.f32 %v1486, %v2143
        %v2304 = vsub.f32 %v1486, %v2144
        %v2305 = vsub.f32 %v1486, %v2145
        %v2306 = vsub.f32 %v1486, %v2146
        %v2307 = vsub.f32 %v1486, %v2147
        %v2308 = vsub.f32 %v1486, %v2148
        %v2309 = vsub.f32 %v1486, %v2149
        %v2310 = vsub.f32 %v1486, %v2150
        %v2311 = vsub.f32 %v1486, %v2151
        %v2312 = vsub.f32 %v1486, %v2152
        %v2313 = vsub.f32 %v1486, %v2153
        %v2314 = vsub.f32 %v1486, %v2154
        %v2315 = vsub.f32 %v1486, %v2155
        %v2316 = vsub.f32 %v1486, %v2156
        %v2317 = vsub.f32 %v1486, %v2157
        %v2318 = vsub.f32 %v1486, %v2158
        %v2319 = vrcp.pop %v2255
        %v2320 = vmul.f32 %v2255, %v2319
        %v2321 = vsub.f32 1.0, %v2320
        %v2322 = vmul.f32 %v2319, %v2321
        %v2323 = vadd.f32 %v2319, %v2322
        %vm2324 = vweird.f32 %v2255
        %vm2325 = vweird.f32 %v2319
        %vm2326 = vmor %vm2324, %vm2325
        %v2327 = vsel %vm2326, %v2319, %v2323
        %v2328 = vand.u32 2147483647, %v2255
        %vm2329 = vcmp.eq.f32.partialorder %v2328, 8.507059e+37
        %v2330 = vand.u32 %v2255, 2147483648
        %v2331 = vor.u32 1.1754944e-38, %v2330
        %v2332 = vsel %vm2329, %v2331, %v2327
        %v2333 = vmul.f32 %v2287, %v2332
        %v2334 = vrcp.pop %v2256
        %v2335 = vmul.f32 %v2256, %v2334
        %v2336 = vsub.f32 1.0, %v2335
        %v2337 = vmul.f32 %v2334, %v2336
        %v2338 = vadd.f32 %v2334, %v2337
        %vm2339 = vweird.f32 %v2256
        %vm2340 = vweird.f32 %v2334
        %vm2341 = vmor %vm2339, %vm2340
        %v2342 = vsel %vm2341, %v2334, %v2338
        %v2343 = vand.u32 2147483647, %v2256
        %vm2344 = vcmp.eq.f32.partialorder %v2343, 8.507059e+37
        %v2345 = vand.u32 %v2256, 2147483648
        %v2346 = vor.u32 1.1754944e-38, %v2345
        %v2347 = vsel %vm2344, %v2346, %v2342
        %v2348 = vmul.f32 %v2288, %v2347
        %v2349 = vrcp.pop %v2257
        %v2350 = vmul.f32 %v2257, %v2349
        %v2351 = vsub.f32 1.0, %v2350
        %v2352 = vmul.f32 %v2349, %v2351
        %v2353 = vadd.f32 %v2349, %v2352
        %vm2354 = vweird.f32 %v2257
        %vm2355 = vweird.f32 %v2349
        %vm2356 = vmor %vm2354, %vm2355
        %v2357 = vsel %vm2356, %v2349, %v2353
        %v2358 = vand.u32 2147483647, %v2257
        %vm2359 = vcmp.eq.f32.partialorder %v2358, 8.507059e+37
        %v2360 = vand.u32 %v2257, 2147483648
        %v2361 = vor.u32 1.1754944e-38, %v2360
        %v2362 = vsel %vm2359, %v2361, %v2357
        %v2363 = vmul.f32 %v2289, %v2362
        %v2364 = vrcp.pop %v2258
        %v2365 = vmul.f32 %v2258, %v2364
        %v2366 = vsub.f32 1.0, %v2365
        %v2367 = vmul.f32 %v2364, %v2366
        %v2368 = vadd.f32 %v2364, %v2367
        %vm2369 = vweird.f32 %v2258
        %vm2370 = vweird.f32 %v2364
        %vm2371 = vmor %vm2369, %vm2370
        %v2372 = vsel %vm2371, %v2364, %v2368
        %v2373 = vand.u32 2147483647, %v2258
        %vm2374 = vcmp.eq.f32.partialorder %v2373, 8.507059e+37
        %v2375 = vand.u32 %v2258, 2147483648
        %v2376 = vor.u32 1.1754944e-38, %v2375
        %v2377 = vsel %vm2374, %v2376, %v2372
        %v2378 = vmul.f32 %v2290, %v2377
        %v2379 = vrcp.pop %v2259
        %v2380 = vmul.f32 %v2259, %v2379
        %v2381 = vsub.f32 1.0, %v2380
        %v2382 = vmul.f32 %v2379, %v2381
        %v2383 = vadd.f32 %v2379, %v2382
        %vm2384 = vweird.f32 %v2259
        %vm2385 = vweird.f32 %v2379
        %vm2386 = vmor %vm2384, %vm2385
        %v2387 = vsel %vm2386, %v2379, %v2383
        %v2388 = vand.u32 2147483647, %v2259
        %vm2389 = vcmp.eq.f32.partialorder %v2388, 8.507059e+37
        %v2390 = vand.u32 %v2259, 2147483648
        %v2391 = vor.u32 1.1754944e-38, %v2390
        %v2392 = vsel %vm2389, %v2391, %v2387
        %v2393 = vmul.f32 %v2291, %v2392
        %v2394 = vrcp.pop %v2260
        %v2395 = vmul.f32 %v2260, %v2394
        %v2396 = vsub.f32 1.0, %v2395
        %v2397 = vmul.f32 %v2394, %v2396
        %v2398 = vadd.f32 %v2394, %v2397
        %vm2399 = vweird.f32 %v2260
        %vm2400 = vweird.f32 %v2394
        %vm2401 = vmor %vm2399, %vm2400
        %v2402 = vsel %vm2401, %v2394, %v2398
        %v2403 = vand.u32 2147483647, %v2260
        %vm2404 = vcmp.eq.f32.partialorder %v2403, 8.507059e+37
        %v2405 = vand.u32 %v2260, 2147483648
        %v2406 = vor.u32 1.1754944e-38, %v2405
        %v2407 = vsel %vm2404, %v2406, %v2402
        %v2408 = vmul.f32 %v2292, %v2407
        %v2409 = vrcp.pop %v2261
        %v2410 = vmul.f32 %v2261, %v2409
        %v2411 = vsub.f32 1.0, %v2410
        %v2412 = vmul.f32 %v2409, %v2411
        %v2413 = vadd.f32 %v2409, %v2412
        %vm2414 = vweird.f32 %v2261
        %vm2415 = vweird.f32 %v2409
        %vm2416 = vmor %vm2414, %vm2415
        %v2417 = vsel %vm2416, %v2409, %v2413
        %v2418 = vand.u32 2147483647, %v2261
        %vm2419 = vcmp.eq.f32.partialorder %v2418, 8.507059e+37
        %v2420 = vand.u32 %v2261, 2147483648
        %v2421 = vor.u32 1.1754944e-38, %v2420
        %v2422 = vsel %vm2419, %v2421, %v2417
        %v2423 = vmul.f32 %v2293, %v2422
        %v2424 = vrcp.pop %v2262
        %v2425 = vmul.f32 %v2262, %v2424
        %v2426 = vsub.f32 1.0, %v2425
        %v2427 = vmul.f32 %v2424, %v2426
        %v2428 = vadd.f32 %v2424, %v2427
        %vm2429 = vweird.f32 %v2262
        %vm2430 = vweird.f32 %v2424
        %vm2431 = vmor %vm2429, %vm2430
        %v2432 = vsel %vm2431, %v2424, %v2428
        %v2433 = vand.u32 2147483647, %v2262
        %vm2434 = vcmp.eq.f32.partialorder %v2433, 8.507059e+37
        %v2435 = vand.u32 %v2262, 2147483648
        %v2436 = vor.u32 1.1754944e-38, %v2435
        %v2437 = vsel %vm2434, %v2436, %v2432
        %v2438 = vmul.f32 %v2294, %v2437
        %v2439 = vrcp.pop %v2263
        %v2440 = vmul.f32 %v2263, %v2439
        %v2441 = vsub.f32 1.0, %v2440
        %v2442 = vmul.f32 %v2439, %v2441
        %v2443 = vadd.f32 %v2439, %v2442
        %vm2444 = vweird.f32 %v2263
        %vm2445 = vweird.f32 %v2439
        %vm2446 = vmor %vm2444, %vm2445
        %v2447 = vsel %vm2446, %v2439, %v2443
        %v2448 = vand.u32 2147483647, %v2263
        %vm2449 = vcmp.eq.f32.partialorder %v2448, 8.507059e+37
        %v2450 = vand.u32 %v2263, 2147483648
        %v2451 = vor.u32 1.1754944e-38, %v2450
        %v2452 = vsel %vm2449, %v2451, %v2447
        %v2453 = vmul.f32 %v2295, %v2452
        %v2454 = vrcp.pop %v2264
        %v2455 = vmul.f32 %v2264, %v2454
        %v2456 = vsub.f32 1.0, %v2455
        %v2457 = vmul.f32 %v2454, %v2456
        %v2458 = vadd.f32 %v2454, %v2457
        %vm2459 = vweird.f32 %v2264
        %vm2460 = vweird.f32 %v2454
        %vm2461 = vmor %vm2459, %vm2460
        %v2462 = vsel %vm2461, %v2454, %v2458
        %v2463 = vand.u32 2147483647, %v2264
        %vm2464 = vcmp.eq.f32.partialorder %v2463, 8.507059e+37
        %v2465 = vand.u32 %v2264, 2147483648
        %v2466 = vor.u32 1.1754944e-38, %v2465
        %v2467 = vsel %vm2464, %v2466, %v2462
        %v2468 = vmul.f32 %v2296, %v2467
        %v2469 = vrcp.pop %v2265
        %v2470 = vmul.f32 %v2265, %v2469
        %v2471 = vsub.f32 1.0, %v2470
        %v2472 = vmul.f32 %v2469, %v2471
        %v2473 = vadd.f32 %v2469, %v2472
        %vm2474 = vweird.f32 %v2265
        %vm2475 = vweird.f32 %v2469
        %vm2476 = vmor %vm2474, %vm2475
        %v2477 = vsel %vm2476, %v2469, %v2473
        %v2478 = vand.u32 2147483647, %v2265
        %vm2479 = vcmp.eq.f32.partialorder %v2478, 8.507059e+37
        %v2480 = vand.u32 %v2265, 2147483648
        %v2481 = vor.u32 1.1754944e-38, %v2480
        %v2482 = vsel %vm2479, %v2481, %v2477
        %v2483 = vmul.f32 %v2297, %v2482
        %v2484 = vrcp.pop %v2266
        %v2485 = vmul.f32 %v2266, %v2484
        %v2486 = vsub.f32 1.0, %v2485
        %v2487 = vmul.f32 %v2484, %v2486
        %v2488 = vadd.f32 %v2484, %v2487
        %vm2489 = vweird.f32 %v2266
        %vm2490 = vweird.f32 %v2484
        %vm2491 = vmor %vm2489, %vm2490
        %v2492 = vsel %vm2491, %v2484, %v2488
        %v2493 = vand.u32 2147483647, %v2266
        %vm2494 = vcmp.eq.f32.partialorder %v2493, 8.507059e+37
        %v2495 = vand.u32 %v2266, 2147483648
        %v2496 = vor.u32 1.1754944e-38, %v2495
        %v2497 = vsel %vm2494, %v2496, %v2492
        %v2498 = vmul.f32 %v2298, %v2497
        %v2499 = vrcp.pop %v2267
        %v2500 = vmul.f32 %v2267, %v2499
        %v2501 = vsub.f32 1.0, %v2500
        %v2502 = vmul.f32 %v2499, %v2501
        %v2503 = vadd.f32 %v2499, %v2502
        %vm2504 = vweird.f32 %v2267
        %vm2505 = vweird.f32 %v2499
        %vm2506 = vmor %vm2504, %vm2505
        %v2507 = vsel %vm2506, %v2499, %v2503
        %v2508 = vand.u32 2147483647, %v2267
        %vm2509 = vcmp.eq.f32.partialorder %v2508, 8.507059e+37
        %v2510 = vand.u32 %v2267, 2147483648
        %v2511 = vor.u32 1.1754944e-38, %v2510
        %v2512 = vsel %vm2509, %v2511, %v2507
        %v2513 = vmul.f32 %v2299, %v2512
        %v2514 = vrcp.pop %v2268
        %v2515 = vmul.f32 %v2268, %v2514
        %v2516 = vsub.f32 1.0, %v2515
        %v2517 = vmul.f32 %v2514, %v2516
        %v2518 = vadd.f32 %v2514, %v2517
        %vm2519 = vweird.f32 %v2268
        %vm2520 = vweird.f32 %v2514
        %vm2521 = vmor %vm2519, %vm2520
        %v2522 = vsel %vm2521, %v2514, %v2518
        %v2523 = vand.u32 2147483647, %v2268
        %vm2524 = vcmp.eq.f32.partialorder %v2523, 8.507059e+37
        %v2525 = vand.u32 %v2268, 2147483648
        %v2526 = vor.u32 1.1754944e-38, %v2525
        %v2527 = vsel %vm2524, %v2526, %v2522
        %v2528 = vmul.f32 %v2300, %v2527
        %v2529 = vrcp.pop %v2269
        %v2530 = vmul.f32 %v2269, %v2529
        %v2531 = vsub.f32 1.0, %v2530
        %v2532 = vmul.f32 %v2529, %v2531
        %v2533 = vadd.f32 %v2529, %v2532
        %vm2534 = vweird.f32 %v2269
        %vm2535 = vweird.f32 %v2529
        %vm2536 = vmor %vm2534, %vm2535
        %v2537 = vsel %vm2536, %v2529, %v2533
        %v2538 = vand.u32 2147483647, %v2269
        %vm2539 = vcmp.eq.f32.partialorder %v2538, 8.507059e+37
        %v2540 = vand.u32 %v2269, 2147483648
        %v2541 = vor.u32 1.1754944e-38, %v2540
        %v2542 = vsel %vm2539, %v2541, %v2537
        %v2543 = vmul.f32 %v2301, %v2542
        %v2544 = vrcp.pop %v2270
        %v2545 = vmul.f32 %v2270, %v2544
        %v2546 = vsub.f32 1.0, %v2545
        %v2547 = vmul.f32 %v2544, %v2546
        %v2548 = vadd.f32 %v2544, %v2547
        %vm2549 = vweird.f32 %v2270
        %vm2550 = vweird.f32 %v2544
        %vm2551 = vmor %vm2549, %vm2550
        %v2552 = vsel %vm2551, %v2544, %v2548
        %v2553 = vand.u32 2147483647, %v2270
        %vm2554 = vcmp.eq.f32.partialorder %v2553, 8.507059e+37
        %v2555 = vand.u32 %v2270, 2147483648
        %v2556 = vor.u32 1.1754944e-38, %v2555
        %v2557 = vsel %vm2554, %v2556, %v2552
        %v2558 = vmul.f32 %v2302, %v2557
        %v2559 = vrcp.pop %v2271
        %v2560 = vmul.f32 %v2271, %v2559
        %v2561 = vsub.f32 1.0, %v2560
        %v2562 = vmul.f32 %v2559, %v2561
        %v2563 = vadd.f32 %v2559, %v2562
        %vm2564 = vweird.f32 %v2271
        %vm2565 = vweird.f32 %v2559
        %vm2566 = vmor %vm2564, %vm2565
        %v2567 = vsel %vm2566, %v2559, %v2563
        %v2568 = vand.u32 2147483647, %v2271
        %vm2569 = vcmp.eq.f32.partialorder %v2568, 8.507059e+37
        %v2570 = vand.u32 %v2271, 2147483648
        %v2571 = vor.u32 1.1754944e-38, %v2570
        %v2572 = vsel %vm2569, %v2571, %v2567
        %v2573 = vmul.f32 %v2303, %v2572
        %v2574 = vrcp.pop %v2272
        %v2575 = vmul.f32 %v2272, %v2574
        %v2576 = vsub.f32 1.0, %v2575
        %v2577 = vmul.f32 %v2574, %v2576
        %v2578 = vadd.f32 %v2574, %v2577
        %vm2579 = vweird.f32 %v2272
        %vm2580 = vweird.f32 %v2574
        %vm2581 = vmor %vm2579, %vm2580
        %v2582 = vsel %vm2581, %v2574, %v2578
        %v2583 = vand.u32 2147483647, %v2272
        %vm2584 = vcmp.eq.f32.partialorder %v2583, 8.507059e+37
        %v2585 = vand.u32 %v2272, 2147483648
        %v2586 = vor.u32 1.1754944e-38, %v2585
        %v2587 = vsel %vm2584, %v2586, %v2582
        %v2588 = vmul.f32 %v2304, %v2587
        %v2589 = vrcp.pop %v2273
        %v2590 = vmul.f32 %v2273, %v2589
        %v2591 = vsub.f32 1.0, %v2590
        %v2592 = vmul.f32 %v2589, %v2591
        %v2593 = vadd.f32 %v2589, %v2592
        %vm2594 = vweird.f32 %v2273
        %vm2595 = vweird.f32 %v2589
        %vm2596 = vmor %vm2594, %vm2595
        %v2597 = vsel %vm2596, %v2589, %v2593
        %v2598 = vand.u32 2147483647, %v2273
        %vm2599 = vcmp.eq.f32.partialorder %v2598, 8.507059e+37
        %v2600 = vand.u32 %v2273, 2147483648
        %v2601 = vor.u32 1.1754944e-38, %v2600
        %v2602 = vsel %vm2599, %v2601, %v2597
        %v2603 = vmul.f32 %v2305, %v2602
        %v2604 = vrcp.pop %v2274
        %v2605 = vmul.f32 %v2274, %v2604
        %v2606 = vsub.f32 1.0, %v2605
        %v2607 = vmul.f32 %v2604, %v2606
        %v2608 = vadd.f32 %v2604, %v2607
        %vm2609 = vweird.f32 %v2274
        %vm2610 = vweird.f32 %v2604
        %vm2611 = vmor %vm2609, %vm2610
        %v2612 = vsel %vm2611, %v2604, %v2608
        %v2613 = vand.u32 2147483647, %v2274
        %vm2614 = vcmp.eq.f32.partialorder %v2613, 8.507059e+37
        %v2615 = vand.u32 %v2274, 2147483648
        %v2616 = vor.u32 1.1754944e-38, %v2615
        %v2617 = vsel %vm2614, %v2616, %v2612
        %v2618 = vmul.f32 %v2306, %v2617
        %v2619 = vrcp.pop %v2275
        %v2620 = vmul.f32 %v2275, %v2619
        %v2621 = vsub.f32 1.0, %v2620
        %v2622 = vmul.f32 %v2619, %v2621
        %v2623 = vadd.f32 %v2619, %v2622
        %vm2624 = vweird.f32 %v2275
        %vm2625 = vweird.f32 %v2619
        %vm2626 = vmor %vm2624, %vm2625
        %v2627 = vsel %vm2626, %v2619, %v2623
        %v2628 = vand.u32 2147483647, %v2275
        %vm2629 = vcmp.eq.f32.partialorder %v2628, 8.507059e+37
        %v2630 = vand.u32 %v2275, 2147483648
        %v2631 = vor.u32 1.1754944e-38, %v2630
        %v2632 = vsel %vm2629, %v2631, %v2627
        %v2633 = vmul.f32 %v2307, %v2632
        %v2634 = vrcp.pop %v2276
        %v2635 = vmul.f32 %v2276, %v2634
        %v2636 = vsub.f32 1.0, %v2635
        %v2637 = vmul.f32 %v2634, %v2636
        %v2638 = vadd.f32 %v2634, %v2637
        %vm2639 = vweird.f32 %v2276
        %vm2640 = vweird.f32 %v2634
        %vm2641 = vmor %vm2639, %vm2640
        %v2642 = vsel %vm2641, %v2634, %v2638
        %v2643 = vand.u32 2147483647, %v2276
        %vm2644 = vcmp.eq.f32.partialorder %v2643, 8.507059e+37
        %v2645 = vand.u32 %v2276, 2147483648
        %v2646 = vor.u32 1.1754944e-38, %v2645
        %v2647 = vsel %vm2644, %v2646, %v2642
        %v2648 = vmul.f32 %v2308, %v2647
        %v2649 = vrcp.pop %v2277
        %v2650 = vmul.f32 %v2277, %v2649
        %v2651 = vsub.f32 1.0, %v2650
        %v2652 = vmul.f32 %v2649, %v2651
        %v2653 = vadd.f32 %v2649, %v2652
        %vm2654 = vweird.f32 %v2277
        %vm2655 = vweird.f32 %v2649
        %vm2656 = vmor %vm2654, %vm2655
        %v2657 = vsel %vm2656, %v2649, %v2653
        %v2658 = vand.u32 2147483647, %v2277
        %vm2659 = vcmp.eq.f32.partialorder %v2658, 8.507059e+37
        %v2660 = vand.u32 %v2277, 2147483648
        %v2661 = vor.u32 1.1754944e-38, %v2660
        %v2662 = vsel %vm2659, %v2661, %v2657
        %v2663 = vmul.f32 %v2309, %v2662
        %v2664 = vrcp.pop %v2278
        %v2665 = vmul.f32 %v2278, %v2664
        %v2666 = vsub.f32 1.0, %v2665
        %v2667 = vmul.f32 %v2664, %v2666
        %v2668 = vadd.f32 %v2664, %v2667
        %vm2669 = vweird.f32 %v2278
        %vm2670 = vweird.f32 %v2664
        %vm2671 = vmor %vm2669, %vm2670
        %v2672 = vsel %vm2671, %v2664, %v2668
        %v2673 = vand.u32 2147483647, %v2278
        %vm2674 = vcmp.eq.f32.partialorder %v2673, 8.507059e+37
        %v2675 = vand.u32 %v2278, 2147483648
        %v2676 = vor.u32 1.1754944e-38, %v2675
        %v2677 = vsel %vm2674, %v2676, %v2672
        %v2678 = vmul.f32 %v2310, %v2677
        %v2679 = vrcp.pop %v2279
        %v2680 = vmul.f32 %v2279, %v2679
        %v2681 = vsub.f32 1.0, %v2680
        %v2682 = vmul.f32 %v2679, %v2681
        %v2683 = vadd.f32 %v2679, %v2682
        %vm2684 = vweird.f32 %v2279
        %vm2685 = vweird.f32 %v2679
        %vm2686 = vmor %vm2684, %vm2685
        %v2687 = vsel %vm2686, %v2679, %v2683
        %v2688 = vand.u32 2147483647, %v2279
        %vm2689 = vcmp.eq.f32.partialorder %v2688, 8.507059e+37
        %v2690 = vand.u32 %v2279, 2147483648
        %v2691 = vor.u32 1.1754944e-38, %v2690
        %v2692 = vsel %vm2689, %v2691, %v2687
        %v2693 = vmul.f32 %v2311, %v2692
        %v2694 = vrcp.pop %v2280
        %v2695 = vmul.f32 %v2280, %v2694
        %v2696 = vsub.f32 1.0, %v2695
        %v2697 = vmul.f32 %v2694, %v2696
        %v2698 = vadd.f32 %v2694, %v2697
        %vm2699 = vweird.f32 %v2280
        %vm2700 = vweird.f32 %v2694
        %vm2701 = vmor %vm2699, %vm2700
        %v2702 = vsel %vm2701, %v2694, %v2698
        %v2703 = vand.u32 2147483647, %v2280
        %vm2704 = vcmp.eq.f32.partialorder %v2703, 8.507059e+37
        %v2705 = vand.u32 %v2280, 2147483648
        %v2706 = vor.u32 1.1754944e-38, %v2705
        %v2707 = vsel %vm2704, %v2706, %v2702
        %v2708 = vmul.f32 %v2312, %v2707
        %v2709 = vrcp.pop %v2281
        %v2710 = vmul.f32 %v2281, %v2709
        %v2711 = vsub.f32 1.0, %v2710
        %v2712 = vmul.f32 %v2709, %v2711
        %v2713 = vadd.f32 %v2709, %v2712
        %vm2714 = vweird.f32 %v2281
        %vm2715 = vweird.f32 %v2709
        %vm2716 = vmor %vm2714, %vm2715
        %v2717 = vsel %vm2716, %v2709, %v2713
        %v2718 = vand.u32 2147483647, %v2281
        %vm2719 = vcmp.eq.f32.partialorder %v2718, 8.507059e+37
        %v2720 = vand.u32 %v2281, 2147483648
        %v2721 = vor.u32 1.1754944e-38, %v2720
        %v2722 = vsel %vm2719, %v2721, %v2717
        %v2723 = vmul.f32 %v2313, %v2722
        %v2724 = vrcp.pop %v2282
        %v2725 = vmul.f32 %v2282, %v2724
        %v2726 = vsub.f32 1.0, %v2725
        %v2727 = vmul.f32 %v2724, %v2726
        %v2728 = vadd.f32 %v2724, %v2727
        %vm2729 = vweird.f32 %v2282
        %vm2730 = vweird.f32 %v2724
        %vm2731 = vmor %vm2729, %vm2730
        %v2732 = vsel %vm2731, %v2724, %v2728
        %v2733 = vand.u32 2147483647, %v2282
        %vm2734 = vcmp.eq.f32.partialorder %v2733, 8.507059e+37
        %v2735 = vand.u32 %v2282, 2147483648
        %v2736 = vor.u32 1.1754944e-38, %v2735
        %v2737 = vsel %vm2734, %v2736, %v2732
        %v2738 = vmul.f32 %v2314, %v2737
        %v2739 = vrcp.pop %v2283
        %v2740 = vmul.f32 %v2283, %v2739
        %v2741 = vsub.f32 1.0, %v2740
        %v2742 = vmul.f32 %v2739, %v2741
        %v2743 = vadd.f32 %v2739, %v2742
        %vm2744 = vweird.f32 %v2283
        %vm2745 = vweird.f32 %v2739
        %vm2746 = vmor %vm2744, %vm2745
        %v2747 = vsel %vm2746, %v2739, %v2743
        %v2748 = vand.u32 2147483647, %v2283
        %vm2749 = vcmp.eq.f32.partialorder %v2748, 8.507059e+37
        %v2750 = vand.u32 %v2283, 2147483648
        %v2751 = vor.u32 1.1754944e-38, %v2750
        %v2752 = vsel %vm2749, %v2751, %v2747
        %v2753 = vmul.f32 %v2315, %v2752
        %v2754 = vrcp.pop %v2284
        %v2755 = vmul.f32 %v2284, %v2754
        %v2756 = vsub.f32 1.0, %v2755
        %v2757 = vmul.f32 %v2754, %v2756
        %v2758 = vadd.f32 %v2754, %v2757
        %vm2759 = vweird.f32 %v2284
        %vm2760 = vweird.f32 %v2754
        %vm2761 = vmor %vm2759, %vm2760
        %v2762 = vsel %vm2761, %v2754, %v2758
        %v2763 = vand.u32 2147483647, %v2284
        %vm2764 = vcmp.eq.f32.partialorder %v2763, 8.507059e+37
        %v2765 = vand.u32 %v2284, 2147483648
        %v2766 = vor.u32 1.1754944e-38, %v2765
        %v2767 = vsel %vm2764, %v2766, %v2762
        %v2768 = vmul.f32 %v2316, %v2767
        %v2769 = vrcp.pop %v2285
        %v2770 = vmul.f32 %v2285, %v2769
        %v2771 = vsub.f32 1.0, %v2770
        %v2772 = vmul.f32 %v2769, %v2771
        %v2773 = vadd.f32 %v2769, %v2772
        %vm2774 = vweird.f32 %v2285
        %vm2775 = vweird.f32 %v2769
        %vm2776 = vmor %vm2774, %vm2775
        %v2777 = vsel %vm2776, %v2769, %v2773
        %v2778 = vand.u32 2147483647, %v2285
        %vm2779 = vcmp.eq.f32.partialorder %v2778, 8.507059e+37
        %v2780 = vand.u32 %v2285, 2147483648
        %v2781 = vor.u32 1.1754944e-38, %v2780
        %v2782 = vsel %vm2779, %v2781, %v2777
        %v2783 = vmul.f32 %v2317, %v2782
        %v2784 = vrcp.pop %v2286
        %v2785 = vmul.f32 %v2286, %v2784
        %v2786 = vsub.f32 1.0, %v2785
        %v2787 = vmul.f32 %v2784, %v2786
        %v2788 = vadd.f32 %v2784, %v2787
        %vm2789 = vweird.f32 %v2286
        %vm2790 = vweird.f32 %v2784
        %vm2791 = vmor %vm2789, %vm2790
        %v2792 = vsel %vm2791, %v2784, %v2788
        %v2793 = vand.u32 2147483647, %v2286
        %vm2794 = vcmp.eq.f32.partialorder %v2793, 8.507059e+37
        %v2795 = vand.u32 %v2286, 2147483648
        %v2796 = vor.u32 1.1754944e-38, %v2795
        %v2797 = vsel %vm2794, %v2796, %v2792
        %v2798 = vmul.f32 %v2318, %v2797
        %v2799 = vsub.f32 1.0, %v2333
        %v2800 = vsub.f32 1.0, %v2348
        %v2801 = vsub.f32 1.0, %v2363
        %v2802 = vsub.f32 1.0, %v2378
        %v2803 = vsub.f32 1.0, %v2393
        %v2804 = vsub.f32 1.0, %v2408
        %v2805 = vsub.f32 1.0, %v2423
        %v2806 = vsub.f32 1.0, %v2438
        %v2807 = vsub.f32 1.0, %v2453
        %v2808 = vsub.f32 1.0, %v2468
        %v2809 = vsub.f32 1.0, %v2483
        %v2810 = vsub.f32 1.0, %v2498
        %v2811 = vsub.f32 1.0, %v2513
        %v2812 = vsub.f32 1.0, %v2528
        %v2813 = vsub.f32 1.0, %v2543
        %v2814 = vsub.f32 1.0, %v2558
        %v2815 = vsub.f32 1.0, %v2573
        %v2816 = vsub.f32 1.0, %v2588
        %v2817 = vsub.f32 1.0, %v2603
        %v2818 = vsub.f32 1.0, %v2618
        %v2819 = vsub.f32 1.0, %v2633
        %v2820 = vsub.f32 1.0, %v2648
        %v2821 = vsub.f32 1.0, %v2663
        %v2822 = vsub.f32 1.0, %v2678
        %v2823 = vsub.f32 1.0, %v2693
        %v2824 = vsub.f32 1.0, %v2708
        %v2825 = vsub.f32 1.0, %v2723
        %v2826 = vsub.f32 1.0, %v2738
        %v2827 = vsub.f32 1.0, %v2753
        %v2828 = vsub.f32 1.0, %v2768
        %v2829 = vsub.f32 1.0, %v2783
        %v2830 = vsub.f32 1.0, %v2798
        %v2831 = vsel %vm2159, 0.0, %v2799
        %v2832 = vsel %vm2160, 0.0, %v2800
        %v2833 = vsel %vm2161, 0.0, %v2801
        %v2834 = vsel %vm2162, 0.0, %v2802
        %v2835 = vsel %vm2163, 0.0, %v2803
        %v2836 = vsel %vm2164, 0.0, %v2804
        %v2837 = vsel %vm2165, 0.0, %v2805
        %v2838 = vsel %vm2166, 0.0, %v2806
        %v2839 = vsel %vm2167, 0.0, %v2807
        %v2840 = vsel %vm2168, 0.0, %v2808
        %v2841 = vsel %vm2169, 0.0, %v2809
        %v2842 = vsel %vm2170, 0.0, %v2810
        %v2843 = vsel %vm2171, 0.0, %v2811
        %v2844 = vsel %vm2172, 0.0, %v2812
        %v2845 = vsel %vm2173, 0.0, %v2813
        %v2846 = vsel %vm2174, 0.0, %v2814
        %v2847 = vsel %vm2175, 0.0, %v2815
        %v2848 = vsel %vm2176, 0.0, %v2816
        %v2849 = vsel %vm2177, 0.0, %v2817
        %v2850 = vsel %vm2178, 0.0, %v2818
        %v2851 = vsel %vm2179, 0.0, %v2819
        %v2852 = vsel %vm2180, 0.0, %v2820
        %v2853 = vsel %vm2181, 0.0, %v2821
        %v2854 = vsel %vm2182, 0.0, %v2822
        %v2855 = vsel %vm2183, 0.0, %v2823
        %v2856 = vsel %vm2184, 0.0, %v2824
        %v2857 = vsel %vm2185, 0.0, %v2825
        %v2858 = vsel %vm2186, 0.0, %v2826
        %v2859 = vsel %vm2187, 0.0, %v2827
        %v2860 = vsel %vm2188, 0.0, %v2828
        %v2861 = vsel %vm2189, 0.0, %v2829
        %v2862 = vsel %vm2190, 0.0, %v2830
        %v2863 = vsub.f32 %v2095, %v2831
        %v2864 = vsub.f32 %v2096, %v2832
        %v2865 = vsub.f32 %v2097, %v2833
        %v2866 = vsub.f32 %v2098, %v2834
        %v2867 = vsub.f32 %v2099, %v2835
        %v2868 = vsub.f32 %v2100, %v2836
        %v2869 = vsub.f32 %v2101, %v2837
        %v2870 = vsub.f32 %v2102, %v2838
        %v2871 = vsub.f32 %v2103, %v2839
        %v2872 = vsub.f32 %v2104, %v2840
        %v2873 = vsub.f32 %v2105, %v2841
        %v2874 = vsub.f32 %v2106, %v2842
        %v2875 = vsub.f32 %v2107, %v2843
        %v2876 = vsub.f32 %v2108, %v2844
        %v2877 = vsub.f32 %v2109, %v2845
        %v2878 = vsub.f32 %v2110, %v2846
        %v2879 = vsub.f32 %v2111, %v2847
        %v2880 = vsub.f32 %v2112, %v2848
        %v2881 = vsub.f32 %v2113, %v2849
        %v2882 = vsub.f32 %v2114, %v2850
        %v2883 = vsub.f32 %v2115, %v2851
        %v2884 = vsub.f32 %v2116, %v2852
        %v2885 = vsub.f32 %v2117, %v2853
        %v2886 = vsub.f32 %v2118, %v2854
        %v2887 = vsub.f32 %v2119, %v2855
        %v2888 = vsub.f32 %v2120, %v2856
        %v2889 = vsub.f32 %v2121, %v2857
        %v2890 = vsub.f32 %v2122, %v2858
        %v2891 = vsub.f32 %v2123, %v2859
        %v2892 = vsub.f32 %v2124, %v2860
        %v2893 = vsub.f32 %v2125, %v2861
        %v2894 = vsub.f32 %v2126, %v2862
        %v2895 = vmax.f32 %v1059, 0.0
        %v2896 = vmax.f32 %v1062, 0.0
        %v2897 = vmax.f32 %v1065, 0.0
        %v2898 = vmax.f32 %v1068, 0.0
        %v2899 = vmax.f32 %v1071, 0.0
        %v2900 = vmax.f32 %v1074, 0.0
        %v2901 = vmax.f32 %v1077, 0.0
        %v2902 = vmax.f32 %v1080, 0.0
        %v2903 = vmax.f32 %v1083, 0.0
        %v2904 = vmax.f32 %v1086, 0.0
        %v2905 = vmax.f32 %v1089, 0.0
        %v2906 = vmax.f32 %v1092, 0.0
        %v2907 = vmax.f32 %v1095, 0.0
        %v2908 = vmax.f32 %v1098, 0.0
        %v2909 = vmax.f32 %v1101, 0.0
        %v2910 = vmax.f32 %v1104, 0.0
        %v2911 = vmax.f32 %v1107, 0.0
        %v2912 = vmax.f32 %v1110, 0.0
        %v2913 = vmax.f32 %v1113, 0.0
        %v2914 = vmax.f32 %v1116, 0.0
        %v2915 = vmax.f32 %v1119, 0.0
        %v2916 = vmax.f32 %v1122, 0.0
        %v2917 = vmax.f32 %v1125, 0.0
        %v2918 = vmax.f32 %v1128, 0.0
        %v2919 = vmax.f32 %v1131, 0.0
        %v2920 = vmax.f32 %v1134, 0.0
        %v2921 = vmax.f32 %v1137, 0.0
        %v2922 = vmax.f32 %v1140, 0.0
        %v2923 = vmax.f32 %v1143, 0.0
        %v2924 = vmax.f32 %v1146, 0.0
        %v2925 = vmax.f32 %v1149, 0.0
        %v2926 = vmax.f32 %v1152, 0.0
        %v2927 = vmul.f32 %v2895, %v2863
        %v2928 = vmul.f32 %v2896, %v2864
        %v2929 = vmul.f32 %v2897, %v2865
        %v2930 = vmul.f32 %v2898, %v2866
        %v2931 = vmul.f32 %v2899, %v2867
        %v2932 = vmul.f32 %v2900, %v2868
        %v2933 = vmul.f32 %v2901, %v2869
        %v2934 = vmul.f32 %v2902, %v2870
        %v2935 = vmul.f32 %v2903, %v2871
        %v2936 = vmul.f32 %v2904, %v2872
        %v2937 = vmul.f32 %v2905, %v2873
        %v2938 = vmul.f32 %v2906, %v2874
        %v2939 = vmul.f32 %v2907, %v2875
        %v2940 = vmul.f32 %v2908, %v2876
        %v2941 = vmul.f32 %v2909, %v2877
        %v2942 = vmul.f32 %v2910, %v2878
        %v2943 = vmul.f32 %v2911, %v2879
        %v2944 = vmul.f32 %v2912, %v2880
        %v2945 = vmul.f32 %v2913, %v2881
        %v2946 = vmul.f32 %v2914, %v2882
        %v2947 = vmul.f32 %v2915, %v2883
        %v2948 = vmul.f32 %v2916, %v2884
        %v2949 = vmul.f32 %v2917, %v2885
        %v2950 = vmul.f32 %v2918, %v2886
        %v2951 = vmul.f32 %v2919, %v2887
        %v2952 = vmul.f32 %v2920, %v2888
        %v2953 = vmul.f32 %v2921, %v2889
        %v2954 = vmul.f32 %v2922, %v2890
        %v2955 = vmul.f32 %v2923, %v2891
        %v2956 = vmul.f32 %v2924, %v2892
        %v2957 = vmul.f32 %v2925, %v2893
        %v2958 = vmul.f32 %v2926, %v2894
        %vm2959 = vcmask 7168
        %v2960 = vsel %vm2959, %v2927, 0.0
        %v2961 = vsel %vm2959, %v2928, 0.0
        %v2962 = vadd.f32 %v2960, %v2961
        %v2963 = vsel %vm2959, %v2929, 0.0
        %v2964 = vadd.f32 %v2962, %v2963
        %v2965 = vsel %vm2959, %v2930, 0.0
        %v2966 = vadd.f32 %v2964, %v2965
        %v2967 = vsel %vm2959, %v2931, 0.0
        %v2968 = vadd.f32 %v2966, %v2967
        %v2969 = vsel %vm2959, %v2932, 0.0
        %v2970 = vadd.f32 %v2968, %v2969
        %v2971 = vsel %vm2959, %v2933, 0.0
        %v2972 = vadd.f32 %v2970, %v2971
        %v2973 = vsel %vm2959, %v2934, 0.0
        %v2974 = vadd.f32 %v2972, %v2973
        %v2975 = vsel %vm2959, %v2935, 0.0
        %v2976 = vadd.f32 %v2974, %v2975
        %v2977 = vsel %vm2959, %v2936, 0.0
        %v2978 = vadd.f32 %v2976, %v2977
        %v2979 = vsel %vm2959, %v2937, 0.0
        %v2980 = vadd.f32 %v2978, %v2979
        %v2981 = vsel %vm2959, %v2938, 0.0
        %v2982 = vadd.f32 %v2980, %v2981
        %v2983 = vsel %vm2959, %v2939, 0.0
        %v2984 = vadd.f32 %v2982, %v2983
        %v2985 = vsel %vm2959, %v2940, 0.0
        %v2986 = vadd.f32 %v2984, %v2985
        %v2987 = vsel %vm2959, %v2941, 0.0
        %v2988 = vadd.f32 %v2986, %v2987
        %v2989 = vsel %vm2959, %v2942, 0.0
        %v2990 = vadd.f32 %v2988, %v2989
        %v2991 = vsel %vm2959, %v2943, 0.0
        %v2992 = vadd.f32 %v2990, %v2991
        %v2993 = vsel %vm2959, %v2944, 0.0
        %v2994 = vadd.f32 %v2992, %v2993
        %v2995 = vsel %vm2959, %v2945, 0.0
        %v2996 = vadd.f32 %v2994, %v2995
        %v2997 = vsel %vm2959, %v2946, 0.0
        %v2998 = vadd.f32 %v2996, %v2997
        %v2999 = vsel %vm2959, %v2947, 0.0
        %v3000 = vadd.f32 %v2998, %v2999
        %v3001 = vsel %vm2959, %v2948, 0.0
        %v3002 = vadd.f32 %v3000, %v3001
        %v3003 = vsel %vm2959, %v2949, 0.0
        %v3004 = vadd.f32 %v3002, %v3003
        %v3005 = vsel %vm2959, %v2950, 0.0
        %v3006 = vadd.f32 %v3004, %v3005
        %v3007 = vsel %vm2959, %v2951, 0.0
        %v3008 = vadd.f32 %v3006, %v3007
        %v3009 = vsel %vm2959, %v2952, 0.0
        %v3010 = vadd.f32 %v3008, %v3009
        %v3011 = vsel %vm2959, %v2953, 0.0
        %v3012 = vadd.f32 %v3010, %v3011
        %v3013 = vsel %vm2959, %v2954, 0.0
        %v3014 = vadd.f32 %v3012, %v3013
        %v3015 = vsel %vm2959, %v2955, 0.0
        %v3016 = vadd.f32 %v3014, %v3015
        %v3017 = vsel %vm2959, %v2956, 0.0
        %v3018 = vadd.f32 %v3016, %v3017
        %v3019 = vsel %vm2959, %v2957, 0.0
        %v3020 = vadd.f32 %v3018, %v3019
        %v3021 = vsel %vm2959, %v2958, 0.0
        %v3022 = vadd.f32 %v3020, %v3021
        %3023 = vadd.xlane.f32.xlu0 %v3022
        %v3024 = vpop.xlane.xlu0 %3023
        %v3025 = vrot.slane %v3024, 4
        %v3026 = vadd.f32 %v3024, %v3025
        %v3027 = vrot.slane %v3026, 2
        %v3028 = vadd.f32 %v3026, %v3027
        %v3029 = vrot.slane %v3028, 1
        %v3030 = vadd.f32 %v3028, %v3029
        %s3031 = vtos %v3030
        %vm3032 = vcmp.eq.s32.totalorder %v200, 0
        %v3033 = vstv %s3031
        %v3034 = vsel %vm3032, %v3033, 0.0
        %v3035 = vadd.f32 %v3034, 0.0
        %3036 = vst [vmem:[%s198] sm:$0x1] %v3035
        %s3037 = sand.u32 %s82, 1
        %s3038 = scalar_lea.sflag [#allocation4], %s3037
        %s3039 = sand.u32 %s82, 1
        %s3040 = scalar_lea.vmem [#allocation7], %s3039
        // Predicated region
        $region37: #{tpu_custom_call.1} parent=27 // pred_check
          %p3041 = pneg %p92
        $region38: #{tpu_custom_call.1} parent=27 // pred_check_branch
          %3043 = sbr.rel (%p3041) target = $region40
        $region39: #{tpu_custom_call.1} parent=27 // pred_region
          %3045 = vsyncadd %s3038, 0
          %s3046 = scalar_lea.hbm %s2, %s22
          %s3048 = sshll.u32 %s3040, 4
          %s3049 = int_to_ptr.vmem [resolvable:$true] %s3048
          %s3050 = sshll.u32 %s3046, 4
          %s3051 = int_to_ptr.hbm [resolvable:$true] %s3050
          %3053 = dma.vmem_to_hbm [thread:$0]  %s3049, 16, %s3051, %s3038
        $region40: #{tpu_custom_call.1} parent=27 // pred_fallthru
          _
      $region28: #{tpu_custom_call.1} parent=5 // pred_fallthru
        _
      %p3054 = scmp.le.s32.totalorder 2, %s17
      // Predicated region
      $region41: #{tpu_custom_call.1} parent=5 // pred_check
        %p3055 = pneg %p3054
      $region42: #{tpu_custom_call.1} parent=5 // pred_check_branch
        %3057 = sbr.rel (%p3055) target = $region44
      $region43: #{tpu_custom_call.1} parent=5 // pred_region
        %s3058 = ssub.s32 %s17, 2
        // Predicated region
        $region45: #{tpu_custom_call.1} parent=43 // pred_check
          %p3059 = pneg %p98
        $region46: #{tpu_custom_call.1} parent=43 // pred_check_branch
          %3061 = sbr.rel (%p3059) target = $region48
        $region47: #{tpu_custom_call.1} parent=43 // pred_region
          %s3062 = sand.u32 %s83, 1
          %s3063 = scalar_lea.sflag [#allocation4], %s3062
          %s3064 = sand.u32 %s83, 1
          %s3065 = scalar_lea.vmem [#allocation7], %s3064
          %3067 = dma.done %s3063, 16
        $region48: #{tpu_custom_call.1} parent=43 // pred_fallthru
          _
      $region44: #{tpu_custom_call.1} parent=5 // pred_fallthru
        _
    $region6: #{tpu_custom_call.1} parent=1 // loop_footer
      %s21 = sadd.s32 1, %s17
    $region7: #{tpu_custom_call.1} parent=1 // loop_footer_branch
      %16 = sbr.rel target = $region3
    $region8: #{tpu_custom_call.1} parent=1 // loop_exit
      _
    %3068 = vsyncpa [#allocation3], 1
    %s3069 = scalar_lea.sflag [#allocation3], 1
    %3070 = vsyncpa %s3069, 1
    %3071 = vsyncpa [#allocation6], 1
    %s3072 = scalar_lea.sflag [#allocation6], 1
    %3073 = vsyncpa %s3072, 1
    %3074 = vsyncpa [#allocation4], 1
    %s3075 = scalar_lea.sflag [#allocation4], 1
    %3076 = vsyncpa %s3075, 1

</llo_original>
